<compile_context>
chip_gen: v6e
topology: v6e:2x2x1
jax: 0.10.0
libtpu: 0.0.40
codegen_flags: <defaults>
</compile_context>

<pallas_src>
import numpy as np
import jax
import jax.numpy as jnp
from jax.experimental import pallas as pl
from jax.experimental.pallas import tpu as pltpu


# ----------------------------------------------------------------------------
# Architecture constants (AE(3, 12, [16, 32, 32], [32, 32, 16]) on 16x16 inputs)
# ----------------------------------------------------------------------------
LANE = 128                       # TPU lane width; every column group is padded to it
IMG_HW = 16
ENC_CHANNELS = [3, 16, 32, 32, 12]
DEC_CHANNELS = [12, 32, 32, 16, 3]
ENC_HW = [16, 8, 4, 2]           # spatial size entering each encoder stage
DEC_HW = [1, 2, 4, 8]            # spatial size entering each decoder stage
ENC_KIN = [IMG_HW * ENC_CHANNELS[0], LANE, LANE, LANE]   # lane width entering stage
DEC_KIN = [LANE, LANE, LANE, LANE]


# ----------------------------------------------------------------------------
# Parameter init (PyTorch-default-like uniform init), raw PyTorch weight layouts
# ----------------------------------------------------------------------------
def init_params(key):
    params = {"enc": [], "dec": []}
    for i in range(4):
        cin, cout = ENC_CHANNELS[i], ENC_CHANNELS[i + 1]
        key, kw, kb = jax.random.split(key, 3)
        bound = 1.0 / float(np.sqrt(cin * 3 * 3))
        w = jax.random.uniform(kw, (cout, cin, 3, 3), jnp.float32, -bound, bound)
        b = jax.random.uniform(kb, (cout,), jnp.float32, -bound, bound)
        params["enc"].append((w, b))
    for i in range(4):
        cin, cout = DEC_CHANNELS[i], DEC_CHANNELS[i + 1]
        key, kw, kb = jax.random.split(key, 3)
        bound = 1.0 / float(np.sqrt(cout * 4 * 4))
        w = jax.random.uniform(kw, (cin, cout, 4, 4), jnp.float32, -bound, bound)
        b = jax.random.uniform(kb, (cout,), jnp.float32, -bound, bound)
        params["dec"].append((w, b))
    return params


# ----------------------------------------------------------------------------
# One-time packing: conv weights -> per-tap banded matmul operands (lane padded)
# ----------------------------------------------------------------------------
def _enc_tap_mats(w, W, k_in):
    """Conv2d(3x3, pad=1) as 3 per-vertical-tap banded matrices (3, k_in, 256).

    Tap s acts on the activation slab holding input row h+s-1.
    Rows: wi*Cin + ci   (zero for padded input lanes)
    Cols: (wo%2)*128 + (wo//2)*Cout + co   -> [even-w half | odd-w half], each padded
          to 128 lanes, so the 2x2 maxpool's w-reduction is a max of aligned halves.
    """
    w = np.asarray(w, np.float32)                      # (Cout, Cin, 3, 3)
    cout, cin = w.shape[0], w.shape[1]
    T = np.zeros((3, k_in, 2 * LANE), np.float32)
    for s in range(3):
        for wo in range(W):
            col0 = (wo % 2) * LANE + (wo // 2) * cout
            for dj in range(3):
                wi = wo + dj - 1
                if 0 <= wi < W:
                    row0 = wi * cin
                    T[s, row0:row0 + cin, col0:col0 + cout] = w[:, :, s, dj].T
    return T


def _dec_tap_mats(w, W, k_in):
    """ConvTranspose2d(4x4, s=2, p=1), phase-decomposed, as 3 per-tap matrices.

    out[2i+pi, 2j+pj, co] = b[co] + sum_{a,bb,ci} x[i+pi+a-1, j+pj+bb-1, ci]
                                     * w[ci, co, 3-pi-2a, 3-pj-2bb]
    Tap s = pi + a acts on the slab holding input row i+s-1.
    Rows: wi*Cin + ci
    Cols: pi*128 + wo*Cout + co  -> [even-output-row phase | odd phase], each padded
          to 128 lanes (wo in [0, 2W) is the output column).
    """
    w = np.asarray(w, np.float32)                      # (Cin, Cout, 4, 4)
    cin, cout = w.shape[0], w.shape[1]
    T = np.zeros((3, k_in, 2 * LANE), np.float32)
    for pi in range(2):
        for a in range(2):
            s = pi + a
            kh = 3 - pi - 2 * a
            for wo in range(2 * W):
                pj, j = wo % 2, wo // 2
                col0 = pi * LANE + wo * cout
                for bb in range(2):
                    wi = j + pj + bb - 1
                    if 0 <= wi < W:
                        kw = 3 - pj - 2 * bb
                        row0 = wi * cin
                        T[s, row0:row0 + cin, col0:col0 + cout] = w[:, :, kh, kw]
    return T


def _enc_bias_row(b, W):
    b = np.asarray(b, np.float32)
    cout = b.shape[0]
    half = np.zeros((LANE,), np.float32)
    half[: (W // 2) * cout] = np.tile(b, W // 2)
    return np.concatenate([half, half])[None, :]       # (1, 256)


def _dec_bias_row(b, W):
    b = np.asarray(b, np.float32)
    cout = b.shape[0]
    row = np.zeros((LANE,), np.float32)
    row[: 2 * W * cout] = np.tile(b, 2 * W)
    return row[None, :]                                # (1, 128)


def pack_params(params):
    """Precompute the 16 kernel operands (done once, outside the forward pass)."""
    packed = []
    for s, (w, b) in enumerate(params["enc"]):
        packed.append(jnp.asarray(_enc_tap_mats(w, ENC_HW[s], ENC_KIN[s]),
                                  dtype=jnp.bfloat16))
        packed.append(jnp.asarray(_enc_bias_row(b, ENC_HW[s])))
    for s, (w, b) in enumerate(params["dec"]):
        packed.append(jnp.asarray(_dec_tap_mats(w, DEC_HW[s], DEC_KIN[s]),
                                  dtype=jnp.bfloat16))
        packed.append(jnp.asarray(_dec_bias_row(b, DEC_HW[s])))
    return packed


# ----------------------------------------------------------------------------
# The single fused Pallas kernel: whole AE forward for a block of B images
# ----------------------------------------------------------------------------
def _shift_down(x, d):
    """Row m of result = row m-d of x (top d rows zero)."""
    pad = jnp.zeros((d, x.shape[1]), x.dtype)
    return jnp.concatenate([pad, x[:-d]], axis=0)


def _shift_up(x, d):
    """Row m of result = row m+d of x (bottom d rows zero)."""
    pad = jnp.zeros((d, x.shape[1]), x.dtype)
    return jnp.concatenate([x[d:], pad], axis=0)


def _ae_kernel(x_ref, *refs):
    o_ref = refs[-1]
    p = refs[:-1]                                   # 8 x (tap-weights, bias-row)
    R = x_ref.shape[0]                              # B * 16 slab rows
    # row position inside its image (0..15); drives all boundary / validity masks
    pos16 = jax.lax.broadcasted_iota(jnp.int32, (R, 1), 0) % IMG_HW

    def conv3(act, step, t_ref):
        """3x3 (vertical) conv as up to 3 accumulating MXU matmuls.

        `act` is a (R, K) slab holding one valid image row every `step` slab rows
        (dilated-rows layout); taps are +-`step` row shifts, masked at image edges.
        bf16 operands, f32 accumulation (same numerics as the XLA reference).
        """
        ab = act.astype(jnp.bfloat16)
        z = jnp.dot(ab, t_ref[1], preferred_element_type=jnp.float32)
        if step < IMG_HW:                           # h-1 / h+1 taps exist only if H > 1
            zero = jnp.zeros_like(ab)
            t0 = jnp.where(pos16 >= step, _shift_down(ab, step), zero)
            t2 = jnp.where(pos16 < IMG_HW - step, _shift_up(ab, step), zero)
            z = z + jnp.dot(t0, t_ref[0], preferred_element_type=jnp.float32)
            z = z + jnp.dot(t2, t_ref[2], preferred_element_type=jnp.float32)
        return z                                    # (R, 256) f32

    a = x_ref[...]                                  # (R, 48) bf16, all rows valid

    # -------- encoder: 4 x [conv3x3 + bias + ReLU + maxpool2x2], fully fused --------
    for i in range(4):
        step = 1 << i                               # input row stride at this stage
        z = conv3(a, step, p[2 * i])                # cols: [even-w half | odd-w half]
        y = jnp.maximum(z + p[2 * i + 1][...], 0.0)          # bias + ReLU (f32)
        yw = jnp.maximum(y[:, :LANE], y[:, LANE:])            # pool over w (aligned)
        a = jnp.maximum(yw, _shift_up(yw, step))               # pool over h (no compaction)

    # -------- decoder: 4 x [convtranspose4x4 s2 p1 + bias + ReLU], phase-decomposed --
    for i in range(4):
        s_in = IMG_HW >> i                          # input row stride (16, 8, 4, 2)
        s_out = s_in // 2                           # output row stride
        z = conv3(a, s_in, p[8 + 2 * i])            # cols: [even-row phase | odd phase]
        valid = (pos16 % s_in) == 0                 # rows holding a real input row
        ze = jnp.where(valid, z[:, :LANE], 0.0)
        zo = jnp.where(valid, z[:, LANE:], 0.0)
        zc = ze + _shift_down(zo, s_out)            # scatter odd-phase rows into place
        a = jnp.maximum(zc + p[8 + 2 * i + 1][...], 0.0)       # bias + ReLU (f32)

    o_ref[...] = a                                  # (R, 128) f32, rows fully dense


# ----------------------------------------------------------------------------
# Wrapper: layout plumbing + pallas_call
# ----------------------------------------------------------------------------
def _const_map(ndim):
    return lambda n: (0,) * ndim


def _block_images(n):
    """Images per grid step: big enough to fill the MXU M dimension, but keep >=2
    grid steps whenever n >= 2 so v7x's two TensorCores both get work."""
    b = min(16, n)
    if n >= 2:
        b = min(b, max(1, n // 2))
    return max(1, b)


@jax.jit
def ae_forward(packed, x_nchw):
    """AE.forward: (N, 3, 16, 16) -> (N, 3, 16, 16)."""
    N, C, H, W = x_nchw.shape
    B = _block_images(N)
    n_steps = pl.cdiv(N, B)
    Np = n_steps * B
    x = x_nchw.astype(jnp.float32)
    if Np != N:                                     # pad batch to a multiple of B
        x = jnp.concatenate([x, jnp.zeros((Np - N, C, H, W), jnp.float32)], axis=0)

    # single boundary layout change: NCHW -> flat [(n, h), w*C + c] bf16 slab
    x2d = jnp.transpose(x, (0, 2, 3, 1)).reshape(Np * H, W * C).astype(jnp.bfloat16)

    out2d = pl.pallas_call(
        _ae_kernel,
        grid=(n_steps,),
        in_specs=[pl.BlockSpec((B * H, W * C), lambda n: (n, 0))]
        + [pl.BlockSpec(q.shape, _const_map(q.ndim)) for q in packed],
        out_specs=pl.BlockSpec((B * H, LANE), lambda n: (n, 0)),
        out_shape=jax.ShapeDtypeStruct((Np * H, LANE), jnp.float32),
        compiler_params=pltpu.CompilerParams(
            dimension_semantics=("parallel",),
        ),
    )(x2d, *packed)

    out = out2d[:, : W * C].reshape(Np, H, W, C)[:N]
    return jnp.transpose(out, (0, 3, 1, 2))


# ----------------------------------------------------------------------------
# Pure-XLA reference with matching bf16-operand / f32-accumulate numerics
# ----------------------------------------------------------------------------
def _bf16_round(v):
    return v.astype(jnp.bfloat16).astype(jnp.float32)


def ae_reference(params, x_nchw):
    x = x_nchw.astype(jnp.float32)
    dn = ("NCHW", "OIHW", "NCHW")
    for w, b in params["enc"]:
        y = jax.lax.conv_general_dilated(
            _bf16_round(x), _bf16_round(w), (1, 1), ((1, 1), (1, 1)),
            dimension_numbers=dn, precision=jax.lax.Precision.HIGHEST)
        y = jnp.maximum(y + b[None, :, None, None], 0.0)
        x = jax.lax.reduce_window(y, -jnp.inf, jax.lax.max,
                                  (1, 1, 2, 2), (1, 1, 2, 2), "VALID")
    for w, b in params["dec"]:
        # ConvTranspose2d(k=4, s=2, p=1) == zero-dilated conv with flipped kernel, pad 2
        w_conv = jnp.transpose(w[:, :, ::-1, ::-1], (1, 0, 2, 3))
        y = jax.lax.conv_general_dilated(
            _bf16_round(x), _bf16_round(w_conv), (1, 1), ((2, 2), (2, 2)),
            lhs_dilation=(2, 2), dimension_numbers=dn,
            precision=jax.lax.Precision.HIGHEST)
        x = jnp.maximum(y + b[None, :, None, None], 0.0)
    return x


if __name__ == "__main__":
    key = jax.random.PRNGKey(0)
    kp, kx = jax.random.split(key)
    params = init_params(kp)
    packed = pack_params(params)            # one-time weight preprocessing

    # batch=4 so the multi-image-per-step path is exercised (B=2, 2 parallel steps)
    x = jax.random.normal(kx, (4, 3, IMG_HW, IMG_HW), dtype=jnp.float32)

    out = jax.block_until_ready(ae_forward(packed, x))

    assert out.shape == (4, 3, IMG_HW, IMG_HW), out.shape
    assert bool(jnp.all(jnp.isfinite(out)))
    assert bool(jnp.all(out >= 0.0))        # network ends in ReLU

    ref = jax.block_until_ready(ae_reference(params, x))
    np.testing.assert_allclose(np.asarray(out), np.asarray(ref), rtol=2e-3, atol=2e-3)

    print("KERNEL_OK")
</pallas_src>

<mosaic_0001>
module attributes {stable_mosaic.version = 11 : i64} {
  func.func @_ae_kernel(%arg0: i32, %arg1: memref<32x48xbf16, #tpu.memory_space<vmem>>, %arg2: memref<3x48x256xbf16, #tpu.memory_space<vmem>>, %arg3: memref<1x256xf32, #tpu.memory_space<vmem>>, %arg4: memref<3x128x256xbf16, #tpu.memory_space<vmem>>, %arg5: memref<1x256xf32, #tpu.memory_space<vmem>>, %arg6: memref<3x128x256xbf16, #tpu.memory_space<vmem>>, %arg7: memref<1x256xf32, #tpu.memory_space<vmem>>, %arg8: memref<3x128x256xbf16, #tpu.memory_space<vmem>>, %arg9: memref<1x256xf32, #tpu.memory_space<vmem>>, %arg10: memref<3x128x256xbf16, #tpu.memory_space<vmem>>, %arg11: memref<1x128xf32, #tpu.memory_space<vmem>>, %arg12: memref<3x128x256xbf16, #tpu.memory_space<vmem>>, %arg13: memref<1x128xf32, #tpu.memory_space<vmem>>, %arg14: memref<3x128x256xbf16, #tpu.memory_space<vmem>>, %arg15: memref<1x128xf32, #tpu.memory_space<vmem>>, %arg16: memref<3x128x256xbf16, #tpu.memory_space<vmem>>, %arg17: memref<1x128xf32, #tpu.memory_space<vmem>>, %arg18: memref<32x128xf32, #tpu.memory_space<vmem>>) attributes {dimension_semantics = [#tpu.dimension_semantics<parallel>], iteration_bounds = array<i64: 2>, scalar_prefetch = 0 : i64, scratch_operands = 0 : i64, tpu.core_type = #tpu.core_type<tc>, window_params = [{transform_indices = @transform_0, window_bounds = array<i64: 32, 48>}, {pipeline_mode = #tpu.pipeline_mode<synchronous>, transform_indices = @transform_1, window_bounds = array<i64: 3, 48, 256>}, {pipeline_mode = #tpu.pipeline_mode<synchronous>, transform_indices = @transform_2, window_bounds = array<i64: 1, 256>}, {pipeline_mode = #tpu.pipeline_mode<synchronous>, transform_indices = @transform_3, window_bounds = array<i64: 3, 128, 256>}, {pipeline_mode = #tpu.pipeline_mode<synchronous>, transform_indices = @transform_4, window_bounds = array<i64: 1, 256>}, {pipeline_mode = #tpu.pipeline_mode<synchronous>, transform_indices = @transform_5, window_bounds = array<i64: 3, 128, 256>}, {pipeline_mode = #tpu.pipeline_mode<synchronous>, transform_indices = @transform_6, window_bounds = array<i64: 1, 256>}, {pipeline_mode = #tpu.pipeline_mode<synchronous>, transform_indices = @transform_7, window_bounds = array<i64: 3, 128, 256>}, {pipeline_mode = #tpu.pipeline_mode<synchronous>, transform_indices = @transform_8, window_bounds = array<i64: 1, 256>}, {pipeline_mode = #tpu.pipeline_mode<synchronous>, transform_indices = @transform_9, window_bounds = array<i64: 3, 128, 256>}, {pipeline_mode = #tpu.pipeline_mode<synchronous>, transform_indices = @transform_10, window_bounds = array<i64: 1, 128>}, {pipeline_mode = #tpu.pipeline_mode<synchronous>, transform_indices = @transform_11, window_bounds = array<i64: 3, 128, 256>}, {pipeline_mode = #tpu.pipeline_mode<synchronous>, transform_indices = @transform_12, window_bounds = array<i64: 1, 128>}, {pipeline_mode = #tpu.pipeline_mode<synchronous>, transform_indices = @transform_13, window_bounds = array<i64: 3, 128, 256>}, {pipeline_mode = #tpu.pipeline_mode<synchronous>, transform_indices = @transform_14, window_bounds = array<i64: 1, 128>}, {pipeline_mode = #tpu.pipeline_mode<synchronous>, transform_indices = @transform_15, window_bounds = array<i64: 3, 128, 256>}, {pipeline_mode = #tpu.pipeline_mode<synchronous>, transform_indices = @transform_16, window_bounds = array<i64: 1, 128>}, {transform_indices = @transform_17, window_bounds = array<i64: 32, 128>}]} {
    %0 = tpu.iota {dimensions = array<i32: 0>} : vector<32x1xi32>
    %c16_i32 = arith.constant 16 : i32
    %c0_i32 = arith.constant 0 : i32
    %1 = arith.cmpi eq, %c16_i32, %c0_i32 : i32
    %c1_i32 = arith.constant 1 : i32
    %2 = arith.select %1, %c1_i32, %c16_i32 : i32
    %3 = vector.broadcast %2 : i32 to vector<32x1xi32>
    %4 = arith.remsi %0, %3 : vector<32x1xi32>
    %c0_i32_0 = arith.constant 0 : i32
    %5 = vector.broadcast %c0_i32_0 : i32 to vector<32x1xi32>
    %6 = arith.cmpi ne, %4, %5 : vector<32x1xi32>
    %c0_i32_1 = arith.constant 0 : i32
    %7 = vector.broadcast %c0_i32_1 : i32 to vector<32x1xi32>
    %8 = arith.cmpi slt, %4, %7 : vector<32x1xi32>
    %c0_i32_2 = arith.constant 0 : i32
    %9 = arith.cmpi slt, %2, %c0_i32_2 : i32
    %10 = vector.broadcast %9 : i1 to vector<32x1xi1>
    %11 = vector.broadcast %10 : vector<32x1xi1> to vector<32x1xi1>
    %12 = arith.xori %8, %11 : vector<32x1xi1>
    %13 = arith.andi %12, %6 : vector<32x1xi1>
    %14 = vector.broadcast %2 : i32 to vector<32x1xi32>
    %15 = arith.addi %4, %14 : vector<32x1xi32>
    %16 = arith.select %13, %15, %4 : vector<32x1xi1>, vector<32x1xi32>
    %c0 = arith.constant 0 : index
    %c0_3 = arith.constant 0 : index
    %17 = vector.load %arg1[%c0, %c0_3] : memref<32x48xbf16, #tpu.memory_space<vmem>>, vector<32x48xbf16>
    %c1 = arith.constant 1 : index
    %c0_4 = arith.constant 0 : index
    %c0_5 = arith.constant 0 : index
    %18 = vector.load %arg2[%c1, %c0_4, %c0_5] : memref<3x48x256xbf16, #tpu.memory_space<vmem>>, vector<1x48x256xbf16>
    %19 = vector.shape_cast %18 : vector<1x48x256xbf16> to vector<48x256xbf16>
    %cst = arith.constant dense<0.000000e+00> : vector<32x256xf32>
    %20 = tpu.matmul %17, %19, %cst {dimension_numbers = #tpu.dot_dimension_numbers<[1], [0], [0], [1], [0, 0, 1, 1], [], []>} : vector<32x48xbf16>, vector<48x256xbf16>, vector<32x256xf32> -> vector<32x256xf32>
    %cst_6 = arith.constant 0.000000e+00 : bf16
    %21 = vector.broadcast %cst_6 : bf16 to vector<32x48xbf16>
    %c1_i32_7 = arith.constant 1 : i32
    %22 = vector.broadcast %c1_i32_7 : i32 to vector<32x1xi32>
    %23 = arith.cmpi sge, %16, %22 : vector<32x1xi32>
    %cst_8 = arith.constant 0.000000e+00 : bf16
    %24 = vector.broadcast %cst_8 : bf16 to vector<1x48xbf16>
    %25 = vector.extract_strided_slice %17 {offsets = [0, 0], sizes = [31, 48], strides = [1, 1]} : vector<32x48xbf16> to vector<31x48xbf16>
    %26 = tpu.concatenate %24, %25 in 0 : vector<1x48xbf16>, vector<31x48xbf16> -> vector<32x48xbf16>
    %27 = vector.shape_cast %23 : vector<32x1xi1> to vector<32x1xi1>
    %28 = vector.broadcast %27 : vector<32x1xi1> to vector<32x48xi1>
    %29 = arith.select %28, %26, %21 : vector<32x48xi1>, vector<32x48xbf16>
    %c15_i32 = arith.constant 15 : i32
    %30 = vector.broadcast %c15_i32 : i32 to vector<32x1xi32>
    %31 = arith.cmpi slt, %16, %30 : vector<32x1xi32>
    %cst_9 = arith.constant 0.000000e+00 : bf16
    %32 = vector.broadcast %cst_9 : bf16 to vector<1x48xbf16>
    %33 = vector.extract_strided_slice %17 {offsets = [1, 0], sizes = [31, 48], strides = [1, 1]} : vector<32x48xbf16> to vector<31x48xbf16>
    %34 = tpu.concatenate %33, %32 in 0 : vector<31x48xbf16>, vector<1x48xbf16> -> vector<32x48xbf16>
    %35 = vector.shape_cast %31 : vector<32x1xi1> to vector<32x1xi1>
    %36 = vector.broadcast %35 : vector<32x1xi1> to vector<32x48xi1>
    %37 = arith.select %36, %34, %21 : vector<32x48xi1>, vector<32x48xbf16>
    %c0_10 = arith.constant 0 : index
    %c0_11 = arith.constant 0 : index
    %c0_12 = arith.constant 0 : index
    %38 = vector.load %arg2[%c0_10, %c0_11, %c0_12] : memref<3x48x256xbf16, #tpu.memory_space<vmem>>, vector<1x48x256xbf16>
    %39 = vector.shape_cast %38 : vector<1x48x256xbf16> to vector<48x256xbf16>
    %cst_13 = arith.constant dense<0.000000e+00> : vector<32x256xf32>
    %40 = tpu.matmul %29, %39, %cst_13 {dimension_numbers = #tpu.dot_dimension_numbers<[1], [0], [0], [1], [0, 0, 1, 1], [], []>} : vector<32x48xbf16>, vector<48x256xbf16>, vector<32x256xf32> -> vector<32x256xf32>
    %41 = arith.addf %20, %40 : vector<32x256xf32>
    %c2 = arith.constant 2 : index
    %c0_14 = arith.constant 0 : index
    %c0_15 = arith.constant 0 : index
    %42 = vector.load %arg2[%c2, %c0_14, %c0_15] : memref<3x48x256xbf16, #tpu.memory_space<vmem>>, vector<1x48x256xbf16>
    %43 = vector.shape_cast %42 : vector<1x48x256xbf16> to vector<48x256xbf16>
    %cst_16 = arith.constant dense<0.000000e+00> : vector<32x256xf32>
    %44 = tpu.matmul %37, %43, %cst_16 {dimension_numbers = #tpu.dot_dimension_numbers<[1], [0], [0], [1], [0, 0, 1, 1], [], []>} : vector<32x48xbf16>, vector<48x256xbf16>, vector<32x256xf32> -> vector<32x256xf32>
    %45 = arith.addf %41, %44 : vector<32x256xf32>
    %c0_17 = arith.constant 0 : index
    %c0_18 = arith.constant 0 : index
    %46 = vector.load %arg3[%c0_17, %c0_18] : memref<1x256xf32, #tpu.memory_space<vmem>>, vector<1x256xf32>
    %47 = vector.broadcast %46 : vector<1x256xf32> to vector<32x256xf32>
    %48 = arith.addf %45, %47 : vector<32x256xf32>
    %cst_19 = arith.constant 0.000000e+00 : f32
    %49 = vector.broadcast %cst_19 : f32 to vector<32x256xf32>
    %50 = arith.maximumf %48, %49 : vector<32x256xf32>
    %51 = vector.extract_strided_slice %50 {offsets = [0, 0], sizes = [32, 128], strides = [1, 1]} : vector<32x256xf32> to vector<32x128xf32>
    %52 = vector.extract_strided_slice %50 {offsets = [0, 128], sizes = [32, 128], strides = [1, 1]} : vector<32x256xf32> to vector<32x128xf32>
    %53 = arith.maximumf %51, %52 : vector<32x128xf32>
    %cst_20 = arith.constant 0.000000e+00 : f32
    %54 = vector.broadcast %cst_20 : f32 to vector<1x128xf32>
    %55 = vector.extract_strided_slice %53 {offsets = [1, 0], sizes = [31, 128], strides = [1, 1]} : vector<32x128xf32> to vector<31x128xf32>
    %56 = tpu.concatenate %55, %54 in 0 : vector<31x128xf32>, vector<1x128xf32> -> vector<32x128xf32>
    %57 = arith.maximumf %53, %56 : vector<32x128xf32>
    %58 = arith.truncf %57 : vector<32x128xf32> to vector<32x128xbf16>
    %c1_21 = arith.constant 1 : index
    %c0_22 = arith.constant 0 : index
    %c0_23 = arith.constant 0 : index
    %59 = vector.load %arg4[%c1_21, %c0_22, %c0_23] : memref<3x128x256xbf16, #tpu.memory_space<vmem>>, vector<1x128x256xbf16>
    %60 = vector.shape_cast %59 : vector<1x128x256xbf16> to vector<128x256xbf16>
    %cst_24 = arith.constant dense<0.000000e+00> : vector<32x256xf32>
    %61 = tpu.matmul %58, %60, %cst_24 {dimension_numbers = #tpu.dot_dimension_numbers<[1], [0], [0], [1], [0, 0, 1, 1], [], []>} : vector<32x128xbf16>, vector<128x256xbf16>, vector<32x256xf32> -> vector<32x256xf32>
    %cst_25 = arith.constant 0.000000e+00 : bf16
    %62 = vector.broadcast %cst_25 : bf16 to vector<32x128xbf16>
    %c2_i32 = arith.constant 2 : i32
    %63 = vector.broadcast %c2_i32 : i32 to vector<32x1xi32>
    %64 = arith.cmpi sge, %16, %63 : vector<32x1xi32>
    %cst_26 = arith.constant 0.000000e+00 : bf16
    %65 = vector.broadcast %cst_26 : bf16 to vector<2x128xbf16>
    %66 = vector.extract_strided_slice %58 {offsets = [0, 0], sizes = [30, 128], strides = [1, 1]} : vector<32x128xbf16> to vector<30x128xbf16>
    %67 = tpu.concatenate %65, %66 in 0 : vector<2x128xbf16>, vector<30x128xbf16> -> vector<32x128xbf16>
    %68 = vector.shape_cast %64 : vector<32x1xi1> to vector<32x1xi1>
    %69 = vector.broadcast %68 : vector<32x1xi1> to vector<32x128xi1>
    %70 = arith.select %69, %67, %62 : vector<32x128xi1>, vector<32x128xbf16>
    %c14_i32 = arith.constant 14 : i32
    %71 = vector.broadcast %c14_i32 : i32 to vector<32x1xi32>
    %72 = arith.cmpi slt, %16, %71 : vector<32x1xi32>
    %cst_27 = arith.constant 0.000000e+00 : bf16
    %73 = vector.broadcast %cst_27 : bf16 to vector<2x128xbf16>
    %74 = vector.extract_strided_slice %58 {offsets = [2, 0], sizes = [30, 128], strides = [1, 1]} : vector<32x128xbf16> to vector<30x128xbf16>
    %75 = tpu.concatenate %74, %73 in 0 : vector<30x128xbf16>, vector<2x128xbf16> -> vector<32x128xbf16>
    %76 = vector.shape_cast %72 : vector<32x1xi1> to vector<32x1xi1>
    %77 = vector.broadcast %76 : vector<32x1xi1> to vector<32x128xi1>
    %78 = arith.select %77, %75, %62 : vector<32x128xi1>, vector<32x128xbf16>
    %c0_28 = arith.constant 0 : index
    %c0_29 = arith.constant 0 : index
    %c0_30 = arith.constant 0 : index
    %79 = vector.load %arg4[%c0_28, %c0_29, %c0_30] : memref<3x128x256xbf16, #tpu.memory_space<vmem>>, vector<1x128x256xbf16>
    %80 = vector.shape_cast %79 : vector<1x128x256xbf16> to vector<128x256xbf16>
    %cst_31 = arith.constant dense<0.000000e+00> : vector<32x256xf32>
    %81 = tpu.matmul %70, %80, %cst_31 {dimension_numbers = #tpu.dot_dimension_numbers<[1], [0], [0], [1], [0, 0, 1, 1], [], []>} : vector<32x128xbf16>, vector<128x256xbf16>, vector<32x256xf32> -> vector<32x256xf32>
    %82 = arith.addf %61, %81 : vector<32x256xf32>
    %c2_32 = arith.constant 2 : index
    %c0_33 = arith.constant 0 : index
    %c0_34 = arith.constant 0 : index
    %83 = vector.load %arg4[%c2_32, %c0_33, %c0_34] : memref<3x128x256xbf16, #tpu.memory_space<vmem>>, vector<1x128x256xbf16>
    %84 = vector.shape_cast %83 : vector<1x128x256xbf16> to vector<128x256xbf16>
    %cst_35 = arith.constant dense<0.000000e+00> : vector<32x256xf32>
    %85 = tpu.matmul %78, %84, %cst_35 {dimension_numbers = #tpu.dot_dimension_numbers<[1], [0], [0], [1], [0, 0, 1, 1], [], []>} : vector<32x128xbf16>, vector<128x256xbf16>, vector<32x256xf32> -> vector<32x256xf32>
    %86 = arith.addf %82, %85 : vector<32x256xf32>
    %c0_36 = arith.constant 0 : index
    %c0_37 = arith.constant 0 : index
    %87 = vector.load %arg5[%c0_36, %c0_37] : memref<1x256xf32, #tpu.memory_space<vmem>>, vector<1x256xf32>
    %88 = vector.broadcast %87 : vector<1x256xf32> to vector<32x256xf32>
    %89 = arith.addf %86, %88 : vector<32x256xf32>
    %cst_38 = arith.constant 0.000000e+00 : f32
    %90 = vector.broadcast %cst_38 : f32 to vector<32x256xf32>
    %91 = arith.maximumf %89, %90 : vector<32x256xf32>
    %92 = vector.extract_strided_slice %91 {offsets = [0, 0], sizes = [32, 128], strides = [1, 1]} : vector<32x256xf32> to vector<32x128xf32>
    %93 = vector.extract_strided_slice %91 {offsets = [0, 128], sizes = [32, 128], strides = [1, 1]} : vector<32x256xf32> to vector<32x128xf32>
    %94 = arith.maximumf %92, %93 : vector<32x128xf32>
    %cst_39 = arith.constant 0.000000e+00 : f32
    %95 = vector.broadcast %cst_39 : f32 to vector<2x128xf32>
    %96 = vector.extract_strided_slice %94 {offsets = [2, 0], sizes = [30, 128], strides = [1, 1]} : vector<32x128xf32> to vector<30x128xf32>
    %97 = tpu.concatenate %96, %95 in 0 : vector<30x128xf32>, vector<2x128xf32> -> vector<32x128xf32>
    %98 = arith.maximumf %94, %97 : vector<32x128xf32>
    %99 = arith.truncf %98 : vector<32x128xf32> to vector<32x128xbf16>
    %c1_40 = arith.constant 1 : index
    %c0_41 = arith.constant 0 : index
    %c0_42 = arith.constant 0 : index
    %100 = vector.load %arg6[%c1_40, %c0_41, %c0_42] : memref<3x128x256xbf16, #tpu.memory_space<vmem>>, vector<1x128x256xbf16>
    %101 = vector.shape_cast %100 : vector<1x128x256xbf16> to vector<128x256xbf16>
    %cst_43 = arith.constant dense<0.000000e+00> : vector<32x256xf32>
    %102 = tpu.matmul %99, %101, %cst_43 {dimension_numbers = #tpu.dot_dimension_numbers<[1], [0], [0], [1], [0, 0, 1, 1], [], []>} : vector<32x128xbf16>, vector<128x256xbf16>, vector<32x256xf32> -> vector<32x256xf32>
    %cst_44 = arith.constant 0.000000e+00 : bf16
    %103 = vector.broadcast %cst_44 : bf16 to vector<32x128xbf16>
    %c4_i32 = arith.constant 4 : i32
    %104 = vector.broadcast %c4_i32 : i32 to vector<32x1xi32>
    %105 = arith.cmpi sge, %16, %104 : vector<32x1xi32>
    %cst_45 = arith.constant 0.000000e+00 : bf16
    %106 = vector.broadcast %cst_45 : bf16 to vector<4x128xbf16>
    %107 = vector.extract_strided_slice %99 {offsets = [0, 0], sizes = [28, 128], strides = [1, 1]} : vector<32x128xbf16> to vector<28x128xbf16>
    %108 = tpu.concatenate %106, %107 in 0 : vector<4x128xbf16>, vector<28x128xbf16> -> vector<32x128xbf16>
    %109 = vector.shape_cast %105 : vector<32x1xi1> to vector<32x1xi1>
    %110 = vector.broadcast %109 : vector<32x1xi1> to vector<32x128xi1>
    %111 = arith.select %110, %108, %103 : vector<32x128xi1>, vector<32x128xbf16>
    %c12_i32 = arith.constant 12 : i32
    %112 = vector.broadcast %c12_i32 : i32 to vector<32x1xi32>
    %113 = arith.cmpi slt, %16, %112 : vector<32x1xi32>
    %cst_46 = arith.constant 0.000000e+00 : bf16
    %114 = vector.broadcast %cst_46 : bf16 to vector<4x128xbf16>
    %115 = vector.extract_strided_slice %99 {offsets = [4, 0], sizes = [28, 128], strides = [1, 1]} : vector<32x128xbf16> to vector<28x128xbf16>
    %116 = tpu.concatenate %115, %114 in 0 : vector<28x128xbf16>, vector<4x128xbf16> -> vector<32x128xbf16>
    %117 = vector.shape_cast %113 : vector<32x1xi1> to vector<32x1xi1>
    %118 = vector.broadcast %117 : vector<32x1xi1> to vector<32x128xi1>
    %119 = arith.select %118, %116, %103 : vector<32x128xi1>, vector<32x128xbf16>
    %c0_47 = arith.constant 0 : index
    %c0_48 = arith.constant 0 : index
    %c0_49 = arith.constant 0 : index
    %120 = vector.load %arg6[%c0_47, %c0_48, %c0_49] : memref<3x128x256xbf16, #tpu.memory_space<vmem>>, vector<1x128x256xbf16>
    %121 = vector.shape_cast %120 : vector<1x128x256xbf16> to vector<128x256xbf16>
    %cst_50 = arith.constant dense<0.000000e+00> : vector<32x256xf32>
    %122 = tpu.matmul %111, %121, %cst_50 {dimension_numbers = #tpu.dot_dimension_numbers<[1], [0], [0], [1], [0, 0, 1, 1], [], []>} : vector<32x128xbf16>, vector<128x256xbf16>, vector<32x256xf32> -> vector<32x256xf32>
    %123 = arith.addf %102, %122 : vector<32x256xf32>
    %c2_51 = arith.constant 2 : index
    %c0_52 = arith.constant 0 : index
    %c0_53 = arith.constant 0 : index
    %124 = vector.load %arg6[%c2_51, %c0_52, %c0_53] : memref<3x128x256xbf16, #tpu.memory_space<vmem>>, vector<1x128x256xbf16>
    %125 = vector.shape_cast %124 : vector<1x128x256xbf16> to vector<128x256xbf16>
    %cst_54 = arith.constant dense<0.000000e+00> : vector<32x256xf32>
    %126 = tpu.matmul %119, %125, %cst_54 {dimension_numbers = #tpu.dot_dimension_numbers<[1], [0], [0], [1], [0, 0, 1, 1], [], []>} : vector<32x128xbf16>, vector<128x256xbf16>, vector<32x256xf32> -> vector<32x256xf32>
    %127 = arith.addf %123, %126 : vector<32x256xf32>
    %c0_55 = arith.constant 0 : index
    %c0_56 = arith.constant 0 : index
    %128 = vector.load %arg7[%c0_55, %c0_56] : memref<1x256xf32, #tpu.memory_space<vmem>>, vector<1x256xf32>
    %129 = vector.broadcast %128 : vector<1x256xf32> to vector<32x256xf32>
    %130 = arith.addf %127, %129 : vector<32x256xf32>
    %cst_57 = arith.constant 0.000000e+00 : f32
    %131 = vector.broadcast %cst_57 : f32 to vector<32x256xf32>
    %132 = arith.maximumf %130, %131 : vector<32x256xf32>
    %133 = vector.extract_strided_slice %132 {offsets = [0, 0], sizes = [32, 128], strides = [1, 1]} : vector<32x256xf32> to vector<32x128xf32>
    %134 = vector.extract_strided_slice %132 {offsets = [0, 128], sizes = [32, 128], strides = [1, 1]} : vector<32x256xf32> to vector<32x128xf32>
    %135 = arith.maximumf %133, %134 : vector<32x128xf32>
    %cst_58 = arith.constant 0.000000e+00 : f32
    %136 = vector.broadcast %cst_58 : f32 to vector<4x128xf32>
    %137 = vector.extract_strided_slice %135 {offsets = [4, 0], sizes = [28, 128], strides = [1, 1]} : vector<32x128xf32> to vector<28x128xf32>
    %138 = tpu.concatenate %137, %136 in 0 : vector<28x128xf32>, vector<4x128xf32> -> vector<32x128xf32>
    %139 = arith.maximumf %135, %138 : vector<32x128xf32>
    %140 = arith.truncf %139 : vector<32x128xf32> to vector<32x128xbf16>
    %c1_59 = arith.constant 1 : index
    %c0_60 = arith.constant 0 : index
    %c0_61 = arith.constant 0 : index
    %141 = vector.load %arg8[%c1_59, %c0_60, %c0_61] : memref<3x128x256xbf16, #tpu.memory_space<vmem>>, vector<1x128x256xbf16>
    %142 = vector.shape_cast %141 : vector<1x128x256xbf16> to vector<128x256xbf16>
    %cst_62 = arith.constant dense<0.000000e+00> : vector<32x256xf32>
    %143 = tpu.matmul %140, %142, %cst_62 {dimension_numbers = #tpu.dot_dimension_numbers<[1], [0], [0], [1], [0, 0, 1, 1], [], []>} : vector<32x128xbf16>, vector<128x256xbf16>, vector<32x256xf32> -> vector<32x256xf32>
    %cst_63 = arith.constant 0.000000e+00 : bf16
    %144 = vector.broadcast %cst_63 : bf16 to vector<32x128xbf16>
    %c8_i32 = arith.constant 8 : i32
    %145 = vector.broadcast %c8_i32 : i32 to vector<32x1xi32>
    %146 = arith.cmpi sge, %16, %145 : vector<32x1xi32>
    %cst_64 = arith.constant 0.000000e+00 : bf16
    %147 = vector.broadcast %cst_64 : bf16 to vector<8x128xbf16>
    %148 = vector.extract_strided_slice %140 {offsets = [0, 0], sizes = [24, 128], strides = [1, 1]} : vector<32x128xbf16> to vector<24x128xbf16>
    %149 = tpu.concatenate %147, %148 in 0 : vector<8x128xbf16>, vector<24x128xbf16> -> vector<32x128xbf16>
    %150 = vector.shape_cast %146 : vector<32x1xi1> to vector<32x1xi1>
    %151 = vector.broadcast %150 : vector<32x1xi1> to vector<32x128xi1>
    %152 = arith.select %151, %149, %144 : vector<32x128xi1>, vector<32x128xbf16>
    %c8_i32_65 = arith.constant 8 : i32
    %153 = vector.broadcast %c8_i32_65 : i32 to vector<32x1xi32>
    %154 = arith.cmpi slt, %16, %153 : vector<32x1xi32>
    %cst_66 = arith.constant 0.000000e+00 : bf16
    %155 = vector.broadcast %cst_66 : bf16 to vector<8x128xbf16>
    %156 = vector.extract_strided_slice %140 {offsets = [8, 0], sizes = [24, 128], strides = [1, 1]} : vector<32x128xbf16> to vector<24x128xbf16>
    %157 = tpu.concatenate %156, %155 in 0 : vector<24x128xbf16>, vector<8x128xbf16> -> vector<32x128xbf16>
    %158 = vector.shape_cast %154 : vector<32x1xi1> to vector<32x1xi1>
    %159 = vector.broadcast %158 : vector<32x1xi1> to vector<32x128xi1>
    %160 = arith.select %159, %157, %144 : vector<32x128xi1>, vector<32x128xbf16>
    %c0_67 = arith.constant 0 : index
    %c0_68 = arith.constant 0 : index
    %c0_69 = arith.constant 0 : index
    %161 = vector.load %arg8[%c0_67, %c0_68, %c0_69] : memref<3x128x256xbf16, #tpu.memory_space<vmem>>, vector<1x128x256xbf16>
    %162 = vector.shape_cast %161 : vector<1x128x256xbf16> to vector<128x256xbf16>
    %cst_70 = arith.constant dense<0.000000e+00> : vector<32x256xf32>
    %163 = tpu.matmul %152, %162, %cst_70 {dimension_numbers = #tpu.dot_dimension_numbers<[1], [0], [0], [1], [0, 0, 1, 1], [], []>} : vector<32x128xbf16>, vector<128x256xbf16>, vector<32x256xf32> -> vector<32x256xf32>
    %164 = arith.addf %143, %163 : vector<32x256xf32>
    %c2_71 = arith.constant 2 : index
    %c0_72 = arith.constant 0 : index
    %c0_73 = arith.constant 0 : index
    %165 = vector.load %arg8[%c2_71, %c0_72, %c0_73] : memref<3x128x256xbf16, #tpu.memory_space<vmem>>, vector<1x128x256xbf16>
    %166 = vector.shape_cast %165 : vector<1x128x256xbf16> to vector<128x256xbf16>
    %cst_74 = arith.constant dense<0.000000e+00> : vector<32x256xf32>
    %167 = tpu.matmul %160, %166, %cst_74 {dimension_numbers = #tpu.dot_dimension_numbers<[1], [0], [0], [1], [0, 0, 1, 1], [], []>} : vector<32x128xbf16>, vector<128x256xbf16>, vector<32x256xf32> -> vector<32x256xf32>
    %168 = arith.addf %164, %167 : vector<32x256xf32>
    %c0_75 = arith.constant 0 : index
    %c0_76 = arith.constant 0 : index
    %169 = vector.load %arg9[%c0_75, %c0_76] : memref<1x256xf32, #tpu.memory_space<vmem>>, vector<1x256xf32>
    %170 = vector.broadcast %169 : vector<1x256xf32> to vector<32x256xf32>
    %171 = arith.addf %168, %170 : vector<32x256xf32>
    %cst_77 = arith.constant 0.000000e+00 : f32
    %172 = vector.broadcast %cst_77 : f32 to vector<32x256xf32>
    %173 = arith.maximumf %171, %172 : vector<32x256xf32>
    %174 = vector.extract_strided_slice %173 {offsets = [0, 0], sizes = [32, 128], strides = [1, 1]} : vector<32x256xf32> to vector<32x128xf32>
    %175 = vector.extract_strided_slice %173 {offsets = [0, 128], sizes = [32, 128], strides = [1, 1]} : vector<32x256xf32> to vector<32x128xf32>
    %176 = arith.maximumf %174, %175 : vector<32x128xf32>
    %cst_78 = arith.constant 0.000000e+00 : f32
    %177 = vector.broadcast %cst_78 : f32 to vector<8x128xf32>
    %178 = vector.extract_strided_slice %176 {offsets = [8, 0], sizes = [24, 128], strides = [1, 1]} : vector<32x128xf32> to vector<24x128xf32>
    %179 = tpu.concatenate %178, %177 in 0 : vector<24x128xf32>, vector<8x128xf32> -> vector<32x128xf32>
    %180 = arith.maximumf %176, %179 : vector<32x128xf32>
    %181 = arith.truncf %180 : vector<32x128xf32> to vector<32x128xbf16>
    %c1_79 = arith.constant 1 : index
    %c0_80 = arith.constant 0 : index
    %c0_81 = arith.constant 0 : index
    %182 = vector.load %arg10[%c1_79, %c0_80, %c0_81] : memref<3x128x256xbf16, #tpu.memory_space<vmem>>, vector<1x128x256xbf16>
    %183 = vector.shape_cast %182 : vector<1x128x256xbf16> to vector<128x256xbf16>
    %cst_82 = arith.constant dense<0.000000e+00> : vector<32x256xf32>
    %184 = tpu.matmul %181, %183, %cst_82 {dimension_numbers = #tpu.dot_dimension_numbers<[1], [0], [0], [1], [0, 0, 1, 1], [], []>} : vector<32x128xbf16>, vector<128x256xbf16>, vector<32x256xf32> -> vector<32x256xf32>
    %c16_i32_83 = arith.constant 16 : i32
    %c0_i32_84 = arith.constant 0 : i32
    %185 = arith.cmpi eq, %c16_i32_83, %c0_i32_84 : i32
    %c1_i32_85 = arith.constant 1 : i32
    %186 = arith.select %185, %c1_i32_85, %c16_i32_83 : i32
    %187 = vector.broadcast %186 : i32 to vector<32x1xi32>
    %188 = arith.remsi %16, %187 : vector<32x1xi32>
    %c0_i32_86 = arith.constant 0 : i32
    %189 = vector.broadcast %c0_i32_86 : i32 to vector<32x1xi32>
    %190 = arith.cmpi ne, %188, %189 : vector<32x1xi32>
    %c0_i32_87 = arith.constant 0 : i32
    %191 = vector.broadcast %c0_i32_87 : i32 to vector<32x1xi32>
    %192 = arith.cmpi slt, %188, %191 : vector<32x1xi32>
    %c0_i32_88 = arith.constant 0 : i32
    %193 = arith.cmpi slt, %186, %c0_i32_88 : i32
    %194 = vector.broadcast %193 : i1 to vector<32x1xi1>
    %195 = vector.broadcast %194 : vector<32x1xi1> to vector<32x1xi1>
    %196 = arith.xori %192, %195 : vector<32x1xi1>
    %197 = arith.andi %196, %190 : vector<32x1xi1>
    %198 = vector.broadcast %186 : i32 to vector<32x1xi32>
    %199 = arith.addi %188, %198 : vector<32x1xi32>
    %200 = arith.select %197, %199, %188 : vector<32x1xi1>, vector<32x1xi32>
    %c0_i32_89 = arith.constant 0 : i32
    %201 = vector.broadcast %c0_i32_89 : i32 to vector<32x1xi32>
    %202 = arith.cmpi eq, %200, %201 : vector<32x1xi32>
    %203 = vector.extract_strided_slice %184 {offsets = [0, 0], sizes = [32, 128], strides = [1, 1]} : vector<32x256xf32> to vector<32x128xf32>
    %cst_90 = arith.constant 0.000000e+00 : f32
    %204 = vector.shape_cast %202 : vector<32x1xi1> to vector<32x1xi1>
    %205 = vector.broadcast %204 : vector<32x1xi1> to vector<32x128xi1>
    %206 = vector.broadcast %cst_90 : f32 to vector<32x128xf32>
    %207 = arith.select %205, %203, %206 : vector<32x128xi1>, vector<32x128xf32>
    %208 = vector.extract_strided_slice %184 {offsets = [0, 128], sizes = [32, 128], strides = [1, 1]} : vector<32x256xf32> to vector<32x128xf32>
    %cst_91 = arith.constant 0.000000e+00 : f32
    %209 = vector.shape_cast %202 : vector<32x1xi1> to vector<32x1xi1>
    %210 = vector.broadcast %209 : vector<32x1xi1> to vector<32x128xi1>
    %211 = vector.broadcast %cst_91 : f32 to vector<32x128xf32>
    %212 = arith.select %210, %208, %211 : vector<32x128xi1>, vector<32x128xf32>
    %cst_92 = arith.constant 0.000000e+00 : f32
    %213 = vector.broadcast %cst_92 : f32 to vector<8x128xf32>
    %214 = vector.extract_strided_slice %212 {offsets = [0, 0], sizes = [24, 128], strides = [1, 1]} : vector<32x128xf32> to vector<24x128xf32>
    %215 = tpu.concatenate %213, %214 in 0 : vector<8x128xf32>, vector<24x128xf32> -> vector<32x128xf32>
    %216 = arith.addf %207, %215 : vector<32x128xf32>
    %c0_93 = arith.constant 0 : index
    %c0_94 = arith.constant 0 : index
    %217 = vector.load %arg11[%c0_93, %c0_94] : memref<1x128xf32, #tpu.memory_space<vmem>>, vector<1x128xf32>
    %218 = vector.broadcast %217 : vector<1x128xf32> to vector<32x128xf32>
    %219 = arith.addf %216, %218 : vector<32x128xf32>
    %cst_95 = arith.constant 0.000000e+00 : f32
    %220 = vector.broadcast %cst_95 : f32 to vector<32x128xf32>
    %221 = arith.maximumf %219, %220 : vector<32x128xf32>
    %222 = arith.truncf %221 : vector<32x128xf32> to vector<32x128xbf16>
    %c1_96 = arith.constant 1 : index
    %c0_97 = arith.constant 0 : index
    %c0_98 = arith.constant 0 : index
    %223 = vector.load %arg12[%c1_96, %c0_97, %c0_98] : memref<3x128x256xbf16, #tpu.memory_space<vmem>>, vector<1x128x256xbf16>
    %224 = vector.shape_cast %223 : vector<1x128x256xbf16> to vector<128x256xbf16>
    %cst_99 = arith.constant dense<0.000000e+00> : vector<32x256xf32>
    %225 = tpu.matmul %222, %224, %cst_99 {dimension_numbers = #tpu.dot_dimension_numbers<[1], [0], [0], [1], [0, 0, 1, 1], [], []>} : vector<32x128xbf16>, vector<128x256xbf16>, vector<32x256xf32> -> vector<32x256xf32>
    %cst_100 = arith.constant 0.000000e+00 : bf16
    %226 = vector.broadcast %cst_100 : bf16 to vector<32x128xbf16>
    %c8_i32_101 = arith.constant 8 : i32
    %227 = vector.broadcast %c8_i32_101 : i32 to vector<32x1xi32>
    %228 = arith.cmpi sge, %16, %227 : vector<32x1xi32>
    %cst_102 = arith.constant 0.000000e+00 : bf16
    %229 = vector.broadcast %cst_102 : bf16 to vector<8x128xbf16>
    %230 = vector.extract_strided_slice %222 {offsets = [0, 0], sizes = [24, 128], strides = [1, 1]} : vector<32x128xbf16> to vector<24x128xbf16>
    %231 = tpu.concatenate %229, %230 in 0 : vector<8x128xbf16>, vector<24x128xbf16> -> vector<32x128xbf16>
    %232 = vector.shape_cast %228 : vector<32x1xi1> to vector<32x1xi1>
    %233 = vector.broadcast %232 : vector<32x1xi1> to vector<32x128xi1>
    %234 = arith.select %233, %231, %226 : vector<32x128xi1>, vector<32x128xbf16>
    %c8_i32_103 = arith.constant 8 : i32
    %235 = vector.broadcast %c8_i32_103 : i32 to vector<32x1xi32>
    %236 = arith.cmpi slt, %16, %235 : vector<32x1xi32>
    %cst_104 = arith.constant 0.000000e+00 : bf16
    %237 = vector.broadcast %cst_104 : bf16 to vector<8x128xbf16>
    %238 = vector.extract_strided_slice %222 {offsets = [8, 0], sizes = [24, 128], strides = [1, 1]} : vector<32x128xbf16> to vector<24x128xbf16>
    %239 = tpu.concatenate %238, %237 in 0 : vector<24x128xbf16>, vector<8x128xbf16> -> vector<32x128xbf16>
    %240 = vector.shape_cast %236 : vector<32x1xi1> to vector<32x1xi1>
    %241 = vector.broadcast %240 : vector<32x1xi1> to vector<32x128xi1>
    %242 = arith.select %241, %239, %226 : vector<32x128xi1>, vector<32x128xbf16>
    %c0_105 = arith.constant 0 : index
    %c0_106 = arith.constant 0 : index
    %c0_107 = arith.constant 0 : index
    %243 = vector.load %arg12[%c0_105, %c0_106, %c0_107] : memref<3x128x256xbf16, #tpu.memory_space<vmem>>, vector<1x128x256xbf16>
    %244 = vector.shape_cast %243 : vector<1x128x256xbf16> to vector<128x256xbf16>
    %cst_108 = arith.constant dense<0.000000e+00> : vector<32x256xf32>
    %245 = tpu.matmul %234, %244, %cst_108 {dimension_numbers = #tpu.dot_dimension_numbers<[1], [0], [0], [1], [0, 0, 1, 1], [], []>} : vector<32x128xbf16>, vector<128x256xbf16>, vector<32x256xf32> -> vector<32x256xf32>
    %246 = arith.addf %225, %245 : vector<32x256xf32>
    %c2_109 = arith.constant 2 : index
    %c0_110 = arith.constant 0 : index
    %c0_111 = arith.constant 0 : index
    %247 = vector.load %arg12[%c2_109, %c0_110, %c0_111] : memref<3x128x256xbf16, #tpu.memory_space<vmem>>, vector<1x128x256xbf16>
    %248 = vector.shape_cast %247 : vector<1x128x256xbf16> to vector<128x256xbf16>
    %cst_112 = arith.constant dense<0.000000e+00> : vector<32x256xf32>
    %249 = tpu.matmul %242, %248, %cst_112 {dimension_numbers = #tpu.dot_dimension_numbers<[1], [0], [0], [1], [0, 0, 1, 1], [], []>} : vector<32x128xbf16>, vector<128x256xbf16>, vector<32x256xf32> -> vector<32x256xf32>
    %250 = arith.addf %246, %249 : vector<32x256xf32>
    %c8_i32_113 = arith.constant 8 : i32
    %c0_i32_114 = arith.constant 0 : i32
    %251 = arith.cmpi eq, %c8_i32_113, %c0_i32_114 : i32
    %c1_i32_115 = arith.constant 1 : i32
    %252 = arith.select %251, %c1_i32_115, %c8_i32_113 : i32
    %253 = vector.broadcast %252 : i32 to vector<32x1xi32>
    %254 = arith.remsi %16, %253 : vector<32x1xi32>
    %c0_i32_116 = arith.constant 0 : i32
    %255 = vector.broadcast %c0_i32_116 : i32 to vector<32x1xi32>
    %256 = arith.cmpi ne, %254, %255 : vector<32x1xi32>
    %c0_i32_117 = arith.constant 0 : i32
    %257 = vector.broadcast %c0_i32_117 : i32 to vector<32x1xi32>
    %258 = arith.cmpi slt, %254, %257 : vector<32x1xi32>
    %c0_i32_118 = arith.constant 0 : i32
    %259 = arith.cmpi slt, %252, %c0_i32_118 : i32
    %260 = vector.broadcast %259 : i1 to vector<32x1xi1>
    %261 = vector.broadcast %260 : vector<32x1xi1> to vector<32x1xi1>
    %262 = arith.xori %258, %261 : vector<32x1xi1>
    %263 = arith.andi %262, %256 : vector<32x1xi1>
    %264 = vector.broadcast %252 : i32 to vector<32x1xi32>
    %265 = arith.addi %254, %264 : vector<32x1xi32>
    %266 = arith.select %263, %265, %254 : vector<32x1xi1>, vector<32x1xi32>
    %c0_i32_119 = arith.constant 0 : i32
    %267 = vector.broadcast %c0_i32_119 : i32 to vector<32x1xi32>
    %268 = arith.cmpi eq, %266, %267 : vector<32x1xi32>
    %269 = vector.extract_strided_slice %250 {offsets = [0, 0], sizes = [32, 128], strides = [1, 1]} : vector<32x256xf32> to vector<32x128xf32>
    %cst_120 = arith.constant 0.000000e+00 : f32
    %270 = vector.shape_cast %268 : vector<32x1xi1> to vector<32x1xi1>
    %271 = vector.broadcast %270 : vector<32x1xi1> to vector<32x128xi1>
    %272 = vector.broadcast %cst_120 : f32 to vector<32x128xf32>
    %273 = arith.select %271, %269, %272 : vector<32x128xi1>, vector<32x128xf32>
    %274 = vector.extract_strided_slice %250 {offsets = [0, 128], sizes = [32, 128], strides = [1, 1]} : vector<32x256xf32> to vector<32x128xf32>
    %cst_121 = arith.constant 0.000000e+00 : f32
    %275 = vector.shape_cast %268 : vector<32x1xi1> to vector<32x1xi1>
    %276 = vector.broadcast %275 : vector<32x1xi1> to vector<32x128xi1>
    %277 = vector.broadcast %cst_121 : f32 to vector<32x128xf32>
    %278 = arith.select %276, %274, %277 : vector<32x128xi1>, vector<32x128xf32>
    %cst_122 = arith.constant 0.000000e+00 : f32
    %279 = vector.broadcast %cst_122 : f32 to vector<4x128xf32>
    %280 = vector.extract_strided_slice %278 {offsets = [0, 0], sizes = [28, 128], strides = [1, 1]} : vector<32x128xf32> to vector<28x128xf32>
    %281 = tpu.concatenate %279, %280 in 0 : vector<4x128xf32>, vector<28x128xf32> -> vector<32x128xf32>
    %282 = arith.addf %273, %281 : vector<32x128xf32>
    %c0_123 = arith.constant 0 : index
    %c0_124 = arith.constant 0 : index
    %283 = vector.load %arg13[%c0_123, %c0_124] : memref<1x128xf32, #tpu.memory_space<vmem>>, vector<1x128xf32>
    %284 = vector.broadcast %283 : vector<1x128xf32> to vector<32x128xf32>
    %285 = arith.addf %282, %284 : vector<32x128xf32>
    %cst_125 = arith.constant 0.000000e+00 : f32
    %286 = vector.broadcast %cst_125 : f32 to vector<32x128xf32>
    %287 = arith.maximumf %285, %286 : vector<32x128xf32>
    %288 = arith.truncf %287 : vector<32x128xf32> to vector<32x128xbf16>
    %c1_126 = arith.constant 1 : index
    %c0_127 = arith.constant 0 : index
    %c0_128 = arith.constant 0 : index
    %289 = vector.load %arg14[%c1_126, %c0_127, %c0_128] : memref<3x128x256xbf16, #tpu.memory_space<vmem>>, vector<1x128x256xbf16>
    %290 = vector.shape_cast %289 : vector<1x128x256xbf16> to vector<128x256xbf16>
    %cst_129 = arith.constant dense<0.000000e+00> : vector<32x256xf32>
    %291 = tpu.matmul %288, %290, %cst_129 {dimension_numbers = #tpu.dot_dimension_numbers<[1], [0], [0], [1], [0, 0, 1, 1], [], []>} : vector<32x128xbf16>, vector<128x256xbf16>, vector<32x256xf32> -> vector<32x256xf32>
    %cst_130 = arith.constant 0.000000e+00 : bf16
    %292 = vector.broadcast %cst_130 : bf16 to vector<32x128xbf16>
    %c4_i32_131 = arith.constant 4 : i32
    %293 = vector.broadcast %c4_i32_131 : i32 to vector<32x1xi32>
    %294 = arith.cmpi sge, %16, %293 : vector<32x1xi32>
    %cst_132 = arith.constant 0.000000e+00 : bf16
    %295 = vector.broadcast %cst_132 : bf16 to vector<4x128xbf16>
    %296 = vector.extract_strided_slice %288 {offsets = [0, 0], sizes = [28, 128], strides = [1, 1]} : vector<32x128xbf16> to vector<28x128xbf16>
    %297 = tpu.concatenate %295, %296 in 0 : vector<4x128xbf16>, vector<28x128xbf16> -> vector<32x128xbf16>
    %298 = vector.shape_cast %294 : vector<32x1xi1> to vector<32x1xi1>
    %299 = vector.broadcast %298 : vector<32x1xi1> to vector<32x128xi1>
    %300 = arith.select %299, %297, %292 : vector<32x128xi1>, vector<32x128xbf16>
    %c12_i32_133 = arith.constant 12 : i32
    %301 = vector.broadcast %c12_i32_133 : i32 to vector<32x1xi32>
    %302 = arith.cmpi slt, %16, %301 : vector<32x1xi32>
    %cst_134 = arith.constant 0.000000e+00 : bf16
    %303 = vector.broadcast %cst_134 : bf16 to vector<4x128xbf16>
    %304 = vector.extract_strided_slice %288 {offsets = [4, 0], sizes = [28, 128], strides = [1, 1]} : vector<32x128xbf16> to vector<28x128xbf16>
    %305 = tpu.concatenate %304, %303 in 0 : vector<28x128xbf16>, vector<4x128xbf16> -> vector<32x128xbf16>
    %306 = vector.shape_cast %302 : vector<32x1xi1> to vector<32x1xi1>
    %307 = vector.broadcast %306 : vector<32x1xi1> to vector<32x128xi1>
    %308 = arith.select %307, %305, %292 : vector<32x128xi1>, vector<32x128xbf16>
    %c0_135 = arith.constant 0 : index
    %c0_136 = arith.constant 0 : index
    %c0_137 = arith.constant 0 : index
    %309 = vector.load %arg14[%c0_135, %c0_136, %c0_137] : memref<3x128x256xbf16, #tpu.memory_space<vmem>>, vector<1x128x256xbf16>
    %310 = vector.shape_cast %309 : vector<1x128x256xbf16> to vector<128x256xbf16>
    %cst_138 = arith.constant dense<0.000000e+00> : vector<32x256xf32>
    %311 = tpu.matmul %300, %310, %cst_138 {dimension_numbers = #tpu.dot_dimension_numbers<[1], [0], [0], [1], [0, 0, 1, 1], [], []>} : vector<32x128xbf16>, vector<128x256xbf16>, vector<32x256xf32> -> vector<32x256xf32>
    %312 = arith.addf %291, %311 : vector<32x256xf32>
    %c2_139 = arith.constant 2 : index
    %c0_140 = arith.constant 0 : index
    %c0_141 = arith.constant 0 : index
    %313 = vector.load %arg14[%c2_139, %c0_140, %c0_141] : memref<3x128x256xbf16, #tpu.memory_space<vmem>>, vector<1x128x256xbf16>
    %314 = vector.shape_cast %313 : vector<1x128x256xbf16> to vector<128x256xbf16>
    %cst_142 = arith.constant dense<0.000000e+00> : vector<32x256xf32>
    %315 = tpu.matmul %308, %314, %cst_142 {dimension_numbers = #tpu.dot_dimension_numbers<[1], [0], [0], [1], [0, 0, 1, 1], [], []>} : vector<32x128xbf16>, vector<128x256xbf16>, vector<32x256xf32> -> vector<32x256xf32>
    %316 = arith.addf %312, %315 : vector<32x256xf32>
    %c4_i32_143 = arith.constant 4 : i32
    %c0_i32_144 = arith.constant 0 : i32
    %317 = arith.cmpi eq, %c4_i32_143, %c0_i32_144 : i32
    %c1_i32_145 = arith.constant 1 : i32
    %318 = arith.select %317, %c1_i32_145, %c4_i32_143 : i32
    %319 = vector.broadcast %318 : i32 to vector<32x1xi32>
    %320 = arith.remsi %16, %319 : vector<32x1xi32>
    %c0_i32_146 = arith.constant 0 : i32
    %321 = vector.broadcast %c0_i32_146 : i32 to vector<32x1xi32>
    %322 = arith.cmpi ne, %320, %321 : vector<32x1xi32>
    %c0_i32_147 = arith.constant 0 : i32
    %323 = vector.broadcast %c0_i32_147 : i32 to vector<32x1xi32>
    %324 = arith.cmpi slt, %320, %323 : vector<32x1xi32>
    %c0_i32_148 = arith.constant 0 : i32
    %325 = arith.cmpi slt, %318, %c0_i32_148 : i32
    %326 = vector.broadcast %325 : i1 to vector<32x1xi1>
    %327 = vector.broadcast %326 : vector<32x1xi1> to vector<32x1xi1>
    %328 = arith.xori %324, %327 : vector<32x1xi1>
    %329 = arith.andi %328, %322 : vector<32x1xi1>
    %330 = vector.broadcast %318 : i32 to vector<32x1xi32>
    %331 = arith.addi %320, %330 : vector<32x1xi32>
    %332 = arith.select %329, %331, %320 : vector<32x1xi1>, vector<32x1xi32>
    %c0_i32_149 = arith.constant 0 : i32
    %333 = vector.broadcast %c0_i32_149 : i32 to vector<32x1xi32>
    %334 = arith.cmpi eq, %332, %333 : vector<32x1xi32>
    %335 = vector.extract_strided_slice %316 {offsets = [0, 0], sizes = [32, 128], strides = [1, 1]} : vector<32x256xf32> to vector<32x128xf32>
    %cst_150 = arith.constant 0.000000e+00 : f32
    %336 = vector.shape_cast %334 : vector<32x1xi1> to vector<32x1xi1>
    %337 = vector.broadcast %336 : vector<32x1xi1> to vector<32x128xi1>
    %338 = vector.broadcast %cst_150 : f32 to vector<32x128xf32>
    %339 = arith.select %337, %335, %338 : vector<32x128xi1>, vector<32x128xf32>
    %340 = vector.extract_strided_slice %316 {offsets = [0, 128], sizes = [32, 128], strides = [1, 1]} : vector<32x256xf32> to vector<32x128xf32>
    %cst_151 = arith.constant 0.000000e+00 : f32
    %341 = vector.shape_cast %334 : vector<32x1xi1> to vector<32x1xi1>
    %342 = vector.broadcast %341 : vector<32x1xi1> to vector<32x128xi1>
    %343 = vector.broadcast %cst_151 : f32 to vector<32x128xf32>
    %344 = arith.select %342, %340, %343 : vector<32x128xi1>, vector<32x128xf32>
    %cst_152 = arith.constant 0.000000e+00 : f32
    %345 = vector.broadcast %cst_152 : f32 to vector<2x128xf32>
    %346 = vector.extract_strided_slice %344 {offsets = [0, 0], sizes = [30, 128], strides = [1, 1]} : vector<32x128xf32> to vector<30x128xf32>
    %347 = tpu.concatenate %345, %346 in 0 : vector<2x128xf32>, vector<30x128xf32> -> vector<32x128xf32>
    %348 = arith.addf %339, %347 : vector<32x128xf32>
    %c0_153 = arith.constant 0 : index
    %c0_154 = arith.constant 0 : index
    %349 = vector.load %arg15[%c0_153, %c0_154] : memref<1x128xf32, #tpu.memory_space<vmem>>, vector<1x128xf32>
    %350 = vector.broadcast %349 : vector<1x128xf32> to vector<32x128xf32>
    %351 = arith.addf %348, %350 : vector<32x128xf32>
    %cst_155 = arith.constant 0.000000e+00 : f32
    %352 = vector.broadcast %cst_155 : f32 to vector<32x128xf32>
    %353 = arith.maximumf %351, %352 : vector<32x128xf32>
    %354 = arith.truncf %353 : vector<32x128xf32> to vector<32x128xbf16>
    %c1_156 = arith.constant 1 : index
    %c0_157 = arith.constant 0 : index
    %c0_158 = arith.constant 0 : index
    %355 = vector.load %arg16[%c1_156, %c0_157, %c0_158] : memref<3x128x256xbf16, #tpu.memory_space<vmem>>, vector<1x128x256xbf16>
    %356 = vector.shape_cast %355 : vector<1x128x256xbf16> to vector<128x256xbf16>
    %cst_159 = arith.constant dense<0.000000e+00> : vector<32x256xf32>
    %357 = tpu.matmul %354, %356, %cst_159 {dimension_numbers = #tpu.dot_dimension_numbers<[1], [0], [0], [1], [0, 0, 1, 1], [], []>} : vector<32x128xbf16>, vector<128x256xbf16>, vector<32x256xf32> -> vector<32x256xf32>
    %cst_160 = arith.constant 0.000000e+00 : bf16
    %358 = vector.broadcast %cst_160 : bf16 to vector<32x128xbf16>
    %c2_i32_161 = arith.constant 2 : i32
    %359 = vector.broadcast %c2_i32_161 : i32 to vector<32x1xi32>
    %360 = arith.cmpi sge, %16, %359 : vector<32x1xi32>
    %cst_162 = arith.constant 0.000000e+00 : bf16
    %361 = vector.broadcast %cst_162 : bf16 to vector<2x128xbf16>
    %362 = vector.extract_strided_slice %354 {offsets = [0, 0], sizes = [30, 128], strides = [1, 1]} : vector<32x128xbf16> to vector<30x128xbf16>
    %363 = tpu.concatenate %361, %362 in 0 : vector<2x128xbf16>, vector<30x128xbf16> -> vector<32x128xbf16>
    %364 = vector.shape_cast %360 : vector<32x1xi1> to vector<32x1xi1>
    %365 = vector.broadcast %364 : vector<32x1xi1> to vector<32x128xi1>
    %366 = arith.select %365, %363, %358 : vector<32x128xi1>, vector<32x128xbf16>
    %c14_i32_163 = arith.constant 14 : i32
    %367 = vector.broadcast %c14_i32_163 : i32 to vector<32x1xi32>
    %368 = arith.cmpi slt, %16, %367 : vector<32x1xi32>
    %cst_164 = arith.constant 0.000000e+00 : bf16
    %369 = vector.broadcast %cst_164 : bf16 to vector<2x128xbf16>
    %370 = vector.extract_strided_slice %354 {offsets = [2, 0], sizes = [30, 128], strides = [1, 1]} : vector<32x128xbf16> to vector<30x128xbf16>
    %371 = tpu.concatenate %370, %369 in 0 : vector<30x128xbf16>, vector<2x128xbf16> -> vector<32x128xbf16>
    %372 = vector.shape_cast %368 : vector<32x1xi1> to vector<32x1xi1>
    %373 = vector.broadcast %372 : vector<32x1xi1> to vector<32x128xi1>
    %374 = arith.select %373, %371, %358 : vector<32x128xi1>, vector<32x128xbf16>
    %c0_165 = arith.constant 0 : index
    %c0_166 = arith.constant 0 : index
    %c0_167 = arith.constant 0 : index
    %375 = vector.load %arg16[%c0_165, %c0_166, %c0_167] : memref<3x128x256xbf16, #tpu.memory_space<vmem>>, vector<1x128x256xbf16>
    %376 = vector.shape_cast %375 : vector<1x128x256xbf16> to vector<128x256xbf16>
    %cst_168 = arith.constant dense<0.000000e+00> : vector<32x256xf32>
    %377 = tpu.matmul %366, %376, %cst_168 {dimension_numbers = #tpu.dot_dimension_numbers<[1], [0], [0], [1], [0, 0, 1, 1], [], []>} : vector<32x128xbf16>, vector<128x256xbf16>, vector<32x256xf32> -> vector<32x256xf32>
    %378 = arith.addf %357, %377 : vector<32x256xf32>
    %c2_169 = arith.constant 2 : index
    %c0_170 = arith.constant 0 : index
    %c0_171 = arith.constant 0 : index
    %379 = vector.load %arg16[%c2_169, %c0_170, %c0_171] : memref<3x128x256xbf16, #tpu.memory_space<vmem>>, vector<1x128x256xbf16>
    %380 = vector.shape_cast %379 : vector<1x128x256xbf16> to vector<128x256xbf16>
    %cst_172 = arith.constant dense<0.000000e+00> : vector<32x256xf32>
    %381 = tpu.matmul %374, %380, %cst_172 {dimension_numbers = #tpu.dot_dimension_numbers<[1], [0], [0], [1], [0, 0, 1, 1], [], []>} : vector<32x128xbf16>, vector<128x256xbf16>, vector<32x256xf32> -> vector<32x256xf32>
    %382 = arith.addf %378, %381 : vector<32x256xf32>
    %c2_i32_173 = arith.constant 2 : i32
    %c0_i32_174 = arith.constant 0 : i32
    %383 = arith.cmpi eq, %c2_i32_173, %c0_i32_174 : i32
    %c1_i32_175 = arith.constant 1 : i32
    %384 = arith.select %383, %c1_i32_175, %c2_i32_173 : i32
    %385 = vector.broadcast %384 : i32 to vector<32x1xi32>
    %386 = arith.remsi %16, %385 : vector<32x1xi32>
    %c0_i32_176 = arith.constant 0 : i32
    %387 = vector.broadcast %c0_i32_176 : i32 to vector<32x1xi32>
    %388 = arith.cmpi ne, %386, %387 : vector<32x1xi32>
    %c0_i32_177 = arith.constant 0 : i32
    %389 = vector.broadcast %c0_i32_177 : i32 to vector<32x1xi32>
    %390 = arith.cmpi slt, %386, %389 : vector<32x1xi32>
    %c0_i32_178 = arith.constant 0 : i32
    %391 = arith.cmpi slt, %384, %c0_i32_178 : i32
    %392 = vector.broadcast %391 : i1 to vector<32x1xi1>
    %393 = vector.broadcast %392 : vector<32x1xi1> to vector<32x1xi1>
    %394 = arith.xori %390, %393 : vector<32x1xi1>
    %395 = arith.andi %394, %388 : vector<32x1xi1>
    %396 = vector.broadcast %384 : i32 to vector<32x1xi32>
    %397 = arith.addi %386, %396 : vector<32x1xi32>
    %398 = arith.select %395, %397, %386 : vector<32x1xi1>, vector<32x1xi32>
    %c0_i32_179 = arith.constant 0 : i32
    %399 = vector.broadcast %c0_i32_179 : i32 to vector<32x1xi32>
    %400 = arith.cmpi eq, %398, %399 : vector<32x1xi32>
    %401 = vector.extract_strided_slice %382 {offsets = [0, 0], sizes = [32, 128], strides = [1, 1]} : vector<32x256xf32> to vector<32x128xf32>
    %cst_180 = arith.constant 0.000000e+00 : f32
    %402 = vector.shape_cast %400 : vector<32x1xi1> to vector<32x1xi1>
    %403 = vector.broadcast %402 : vector<32x1xi1> to vector<32x128xi1>
    %404 = vector.broadcast %cst_180 : f32 to vector<32x128xf32>
    %405 = arith.select %403, %401, %404 : vector<32x128xi1>, vector<32x128xf32>
    %406 = vector.extract_strided_slice %382 {offsets = [0, 128], sizes = [32, 128], strides = [1, 1]} : vector<32x256xf32> to vector<32x128xf32>
    %cst_181 = arith.constant 0.000000e+00 : f32
    %407 = vector.shape_cast %400 : vector<32x1xi1> to vector<32x1xi1>
    %408 = vector.broadcast %407 : vector<32x1xi1> to vector<32x128xi1>
    %409 = vector.broadcast %cst_181 : f32 to vector<32x128xf32>
    %410 = arith.select %408, %406, %409 : vector<32x128xi1>, vector<32x128xf32>
    %cst_182 = arith.constant 0.000000e+00 : f32
    %411 = vector.broadcast %cst_182 : f32 to vector<1x128xf32>
    %412 = vector.extract_strided_slice %410 {offsets = [0, 0], sizes = [31, 128], strides = [1, 1]} : vector<32x128xf32> to vector<31x128xf32>
    %413 = tpu.concatenate %411, %412 in 0 : vector<1x128xf32>, vector<31x128xf32> -> vector<32x128xf32>
    %414 = arith.addf %405, %413 : vector<32x128xf32>
    %c0_183 = arith.constant 0 : index
    %c0_184 = arith.constant 0 : index
    %415 = vector.load %arg17[%c0_183, %c0_184] : memref<1x128xf32, #tpu.memory_space<vmem>>, vector<1x128xf32>
    %416 = vector.broadcast %415 : vector<1x128xf32> to vector<32x128xf32>
    %417 = arith.addf %414, %416 : vector<32x128xf32>
    %cst_185 = arith.constant 0.000000e+00 : f32
    %418 = vector.broadcast %cst_185 : f32 to vector<32x128xf32>
    %419 = arith.maximumf %417, %418 : vector<32x128xf32>
    %c0_186 = arith.constant 0 : index
    %c0_187 = arith.constant 0 : index
    %420 = vector.load %arg18[%c0_186, %c0_187] : memref<32x128xf32, #tpu.memory_space<vmem>>, vector<32x128xf32>
    tpu.vector_store %arg18[%c0_186, %c0_187], %419 {strides = array<i32>} : memref<32x128xf32, #tpu.memory_space<vmem>>, vector<32x128xf32>,
    return
  }
  func.func @transform_0(%arg0: i32) -> (i32, i32) {
    %c0_i32 = arith.constant 0 : i32
    %c0_i32_0 = arith.constant 0 : i32
    return %arg0, %c0_i32 : i32, i32
  }
  func.func @transform_1(%arg0: i32) -> (i32, i32, i32) {
    %c0_i32 = arith.constant 0 : i32
    %c0_i32_0 = arith.constant 0 : i32
    %c0_i32_1 = arith.constant 0 : i32
    %c0_i32_2 = arith.constant 0 : i32
    return %c0_i32, %c0_i32_0, %c0_i32_1 : i32, i32, i32
  }
  func.func @transform_2(%arg0: i32) -> (i32, i32) {
    %c0_i32 = arith.constant 0 : i32
    %c0_i32_0 = arith.constant 0 : i32
    %c0_i32_1 = arith.constant 0 : i32
    return %c0_i32, %c0_i32_0 : i32, i32
  }
  func.func @transform_3(%arg0: i32) -> (i32, i32, i32) {
    %c0_i32 = arith.constant 0 : i32
    %c0_i32_0 = arith.constant 0 : i32
    %c0_i32_1 = arith.constant 0 : i32
    %c0_i32_2 = arith.constant 0 : i32
    return %c0_i32, %c0_i32_0, %c0_i32_1 : i32, i32, i32
  }
  func.func @transform_4(%arg0: i32) -> (i32, i32) {
    %c0_i32 = arith.constant 0 : i32
    %c0_i32_0 = arith.constant 0 : i32
    %c0_i32_1 = arith.constant 0 : i32
    return %c0_i32, %c0_i32_0 : i32, i32
  }
  func.func @transform_5(%arg0: i32) -> (i32, i32, i32) {
    %c0_i32 = arith.constant 0 : i32
    %c0_i32_0 = arith.constant 0 : i32
    %c0_i32_1 = arith.constant 0 : i32
    %c0_i32_2 = arith.constant 0 : i32
    return %c0_i32, %c0_i32_0, %c0_i32_1 : i32, i32, i32
  }
  func.func @transform_6(%arg0: i32) -> (i32, i32) {
    %c0_i32 = arith.constant 0 : i32
    %c0_i32_0 = arith.constant 0 : i32
    %c0_i32_1 = arith.constant 0 : i32
    return %c0_i32, %c0_i32_0 : i32, i32
  }
  func.func @transform_7(%arg0: i32) -> (i32, i32, i32) {
    %c0_i32 = arith.constant 0 : i32
    %c0_i32_0 = arith.constant 0 : i32
    %c0_i32_1 = arith.constant 0 : i32
    %c0_i32_2 = arith.constant 0 : i32
    return %c0_i32, %c0_i32_0, %c0_i32_1 : i32, i32, i32
  }
  func.func @transform_8(%arg0: i32) -> (i32, i32) {
    %c0_i32 = arith.constant 0 : i32
    %c0_i32_0 = arith.constant 0 : i32
    %c0_i32_1 = arith.constant 0 : i32
    return %c0_i32, %c0_i32_0 : i32, i32
  }
  func.func @transform_9(%arg0: i32) -> (i32, i32, i32) {
    %c0_i32 = arith.constant 0 : i32
    %c0_i32_0 = arith.constant 0 : i32
    %c0_i32_1 = arith.constant 0 : i32
    %c0_i32_2 = arith.constant 0 : i32
    return %c0_i32, %c0_i32_0, %c0_i32_1 : i32, i32, i32
  }
  func.func @transform_10(%arg0: i32) -> (i32, i32) {
    %c0_i32 = arith.constant 0 : i32
    %c0_i32_0 = arith.constant 0 : i32
    %c0_i32_1 = arith.constant 0 : i32
    return %c0_i32, %c0_i32_0 : i32, i32
  }
  func.func @transform_11(%arg0: i32) -> (i32, i32, i32) {
    %c0_i32 = arith.constant 0 : i32
    %c0_i32_0 = arith.constant 0 : i32
    %c0_i32_1 = arith.constant 0 : i32
    %c0_i32_2 = arith.constant 0 : i32
    return %c0_i32, %c0_i32_0, %c0_i32_1 : i32, i32, i32
  }
  func.func @transform_12(%arg0: i32) -> (i32, i32) {
    %c0_i32 = arith.constant 0 : i32
    %c0_i32_0 = arith.constant 0 : i32
    %c0_i32_1 = arith.constant 0 : i32
    return %c0_i32, %c0_i32_0 : i32, i32
  }
  func.func @transform_13(%arg0: i32) -> (i32, i32, i32) {
    %c0_i32 = arith.constant 0 : i32
    %c0_i32_0 = arith.constant 0 : i32
    %c0_i32_1 = arith.constant 0 : i32
    %c0_i32_2 = arith.constant 0 : i32
    return %c0_i32, %c0_i32_0, %c0_i32_1 : i32, i32, i32
  }
  func.func @transform_14(%arg0: i32) -> (i32, i32) {
    %c0_i32 = arith.constant 0 : i32
    %c0_i32_0 = arith.constant 0 : i32
    %c0_i32_1 = arith.constant 0 : i32
    return %c0_i32, %c0_i32_0 : i32, i32
  }
  func.func @transform_15(%arg0: i32) -> (i32, i32, i32) {
    %c0_i32 = arith.constant 0 : i32
    %c0_i32_0 = arith.constant 0 : i32
    %c0_i32_1 = arith.constant 0 : i32
    %c0_i32_2 = arith.constant 0 : i32
    return %c0_i32, %c0_i32_0, %c0_i32_1 : i32, i32, i32
  }
  func.func @transform_16(%arg0: i32) -> (i32, i32) {
    %c0_i32 = arith.constant 0 : i32
    %c0_i32_0 = arith.constant 0 : i32
    %c0_i32_1 = arith.constant 0 : i32
    return %c0_i32, %c0_i32_0 : i32, i32
  }
  func.func @transform_17(%arg0: i32) -> (i32, i32) {
    %c0_i32 = arith.constant 0 : i32
    %c0_i32_0 = arith.constant 0 : i32
    return %arg0, %c0_i32 : i32, i32
  }
}

</mosaic_0001>

<llo_original>
// kernel: ae_forward.1
$region0: #{ae_forward.1}
  #allocation0 [shape = 'u32[]', space=smem, size = 0x4, offset = 0x4, fixed_abs, tag = 'smem constant byte address 0x4 - core index']
  #allocation1 [shape = 'u32[144,128]{1,0:T(1,128)}', space=vmem, size = 0x12000, scoped, tag = 'internal scratch']
  %s0 = inlined_call_operand.vmem [shape: bf16[64,48], index: 0, kind: input, shape index: {}]
  %s1 = inlined_call_operand.vmem [shape: bf16[3,48,256], index: 1, kind: input, shape index: {}]
  %s2 = inlined_call_operand.vmem [shape: f32[1,256], index: 2, kind: input, shape index: {}]
  %s3 = inlined_call_operand.vmem [shape: bf16[3,128,256], index: 3, kind: input, shape index: {}]
  %s4 = inlined_call_operand.vmem [shape: f32[1,256], index: 4, kind: input, shape index: {}]
  %s5 = inlined_call_operand.hbm [shape: bf16[3,128,256], index: 5, kind: input, shape index: {}]
  %s6 = inlined_call_operand.vmem [shape: f32[1,256], index: 6, kind: input, shape index: {}]
  %s7 = inlined_call_operand.hbm [shape: bf16[3,128,256], index: 7, kind: input, shape index: {}]
  %s8 = inlined_call_operand.vmem [shape: f32[1,256], index: 8, kind: input, shape index: {}]
  %s9 = inlined_call_operand.hbm [shape: bf16[3,128,256], index: 9, kind: input, shape index: {}]
  %s10 = inlined_call_operand.vmem [shape: f32[1,128], index: 10, kind: input, shape index: {}]
  %s11 = inlined_call_operand.hbm [shape: bf16[3,128,256], index: 11, kind: input, shape index: {}]
  %s12 = inlined_call_operand.vmem [shape: f32[1,128], index: 12, kind: input, shape index: {}]
  %s13 = inlined_call_operand.hbm [shape: bf16[3,128,256], index: 13, kind: input, shape index: {}]
  %s14 = inlined_call_operand.vmem [shape: f32[1,128], index: 14, kind: input, shape index: {}]
  %s15 = inlined_call_operand.hbm [shape: bf16[3,128,256], index: 15, kind: input, shape index: {}]
  %s16 = inlined_call_operand.vmem [shape: f32[1,128], index: 16, kind: input, shape index: {}]
  %s17 = inlined_call_operand.vmem [shape: f32[64,128], index: 17, kind: output, shape index: {}]
  %s18 = sld [smem:[#allocation0]]
  $region125: #{ae_forward.1} parent=0
    _
  %s20 = ssub.s32 1, %s18
  %s21 = scalar_select 0, %s20, %s18
  $region1: #{ae_forward.1} parent=0
    #allocation2 [shape = 'u8[196608]{0}', space=vmem, size = 0x30000, scoped, tag = 'input window, operand 5, single buffered']
    #allocation3 [shape = 's32[2]{0}', space=sflag, size = 0x8, scoped, tag = 'scoped memory for ae_forward.1']
    #allocation4 [shape = 'u8[196608]{0}', space=vmem, size = 0x30000, scoped, tag = 'input window, operand 7, single buffered']
    #allocation5 [shape = 's32[1]{0}', space=sflag, size = 0x4, scoped, tag = 'scoped memory for ae_forward.1']
    #allocation6 [shape = 'u8[196608]{0}', space=vmem, size = 0x30000, scoped, tag = 'input window, operand 9, single buffered']
    #allocation7 [shape = 'u8[196608]{0}', space=vmem, size = 0x30000, scoped, tag = 'input window, operand 11, single buffered']
    #allocation8 [shape = 's32[1]{0}', space=sflag, size = 0x4, scoped, tag = 'scoped memory for ae_forward.1']
    #allocation9 [shape = 'u8[196608]{0}', space=vmem, size = 0x30000, scoped, tag = 'input window, operand 13, single buffered']
    #allocation10 [shape = 'u8[196608]{0}', space=vmem, size = 0x30000, scoped, tag = 'input window, operand 15, single buffered']
    #allocation11 [shape = 's32[1]{0}', space=sflag, size = 0x4, scoped, tag = 'scoped memory for ae_forward.1']
    %22 = vsyncpa [#allocation3], 0
    %23 = vsyncpa [#allocation5], 0
    %24 = vsyncpa [#allocation8], 0
    %25 = vsyncpa [#allocation11], 0
    loop: start=0, step=1, limit=4
    $region2: #{ae_forward.1} parent=1 // loop_pre_header
      _
    $region3: #{ae_forward.1} parent=1 // loop_header
      %s27 = sphi 0, %s31
      %p28 = scmp.ge.s32.totalorder %s27, 4
      %s37 = sphi 0, %s39
      %s40 = sphi 0, %s37
      %s41 = sphi 0, %s40
      %s57 = sphi 0, %s41
      %s61 = sphi 0, %s61
      %s63 = sphi 0, %s61
      %s64 = sphi 0, %s63
      %s78 = sphi 0, %s64
      %s82 = sphi 0, %s82
      %s84 = sphi 0, %s82
      %s85 = sphi 0, %s84
      %s99 = sphi 0, %s85
      %s103 = sphi 0, %s103
      %s105 = sphi 0, %s103
      %s106 = sphi 0, %s105
      %s120 = sphi 0, %s106
      %s124 = sphi 0, %s124
      %s126 = sphi 0, %s124
      %s127 = sphi 0, %s126
      %s141 = sphi 0, %s127
      %s145 = sphi 0, %s145
      %s147 = sphi 0, %s145
      %s148 = sphi 0, %s147
      %s162 = sphi 0, %s148
      %s166 = sphi 0, %s166
      %s168 = sphi 0, %s166
      %s169 = sphi 0, %s168
      %s183 = sphi 0, %s169
      %s187 = sphi 0, %s187
      %s189 = sphi 0, %s187
      %s190 = sphi 0, %s189
      %s204 = sphi 0, %s190
      %s208 = sphi 0, %s208
      %s210 = sphi 0, %s208
      %s211 = sphi 0, %s210
      %s225 = sphi 0, %s211
      %s229 = sphi 0, %s229
      %s231 = sphi 0, %s229
      %s232 = sphi 0, %s231
      %s246 = sphi 0, %s232
      %s250 = sphi 0, %s250
      %s252 = sphi 0, %s250
      %s253 = sphi 0, %s252
      %s267 = sphi 0, %s253
      %s271 = sphi 0, %s271
      %s273 = sphi 0, %s271
      %s274 = sphi 0, %s273
      %s288 = sphi 0, %s274
      %s292 = sphi 0, %s292
      %s294 = sphi 0, %s292
      %s295 = sphi 0, %s294
      %s309 = sphi 0, %s295
      %s313 = sphi 0, %s313
      %s315 = sphi 0, %s313
      %s316 = sphi 0, %s315
      %s330 = sphi 0, %s316
      %s334 = sphi 0, %s334
      %s336 = sphi 0, %s334
      %s337 = sphi 0, %s336
      %s351 = sphi 0, %s337
      %s355 = sphi 0, %s355
      %s357 = sphi 0, %s355
      %s358 = sphi 0, %s357
      %s372 = sphi 0, %s358
      %s376 = sphi 0, %s376
      %s378 = sphi 0, %s376
      %s379 = sphi 0, %s378
      %s393 = sphi 0, %s379
      %s399 = sphi 0, %s401
      %s402 = sphi 0, %s399
      %s403 = sphi 0, %s402
      %s419 = sphi 0, %s403
    $region4: #{ae_forward.1} parent=1 // loop_header_branch
      %30 = sbr.rel (%p28) target = $region8
    $region5: #{ae_forward.1} parent=1 // loop_body
      %s32 = ssub.s32 %s27, 1
      %s33 = ssub.s32 %s27, 2
      %s34 = sadd.s32 %s27, 1
      %s35 = ssub.s32 %s27, %s34
      %p36 = scmp.eq.s32.totalorder %s35, 0
      %s38 = sadd.s32 %s37, 1
      %s39 = scalar_select %p36, %s37, %s38
      %p42 = pneg %p36
      %p43 = scmp.eq.s32.totalorder %s27, 1
      %p44 = por %p42, %p43
      %p45 = scmp.ne.s32.totalorder %s37, %s40
      %p46 = scmp.eq.s32.totalorder %s27, 0
      %p47 = por %p45, %p46
      %p48 = scmp.ne.s32.totalorder %s37, %s40
      %p49 = scmp.eq.s32.totalorder %s32, 1
      %p50 = por %p48, %p49
      %p51 = scmp.ne.s32.totalorder %s40, %s41
      %p52 = scmp.eq.s32.totalorder %s32, 0
      %p53 = por %p51, %p52
      %p54 = scmp.ne.s32.totalorder %s40, %s41
      %p55 = scmp.eq.s32.totalorder %s33, 1
      %p56 = por %p54, %p55
      %p58 = scmp.ne.s32.totalorder %s41, %s57
      %p59 = scmp.eq.s32.totalorder %s33, 0
      %p60 = por %p58, %p59
      %s62 = sadd.s32 %s61, 1
      %p65 = scmp.eq.s32.totalorder %s27, 1
      %p66 = scmp.ne.s32.totalorder %s61, %s63
      %p67 = scmp.eq.s32.totalorder %s27, 0
      %p68 = por %p66, %p67
      %p69 = scmp.ne.s32.totalorder %s61, %s63
      %p70 = scmp.eq.s32.totalorder %s32, 1
      %p71 = por %p69, %p70
      %p72 = scmp.ne.s32.totalorder %s63, %s64
      %p73 = scmp.eq.s32.totalorder %s32, 0
      %p74 = por %p72, %p73
      %p75 = scmp.ne.s32.totalorder %s63, %s64
      %p76 = scmp.eq.s32.totalorder %s33, 1
      %p77 = por %p75, %p76
      %p79 = scmp.ne.s32.totalorder %s64, %s78
      %p80 = scmp.eq.s32.totalorder %s33, 0
      %p81 = por %p79, %p80
      %s83 = sadd.s32 %s82, 1
      %p86 = scmp.eq.s32.totalorder %s27, 1
      %p87 = scmp.ne.s32.totalorder %s82, %s84
      %p88 = scmp.eq.s32.totalorder %s27, 0
      %p89 = por %p87, %p88
      %p90 = scmp.ne.s32.totalorder %s82, %s84
      %p91 = scmp.eq.s32.totalorder %s32, 1
      %p92 = por %p90, %p91
      %p93 = scmp.ne.s32.totalorder %s84, %s85
      %p94 = scmp.eq.s32.totalorder %s32, 0
      %p95 = por %p93, %p94
      %p96 = scmp.ne.s32.totalorder %s84, %s85
      %p97 = scmp.eq.s32.totalorder %s33, 1
      %p98 = por %p96, %p97
      %p100 = scmp.ne.s32.totalorder %s85, %s99
      %p101 = scmp.eq.s32.totalorder %s33, 0
      %p102 = por %p100, %p101
      %s104 = sadd.s32 %s103, 1
      %p107 = scmp.eq.s32.totalorder %s27, 1
      %p108 = scmp.ne.s32.totalorder %s103, %s105
      %p109 = scmp.eq.s32.totalorder %s27, 0
      %p110 = por %p108, %p109
      %p111 = scmp.ne.s32.totalorder %s103, %s105
      %p112 = scmp.eq.s32.totalorder %s32, 1
      %p113 = por %p111, %p112
      %p114 = scmp.ne.s32.totalorder %s105, %s106
      %p115 = scmp.eq.s32.totalorder %s32, 0
      %p116 = por %p114, %p115
      %p117 = scmp.ne.s32.totalorder %s105, %s106
      %p118 = scmp.eq.s32.totalorder %s33, 1
      %p119 = por %p117, %p118
      %p121 = scmp.ne.s32.totalorder %s106, %s120
      %p122 = scmp.eq.s32.totalorder %s33, 0
      %p123 = por %p121, %p122
      %s125 = sadd.s32 %s124, 1
      %p128 = scmp.eq.s32.totalorder %s27, 1
      %p129 = scmp.ne.s32.totalorder %s124, %s126
      %p130 = scmp.eq.s32.totalorder %s27, 0
      %p131 = por %p129, %p130
      %p132 = scmp.ne.s32.totalorder %s124, %s126
      %p133 = scmp.eq.s32.totalorder %s32, 1
      %p134 = por %p132, %p133
      %p135 = scmp.ne.s32.totalorder %s126, %s127
      %p136 = scmp.eq.s32.totalorder %s32, 0
      %p137 = por %p135, %p136
      %p138 = scmp.ne.s32.totalorder %s126, %s127
      %p139 = scmp.eq.s32.totalorder %s33, 1
      %p140 = por %p138, %p139
      %p142 = scmp.ne.s32.totalorder %s127, %s141
      %p143 = scmp.eq.s32.totalorder %s33, 0
      %p144 = por %p142, %p143
      %s146 = sadd.s32 %s145, 1
      %p149 = scmp.eq.s32.totalorder %s27, 1
      %p150 = scmp.ne.s32.totalorder %s145, %s147
      %p151 = scmp.eq.s32.totalorder %s27, 0
      %p152 = por %p150, %p151
      %p153 = scmp.ne.s32.totalorder %s145, %s147
      %p154 = scmp.eq.s32.totalorder %s32, 1
      %p155 = por %p153, %p154
      %p156 = scmp.ne.s32.totalorder %s147, %s148
      %p157 = scmp.eq.s32.totalorder %s32, 0
      %p158 = por %p156, %p157
      %p159 = scmp.ne.s32.totalorder %s147, %s148
      %p160 = scmp.eq.s32.totalorder %s33, 1
      %p161 = por %p159, %p160
      %p163 = scmp.ne.s32.totalorder %s148, %s162
      %p164 = scmp.eq.s32.totalorder %s33, 0
      %p165 = por %p163, %p164
      %s167 = sadd.s32 %s166, 1
      %p170 = scmp.eq.s32.totalorder %s27, 1
      %p171 = scmp.ne.s32.totalorder %s166, %s168
      %p172 = scmp.eq.s32.totalorder %s27, 0
      %p173 = por %p171, %p172
      %p174 = scmp.ne.s32.totalorder %s166, %s168
      %p175 = scmp.eq.s32.totalorder %s32, 1
      %p176 = por %p174, %p175
      %p177 = scmp.ne.s32.totalorder %s168, %s169
      %p178 = scmp.eq.s32.totalorder %s32, 0
      %p179 = por %p177, %p178
      %p180 = scmp.ne.s32.totalorder %s168, %s169
      %p181 = scmp.eq.s32.totalorder %s33, 1
      %p182 = por %p180, %p181
      %p184 = scmp.ne.s32.totalorder %s169, %s183
      %p185 = scmp.eq.s32.totalorder %s33, 0
      %p186 = por %p184, %p185
      %s188 = sadd.s32 %s187, 1
      %p191 = scmp.eq.s32.totalorder %s27, 1
      %p192 = scmp.ne.s32.totalorder %s187, %s189
      %p193 = scmp.eq.s32.totalorder %s27, 0
      %p194 = por %p192, %p193
      %p195 = scmp.ne.s32.totalorder %s187, %s189
      %p196 = scmp.eq.s32.totalorder %s32, 1
      %p197 = por %p195, %p196
      %p198 = scmp.ne.s32.totalorder %s189, %s190
      %p199 = scmp.eq.s32.totalorder %s32, 0
      %p200 = por %p198, %p199
      %p201 = scmp.ne.s32.totalorder %s189, %s190
      %p202 = scmp.eq.s32.totalorder %s33, 1
      %p203 = por %p201, %p202
      %p205 = scmp.ne.s32.totalorder %s190, %s204
      %p206 = scmp.eq.s32.totalorder %s33, 0
      %p207 = por %p205, %p206
      %s209 = sadd.s32 %s208, 1
      %p212 = scmp.eq.s32.totalorder %s27, 1
      %p213 = scmp.ne.s32.totalorder %s208, %s210
      %p214 = scmp.eq.s32.totalorder %s27, 0
      %p215 = por %p213, %p214
      %p216 = scmp.ne.s32.totalorder %s208, %s210
      %p217 = scmp.eq.s32.totalorder %s32, 1
      %p218 = por %p216, %p217
      %p219 = scmp.ne.s32.totalorder %s210, %s211
      %p220 = scmp.eq.s32.totalorder %s32, 0
      %p221 = por %p219, %p220
      %p222 = scmp.ne.s32.totalorder %s210, %s211
      %p223 = scmp.eq.s32.totalorder %s33, 1
      %p224 = por %p222, %p223
      %p226 = scmp.ne.s32.totalorder %s211, %s225
      %p227 = scmp.eq.s32.totalorder %s33, 0
      %p228 = por %p226, %p227
      %s230 = sadd.s32 %s229, 1
      %p233 = scmp.eq.s32.totalorder %s27, 1
      %p234 = scmp.ne.s32.totalorder %s229, %s231
      %p235 = scmp.eq.s32.totalorder %s27, 0
      %p236 = por %p234, %p235
      %p237 = scmp.ne.s32.totalorder %s229, %s231
      %p238 = scmp.eq.s32.totalorder %s32, 1
      %p239 = por %p237, %p238
      %p240 = scmp.ne.s32.totalorder %s231, %s232
      %p241 = scmp.eq.s32.totalorder %s32, 0
      %p242 = por %p240, %p241
      %p243 = scmp.ne.s32.totalorder %s231, %s232
      %p244 = scmp.eq.s32.totalorder %s33, 1
      %p245 = por %p243, %p244
      %p247 = scmp.ne.s32.totalorder %s232, %s246
      %p248 = scmp.eq.s32.totalorder %s33, 0
      %p249 = por %p247, %p248
      %s251 = sadd.s32 %s250, 1
      %p254 = scmp.eq.s32.totalorder %s27, 1
      %p255 = scmp.ne.s32.totalorder %s250, %s252
      %p256 = scmp.eq.s32.totalorder %s27, 0
      %p257 = por %p255, %p256
      %p258 = scmp.ne.s32.totalorder %s250, %s252
      %p259 = scmp.eq.s32.totalorder %s32, 1
      %p260 = por %p258, %p259
      %p261 = scmp.ne.s32.totalorder %s252, %s253
      %p262 = scmp.eq.s32.totalorder %s32, 0
      %p263 = por %p261, %p262
      %p264 = scmp.ne.s32.totalorder %s252, %s253
      %p265 = scmp.eq.s32.totalorder %s33, 1
      %p266 = por %p264, %p265
      %p268 = scmp.ne.s32.totalorder %s253, %s267
      %p269 = scmp.eq.s32.totalorder %s33, 0
      %p270 = por %p268, %p269
      %s272 = sadd.s32 %s271, 1
      %p275 = scmp.eq.s32.totalorder %s27, 1
      %p276 = scmp.ne.s32.totalorder %s271, %s273
      %p277 = scmp.eq.s32.totalorder %s27, 0
      %p278 = por %p276, %p277
      %p279 = scmp.ne.s32.totalorder %s271, %s273
      %p280 = scmp.eq.s32.totalorder %s32, 1
      %p281 = por %p279, %p280
      %p282 = scmp.ne.s32.totalorder %s273, %s274
      %p283 = scmp.eq.s32.totalorder %s32, 0
      %p284 = por %p282, %p283
      %p285 = scmp.ne.s32.totalorder %s273, %s274
      %p286 = scmp.eq.s32.totalorder %s33, 1
      %p287 = por %p285, %p286
      %p289 = scmp.ne.s32.totalorder %s274, %s288
      %p290 = scmp.eq.s32.totalorder %s33, 0
      %p291 = por %p289, %p290
      %s293 = sadd.s32 %s292, 1
      %p296 = scmp.eq.s32.totalorder %s27, 1
      %p297 = scmp.ne.s32.totalorder %s292, %s294
      %p298 = scmp.eq.s32.totalorder %s27, 0
      %p299 = por %p297, %p298
      %p300 = scmp.ne.s32.totalorder %s292, %s294
      %p301 = scmp.eq.s32.totalorder %s32, 1
      %p302 = por %p300, %p301
      %p303 = scmp.ne.s32.totalorder %s294, %s295
      %p304 = scmp.eq.s32.totalorder %s32, 0
      %p305 = por %p303, %p304
      %p306 = scmp.ne.s32.totalorder %s294, %s295
      %p307 = scmp.eq.s32.totalorder %s33, 1
      %p308 = por %p306, %p307
      %p310 = scmp.ne.s32.totalorder %s295, %s309
      %p311 = scmp.eq.s32.totalorder %s33, 0
      %p312 = por %p310, %p311
      %s314 = sadd.s32 %s313, 1
      %p317 = scmp.eq.s32.totalorder %s27, 1
      %p318 = scmp.ne.s32.totalorder %s313, %s315
      %p319 = scmp.eq.s32.totalorder %s27, 0
      %p320 = por %p318, %p319
      %p321 = scmp.ne.s32.totalorder %s313, %s315
      %p322 = scmp.eq.s32.totalorder %s32, 1
      %p323 = por %p321, %p322
      %p324 = scmp.ne.s32.totalorder %s315, %s316
      %p325 = scmp.eq.s32.totalorder %s32, 0
      %p326 = por %p324, %p325
      %p327 = scmp.ne.s32.totalorder %s315, %s316
      %p328 = scmp.eq.s32.totalorder %s33, 1
      %p329 = por %p327, %p328
      %p331 = scmp.ne.s32.totalorder %s316, %s330
      %p332 = scmp.eq.s32.totalorder %s33, 0
      %p333 = por %p331, %p332
      %s335 = sadd.s32 %s334, 1
      %p338 = scmp.eq.s32.totalorder %s27, 1
      %p339 = scmp.ne.s32.totalorder %s334, %s336
      %p340 = scmp.eq.s32.totalorder %s27, 0
      %p341 = por %p339, %p340
      %p342 = scmp.ne.s32.totalorder %s334, %s336
      %p343 = scmp.eq.s32.totalorder %s32, 1
      %p344 = por %p342, %p343
      %p345 = scmp.ne.s32.totalorder %s336, %s337
      %p346 = scmp.eq.s32.totalorder %s32, 0
      %p347 = por %p345, %p346
      %p348 = scmp.ne.s32.totalorder %s336, %s337
      %p349 = scmp.eq.s32.totalorder %s33, 1
      %p350 = por %p348, %p349
      %p352 = scmp.ne.s32.totalorder %s337, %s351
      %p353 = scmp.eq.s32.totalorder %s33, 0
      %p354 = por %p352, %p353
      %s356 = sadd.s32 %s355, 1
      %p359 = scmp.eq.s32.totalorder %s27, 1
      %p360 = scmp.ne.s32.totalorder %s355, %s357
      %p361 = scmp.eq.s32.totalorder %s27, 0
      %p362 = por %p360, %p361
      %p363 = scmp.ne.s32.totalorder %s355, %s357
      %p364 = scmp.eq.s32.totalorder %s32, 1
      %p365 = por %p363, %p364
      %p366 = scmp.ne.s32.totalorder %s357, %s358
      %p367 = scmp.eq.s32.totalorder %s32, 0
      %p368 = por %p366, %p367
      %p369 = scmp.ne.s32.totalorder %s357, %s358
      %p370 = scmp.eq.s32.totalorder %s33, 1
      %p371 = por %p369, %p370
      %p373 = scmp.ne.s32.totalorder %s358, %s372
      %p374 = scmp.eq.s32.totalorder %s33, 0
      %p375 = por %p373, %p374
      %s377 = sadd.s32 %s376, 1
      %p380 = scmp.eq.s32.totalorder %s27, 1
      %p381 = scmp.ne.s32.totalorder %s376, %s378
      %p382 = scmp.eq.s32.totalorder %s27, 0
      %p383 = por %p381, %p382
      %p384 = scmp.ne.s32.totalorder %s376, %s378
      %p385 = scmp.eq.s32.totalorder %s32, 1
      %p386 = por %p384, %p385
      %p387 = scmp.ne.s32.totalorder %s378, %s379
      %p388 = scmp.eq.s32.totalorder %s32, 0
      %p389 = por %p387, %p388
      %p390 = scmp.ne.s32.totalorder %s378, %s379
      %p391 = scmp.eq.s32.totalorder %s33, 1
      %p392 = por %p390, %p391
      %p394 = scmp.ne.s32.totalorder %s379, %s393
      %p395 = scmp.eq.s32.totalorder %s33, 0
      %p396 = por %p394, %p395
      %s397 = ssub.s32 %s27, %s34
      %p398 = scmp.eq.s32.totalorder %s397, 0
      %s400 = sadd.s32 %s399, 1
      %s401 = scalar_select %p398, %s399, %s400
      %p404 = pneg %p398
      %p405 = scmp.eq.s32.totalorder %s27, 1
      %p406 = por %p404, %p405
      %p407 = scmp.ne.s32.totalorder %s399, %s402
      %p408 = scmp.eq.s32.totalorder %s27, 0
      %p409 = por %p407, %p408
      %p410 = scmp.ne.s32.totalorder %s399, %s402
      %p411 = scmp.eq.s32.totalorder %s32, 1
      %p412 = por %p410, %p411
      %p413 = scmp.ne.s32.totalorder %s402, %s403
      %p414 = scmp.eq.s32.totalorder %s32, 0
      %p415 = por %p413, %p414
      %p416 = scmp.ne.s32.totalorder %s402, %s403
      %p417 = scmp.eq.s32.totalorder %s33, 1
      %p418 = por %p416, %p417
      %p420 = scmp.ne.s32.totalorder %s403, %s419
      %p421 = scmp.eq.s32.totalorder %s33, 0
      %p422 = por %p420, %p421
      %p423 = scmp.le.s32.totalorder 1, %s27
      %p424 = scmp.lt.s32.totalorder %s27, 3
      %p425 = pnand %p423, %p424
      %p426 = pneg %p425
      // Predicated region
      $region9: #{ae_forward.1} parent=5 // pred_check
        _
      $region10: #{ae_forward.1} parent=5 // pred_check_branch
        %428 = sbr.rel (%p425) target = $region12
      $region11: #{ae_forward.1} parent=5 // pred_region
        %s429 = ssub.s32 %s27, 1
        // Predicated region
        $region13: #{ae_forward.1} parent=11 // pred_check
          %p430 = pneg %p74
        $region14: #{ae_forward.1} parent=11 // pred_check_branch
          %432 = sbr.rel (%p430) target = $region16
        $region15: #{ae_forward.1} parent=11 // pred_region
          _
        $region16: #{ae_forward.1} parent=11 // pred_fallthru
          _
        // Predicated region
        $region17: #{ae_forward.1} parent=11 // pred_check
          %p433 = pneg %p95
        $region18: #{ae_forward.1} parent=11 // pred_check_branch
          %435 = sbr.rel (%p433) target = $region20
        $region19: #{ae_forward.1} parent=11 // pred_region
          _
        $region20: #{ae_forward.1} parent=11 // pred_fallthru
          _
        // Predicated region
        $region21: #{ae_forward.1} parent=11 // pred_check
          %p436 = pneg %p116
        $region22: #{ae_forward.1} parent=11 // pred_check_branch
          %438 = sbr.rel (%p436) target = $region24
        $region23: #{ae_forward.1} parent=11 // pred_region
          _
        $region24: #{ae_forward.1} parent=11 // pred_fallthru
          _
        // Predicated region
        $region25: #{ae_forward.1} parent=11 // pred_check
          %p439 = pneg %p137
        $region26: #{ae_forward.1} parent=11 // pred_check_branch
          %441 = sbr.rel (%p439) target = $region28
        $region27: #{ae_forward.1} parent=11 // pred_region
          _
        $region28: #{ae_forward.1} parent=11 // pred_fallthru
          _
        // Predicated region
        $region29: #{ae_forward.1} parent=11 // pred_check
          %p442 = pneg %p158
        $region30: #{ae_forward.1} parent=11 // pred_check_branch
          %444 = sbr.rel (%p442) target = $region32
        $region31: #{ae_forward.1} parent=11 // pred_region
          %s446 = ssub.s32 6144, 6144
          %447 = vsyncadd [#allocation3], %s446
          %s448 = sshll.u32 [#allocation2], 4
          %s449 = int_to_ptr.vmem [resolvable:$true] %s448
          %454 = dma.hbm_to_vmem [thread:$0]  %s5, 6144, %s449, [#allocation3], 128, 128, 8
        $region32: #{ae_forward.1} parent=11 // pred_fallthru
          _
        // Predicated region
        $region33: #{ae_forward.1} parent=11 // pred_check
          %p455 = pneg %p179
        $region34: #{ae_forward.1} parent=11 // pred_check_branch
          %457 = sbr.rel (%p455) target = $region36
        $region35: #{ae_forward.1} parent=11 // pred_region
          _
        $region36: #{ae_forward.1} parent=11 // pred_fallthru
          _
        // Predicated region
        $region37: #{ae_forward.1} parent=11 // pred_check
          %p458 = pneg %p200
        $region38: #{ae_forward.1} parent=11 // pred_check_branch
          %460 = sbr.rel (%p458) target = $region40
        $region39: #{ae_forward.1} parent=11 // pred_region
          %s462 = ssub.s32 6144, 6144
          %463 = vsyncadd [#allocation5], %s462
          %s464 = sshll.u32 [#allocation4], 4
          %s465 = int_to_ptr.vmem [resolvable:$true] %s464
          %470 = dma.hbm_to_vmem [thread:$0]  %s7, 6144, %s465, [#allocation5], 128, 128, 8
        $region40: #{ae_forward.1} parent=11 // pred_fallthru
          _
        // Predicated region
        $region41: #{ae_forward.1} parent=11 // pred_check
          %p471 = pneg %p221
        $region42: #{ae_forward.1} parent=11 // pred_check_branch
          %473 = sbr.rel (%p471) target = $region44
        $region43: #{ae_forward.1} parent=11 // pred_region
          _
        $region44: #{ae_forward.1} parent=11 // pred_fallthru
          _
        // Predicated region
        $region45: #{ae_forward.1} parent=11 // pred_check
          %p474 = pneg %p242
        $region46: #{ae_forward.1} parent=11 // pred_check_branch
          %476 = sbr.rel (%p474) target = $region48
        $region47: #{ae_forward.1} parent=11 // pred_region
          %s478 = ssub.s32 6144, 6144
          %479 = vsyncadd [#allocation5], %s478
          %s480 = sshll.u32 [#allocation6], 4
          %s481 = int_to_ptr.vmem [resolvable:$true] %s480
          %486 = dma.hbm_to_vmem [thread:$0]  %s9, 6144, %s481, [#allocation5], 128, 128, 8
        $region48: #{ae_forward.1} parent=11 // pred_fallthru
          _
        // Predicated region
        $region49: #{ae_forward.1} parent=11 // pred_check
          %p487 = pneg %p263
        $region50: #{ae_forward.1} parent=11 // pred_check_branch
          %489 = sbr.rel (%p487) target = $region52
        $region51: #{ae_forward.1} parent=11 // pred_region
          _
        $region52: #{ae_forward.1} parent=11 // pred_fallthru
          _
        // Predicated region
        $region53: #{ae_forward.1} parent=11 // pred_check
          %p490 = pneg %p284
        $region54: #{ae_forward.1} parent=11 // pred_check_branch
          %492 = sbr.rel (%p490) target = $region56
        $region55: #{ae_forward.1} parent=11 // pred_region
          %s494 = ssub.s32 6144, 6144
          %495 = vsyncadd [#allocation8], %s494
          %s496 = sshll.u32 [#allocation7], 4
          %s497 = int_to_ptr.vmem [resolvable:$true] %s496
          %502 = dma.hbm_to_vmem [thread:$0]  %s11, 6144, %s497, [#allocation8], 128, 128, 8
        $region56: #{ae_forward.1} parent=11 // pred_fallthru
          _
        // Predicated region
        $region57: #{ae_forward.1} parent=11 // pred_check
          %p503 = pneg %p305
        $region58: #{ae_forward.1} parent=11 // pred_check_branch
          %505 = sbr.rel (%p503) target = $region60
        $region59: #{ae_forward.1} parent=11 // pred_region
          _
        $region60: #{ae_forward.1} parent=11 // pred_fallthru
          _
        // Predicated region
        $region61: #{ae_forward.1} parent=11 // pred_check
          %p506 = pneg %p326
        $region62: #{ae_forward.1} parent=11 // pred_check_branch
          %508 = sbr.rel (%p506) target = $region64
        $region63: #{ae_forward.1} parent=11 // pred_region
          %s510 = ssub.s32 6144, 6144
          %511 = vsyncadd [#allocation8], %s510
          %s512 = sshll.u32 [#allocation9], 4
          %s513 = int_to_ptr.vmem [resolvable:$true] %s512
          %518 = dma.hbm_to_vmem [thread:$0]  %s13, 6144, %s513, [#allocation8], 128, 128, 8
        $region64: #{ae_forward.1} parent=11 // pred_fallthru
          _
        // Predicated region
        $region65: #{ae_forward.1} parent=11 // pred_check
          %p519 = pneg %p347
        $region66: #{ae_forward.1} parent=11 // pred_check_branch
          %521 = sbr.rel (%p519) target = $region68
        $region67: #{ae_forward.1} parent=11 // pred_region
          _
        $region68: #{ae_forward.1} parent=11 // pred_fallthru
          _
        // Predicated region
        $region69: #{ae_forward.1} parent=11 // pred_check
          %p522 = pneg %p368
        $region70: #{ae_forward.1} parent=11 // pred_check_branch
          %524 = sbr.rel (%p522) target = $region72
        $region71: #{ae_forward.1} parent=11 // pred_region
          %s526 = ssub.s32 6144, 6144
          %527 = vsyncadd [#allocation11], %s526
          %s528 = sshll.u32 [#allocation10], 4
          %s529 = int_to_ptr.vmem [resolvable:$true] %s528
          %534 = dma.hbm_to_vmem [thread:$0]  %s15, 6144, %s529, [#allocation11], 128, 128, 8
        $region72: #{ae_forward.1} parent=11 // pred_fallthru
          _
        // Predicated region
        $region73: #{ae_forward.1} parent=11 // pred_check
          %p535 = pneg %p389
        $region74: #{ae_forward.1} parent=11 // pred_check_branch
          %537 = sbr.rel (%p535) target = $region76
        $region75: #{ae_forward.1} parent=11 // pred_region
          _
        $region76: #{ae_forward.1} parent=11 // pred_fallthru
          _
      $region12: #{ae_forward.1} parent=5 // pred_fallthru
        _
      %p538 = scmp.lt.s32.totalorder %s27, 2
      // Predicated region
      $region77: #{ae_forward.1} parent=5 // pred_check
        %p539 = pneg %p538
      $region78: #{ae_forward.1} parent=5 // pred_check_branch
        %541 = sbr.rel (%p539) target = $region80
      $region79: #{ae_forward.1} parent=5 // pred_region
        // Predicated region
        $region81: #{ae_forward.1} parent=79 // pred_check
          %p542 = pneg %p47
        $region82: #{ae_forward.1} parent=79 // pred_check_branch
          %544 = sbr.rel (%p542) target = $region84
        $region83: #{ae_forward.1} parent=79 // pred_region
          %s545 = smul.u32 4, %s27
          %p546 = scmp.lt.s32.totalorder %s545, 7
          %s547 = scalar_select %p546, %s545, 7
          %s548 = smul.addr %s547, 4
          %s549 = scalar_lea.vmem %s0, %s548
          %s550 = smul.u32 4, %s27
        $region84: #{ae_forward.1} parent=79 // pred_fallthru
          _
      $region80: #{ae_forward.1} parent=5 // pred_fallthru
        _
      %p551 = scmp.le.s32.totalorder 1, %s27
      %p552 = scmp.lt.s32.totalorder %s27, 3
      %p553 = pnand %p551, %p552
      %p554 = pneg %p553
      // Predicated region
      $region85: #{ae_forward.1} parent=5 // pred_check
        _
      $region86: #{ae_forward.1} parent=5 // pred_check_branch
        %556 = sbr.rel (%p553) target = $region88
      $region87: #{ae_forward.1} parent=5 // pred_region
        %s557 = ssub.s32 %s27, 1
        // Predicated region
        $region89: #{ae_forward.1} parent=87 // pred_check
          %p558 = pneg %p158
        $region90: #{ae_forward.1} parent=87 // pred_check_branch
          %560 = sbr.rel (%p558) target = $region92
        $region91: #{ae_forward.1} parent=87 // pred_region
          %561 = dma.done [#allocation3], 6144
        $region92: #{ae_forward.1} parent=87 // pred_fallthru
          _
        // Predicated region
        $region93: #{ae_forward.1} parent=87 // pred_check
          %p562 = pneg %p200
        $region94: #{ae_forward.1} parent=87 // pred_check_branch
          %564 = sbr.rel (%p562) target = $region96
        $region95: #{ae_forward.1} parent=87 // pred_region
          %565 = dma.done [#allocation5], 6144
        $region96: #{ae_forward.1} parent=87 // pred_fallthru
          _
        // Predicated region
        $region97: #{ae_forward.1} parent=87 // pred_check
          %p566 = pneg %p242
        $region98: #{ae_forward.1} parent=87 // pred_check_branch
          %568 = sbr.rel (%p566) target = $region100
        $region99: #{ae_forward.1} parent=87 // pred_region
          %569 = dma.done [#allocation5], 6144
        $region100: #{ae_forward.1} parent=87 // pred_fallthru
          _
        // Predicated region
        $region101: #{ae_forward.1} parent=87 // pred_check
          %p570 = pneg %p284
        $region102: #{ae_forward.1} parent=87 // pred_check_branch
          %572 = sbr.rel (%p570) target = $region104
        $region103: #{ae_forward.1} parent=87 // pred_region
          %573 = dma.done [#allocation8], 6144
        $region104: #{ae_forward.1} parent=87 // pred_fallthru
          _
        // Predicated region
        $region105: #{ae_forward.1} parent=87 // pred_check
          %p574 = pneg %p326
        $region106: #{ae_forward.1} parent=87 // pred_check_branch
          %576 = sbr.rel (%p574) target = $region108
        $region107: #{ae_forward.1} parent=87 // pred_region
          %577 = dma.done [#allocation8], 6144
        $region108: #{ae_forward.1} parent=87 // pred_fallthru
          _
        // Predicated region
        $region109: #{ae_forward.1} parent=87 // pred_check
          %p578 = pneg %p368
        $region110: #{ae_forward.1} parent=87 // pred_check_branch
          %580 = sbr.rel (%p578) target = $region112
        $region111: #{ae_forward.1} parent=87 // pred_region
          %581 = dma.done [#allocation11], 6144
        $region112: #{ae_forward.1} parent=87 // pred_fallthru
          _
        %s582 = smul.u32 4, %s32
        %p583 = scmp.lt.s32.totalorder %s582, 7
        %s584 = scalar_select %p583, %s582, 7
        %s585 = smul.addr %s584, 4
        %s586 = scalar_lea.vmem %s0, %s585
        %p587 = pneg %p53
        %p588 = pneg %p50
        %p589 = pneg %p74
        %p590 = pneg %p71
        %p591 = pneg %p95
        %p592 = pneg %p92
        %p593 = pneg %p116
        %p594 = pneg %p113
        %p595 = pneg %p137
        %p596 = pneg %p134
        %p597 = pneg %p158
        %p598 = pneg %p155
        %p599 = pneg %p179
        %p600 = pneg %p176
        %p601 = pneg %p200
        %p602 = pneg %p197
        %p603 = pneg %p221
        %p604 = pneg %p218
        %p605 = pneg %p242
        %p606 = pneg %p239
        %p607 = pneg %p263
        %p608 = pneg %p260
        %p609 = pneg %p284
        %p610 = pneg %p281
        %p611 = pneg %p305
        %p612 = pneg %p302
        %p613 = pneg %p326
        %p614 = pneg %p323
        %p615 = pneg %p347
        %p616 = pneg %p344
        %p617 = pneg %p368
        %p618 = pneg %p365
        %p619 = pneg %p389
        %p620 = pneg %p386
        %p621 = pneg %p415
        %p622 = pneg %p412
        %s623 = smul.u32 4, %s32
        %p624 = scmp.lt.s32.totalorder %s623, 7
        %s625 = scalar_select %p624, %s623, 7
        %s626 = smul.addr %s625, 8
        %s627 = scalar_lea.vmem %s17, %s626
        %s628 = smul.u32 4, %s32
        %p629 = scmp.lt.s32.totalorder %s628, 7
        %s630 = scalar_select %p629, %s628, 7
        %s631 = smul.addr %s630, 4
        %s632 = scalar_lea.vmem %s0, %s631
        %s633 = smul.u32 4, %s32
        %s634 = smul.u32 4, %s32
        %p635 = scmp.lt.s32.totalorder %s634, 7
        %s636 = scalar_select %p635, %s634, 7
        %s637 = smul.addr %s636, 8
        %s638 = scalar_lea.vmem %s17, %s637
        %s639 = smul.u32 4, %s32
        %v643 = vlaneseq
        %v644 = vshrl.u32 %v643, 7
        %v645 = vadd.s32 %v644, 8
        %v646 = vadd.s32 %v644, 16
        %v647 = vadd.s32 %v644, 24
        %vm648 = vcmp.lt.s32.totalorder %v644, 0
        %v649 = vsub.s32 0, %v644
        %v650 = vsel %vm648, %v649, %v644
        %v651 = vshrl.u32 %v650, 4
        %v652 = vand.u32 %v650, 15
        %v653 = vsub.s32 0, %v652
        %v654 = vsel %vm648, %v653, %v652
        %vm655 = vcmp.lt.s32.totalorder %v645, 0
        %v656 = vsub.s32 0, %v645
        %v657 = vsel %vm655, %v656, %v645
        %v658 = vshrl.u32 %v657, 4
        %v659 = vand.u32 %v657, 15
        %v660 = vsub.s32 0, %v659
        %v661 = vsel %vm655, %v660, %v659
        %vm662 = vcmp.lt.s32.totalorder %v646, 0
        %v663 = vsub.s32 0, %v646
        %v664 = vsel %vm662, %v663, %v646
        %v665 = vshrl.u32 %v664, 4
        %v666 = vand.u32 %v664, 15
        %v667 = vsub.s32 0, %v666
        %v668 = vsel %vm662, %v667, %v666
        %vm669 = vcmp.lt.s32.totalorder %v647, 0
        %v670 = vsub.s32 0, %v647
        %v671 = vsel %vm669, %v670, %v647
        %v672 = vshrl.u32 %v671, 4
        %v673 = vand.u32 %v671, 15
        %v674 = vsub.s32 0, %v673
        %v675 = vsel %vm669, %v674, %v673
        %vm676 = vcmp.ne.s32.totalorder %v654, 0
        %vm677 = vcmp.ne.s32.totalorder %v661, 0
        %vm678 = vcmp.ne.s32.totalorder %v668, 0
        %vm679 = vcmp.ne.s32.totalorder %v675, 0
        %vm680 = vcmp.lt.s32.totalorder %v654, 0
        %vm681 = vcmp.lt.s32.totalorder %v661, 0
        %vm682 = vcmp.lt.s32.totalorder %v668, 0
        %vm683 = vcmp.lt.s32.totalorder %v675, 0
        %vm684 = vmand %vm680, %vm676
        %vm685 = vmand %vm681, %vm677
        %vm686 = vmand %vm682, %vm678
        %vm687 = vmand %vm683, %vm679
        %v688 = vadd.s32 %v654, 16
        %v689 = vadd.s32 %v661, 16
        %v690 = vadd.s32 %v668, 16
        %v691 = vadd.s32 %v675, 16
        %v692 = vsel %vm684, %v688, %v654
        %v693 = vsel %vm685, %v689, %v661
        %v694 = vsel %vm686, %v690, %v668
        %v695 = vsel %vm687, %v691, %v675
        %v696 = vld [vmem:[%s632] sm:$0xf]
        %v697 = vld [vmem:[%s632 + $0x4] sm:$0xf]
        %v698 = vld [vmem:[%s632 + $0x8] sm:$0xf]
        %v699 = vld [vmem:[%s632 + $0xc] sm:$0xf]
        %s700 = scalar_lea.vmem %s1, 48
        %v701 = vld [vmem:[%s700] sm:$0xff]
        %v702 = vld [vmem:[%s700 + $0x8] sm:$0xff]
        %v703 = vld [vmem:[%s700 + $0x10] sm:$0xff]
        %v704 = vld [vmem:[%s700 + $0x18] sm:$0xff]
        %v705 = vld [vmem:[%s700 + $0x20] sm:$0xff]
        %v706 = vld [vmem:[%s700 + $0x28] sm:$0xff]
        %vm707 = vcmp.ge.s32.totalorder %v692, 1
        %vm708 = vcmp.ge.s32.totalorder %v693, 1
        %vm709 = vcmp.ge.s32.totalorder %v694, 1
        %vm710 = vcmp.ge.s32.totalorder %v695, 1
        %v715 = vunpack.c.l.b16 %v696
        %v716 = vunpack.c.l.b16 %v697
        %v717 = vunpack.c.l.b16 %v698
        %v718 = vunpack.c.l.b16 %v699
        %v719 = vpack.c.b16 %v716, %v715
        %v720 = vpack.c.b16 %v718, %v717
        %vm721 = vsmask.f32 256
        %v723 = vshrl.u32 %v719, 16
        %v725 = vrot.slane %v723, 7
        %v726 = vshll.u32 %v719, 16
        %v728 = vor.u32 %v725, %v726
        %v730 = vshrl.u32 %v720, 16
        %v732 = vrot.slane %v730, 7
        %v733 = vshll.u32 %v720, 16
        %v735 = vor.u32 %v732, %v733
        %v736 = vsel %vm721, %v725, %v735
        %vm739 = vcmask 1040384
        %vm740 = vmand %vm739, %vm721
        %v741 = vsel %vm740, 0, %v728
        %v742 = vsel %vm707, 1, 0
        %v743 = vsel %vm708, 1, 0
        %v744 = vsel %vm709, 1, 0
        %v745 = vsel %vm710, 1, 0
        %vm746 = vcmp.eq.s32.totalorder %v742, 1
        %vm747 = vcmp.eq.s32.totalorder %v743, 1
        %vm748 = vcmp.eq.s32.totalorder %v744, 1
        %vm749 = vcmp.eq.s32.totalorder %v745, 1
        %vm750 = vmpackc.low %vm746, %vm746
        %vm751 = vmpackc.low %vm747, %vm747
        %vm752 = vmpackc.low %vm748, %vm748
        %vm753 = vmpackc.low %vm749, %vm749
        %v754 = vsel %vm750, 65537, 0
        %v755 = vsel %vm751, 65537, 0
        %v756 = vsel %vm752, 65537, 0
        %v757 = vsel %vm753, 65537, 0
        %v758 = vunpack.c.l.b16 %v754
        %v759 = vunpack.c.l.b16 %v755
        %v760 = vunpack.c.l.b16 %v756
        %v761 = vunpack.c.l.b16 %v757
        %v762 = vpack.c.b16 %v759, %v758
        %v763 = vpack.c.b16 %v761, %v760
        %vm764 = vcmp.ne.s16.totalorder %v762, 0
        %vm765 = vcmp.ne.s16.totalorder %v763, 0
        %v766 = vsel %vm764, %v741, 0
        %v767 = vsel %vm765, %v736, 0
        %vm768 = vcmp.lt.s32.totalorder %v692, 15
        %vm769 = vcmp.lt.s32.totalorder %v693, 15
        %vm770 = vcmp.lt.s32.totalorder %v694, 15
        %vm771 = vcmp.lt.s32.totalorder %v695, 15
        %vm772 = vsmask.f32 7424
        %v773 = vrot.slane %v726, 1
        %v774 = vor.u32 %v723, %v773
        %v775 = vrot.slane %v733, 1
        %v776 = vsel %vm772, %v774, %v775
        %v777 = vor.u32 %v730, %v775
        %vm780 = vcmask 1047552
        %vm781 = vmand %vm780, %vm772
        %v782 = vsel %vm781, %v777, 0
        %v783 = vsel %vm768, 1, 0
        %v784 = vsel %vm769, 1, 0
        %v785 = vsel %vm770, 1, 0
        %v786 = vsel %vm771, 1, 0
        %vm787 = vcmp.eq.s32.totalorder %v783, 1
        %vm788 = vcmp.eq.s32.totalorder %v784, 1
        %vm789 = vcmp.eq.s32.totalorder %v785, 1
        %vm790 = vcmp.eq.s32.totalorder %v786, 1
        %vm791 = vmpackc.low %vm787, %vm787
        %vm792 = vmpackc.low %vm788, %vm788
        %vm793 = vmpackc.low %vm789, %vm789
        %vm794 = vmpackc.low %vm790, %vm790
        %v795 = vsel %vm791, 65537, 0
        %v796 = vsel %vm792, 65537, 0
        %v797 = vsel %vm793, 65537, 0
        %v798 = vsel %vm794, 65537, 0
        %v799 = vunpack.c.l.b16 %v795
        %v800 = vunpack.c.l.b16 %v796
        %v801 = vunpack.c.l.b16 %v797
        %v802 = vunpack.c.l.b16 %v798
        %v803 = vpack.c.b16 %v800, %v799
        %v804 = vpack.c.b16 %v802, %v801
        %vm805 = vcmp.ne.s16.totalorder %v803, 0
        %vm806 = vcmp.ne.s16.totalorder %v804, 0
        %v807 = vsel %vm805, %v776, 0
        %v808 = vsel %vm806, %v782, 0
        %v809 = vld [vmem:[%s1] sm:$0xff]
        %v810 = vld [vmem:[%s1 + $0x8] sm:$0xff]
        %v811 = vld [vmem:[%s1 + $0x10] sm:$0xff]
        %v812 = vld [vmem:[%s1 + $0x18] sm:$0xff]
        %v813 = vld [vmem:[%s1 + $0x20] sm:$0xff]
        %v814 = vld [vmem:[%s1 + $0x28] sm:$0xff]
        %v821 = vunpack.c.l.b16 %v809
        %v822 = vunpack.c.h.b16 %v809
        %v823 = vunpack.c.l.b16 %v810
        %v824 = vunpack.c.h.b16 %v810
        %v825 = vunpack.c.l.b16 %v811
        %v826 = vunpack.c.h.b16 %v811
        %v827 = vunpack.c.l.b16 %v812
        %v828 = vunpack.c.h.b16 %v812
        %v829 = vunpack.c.l.b16 %v813
        %v830 = vunpack.c.h.b16 %v813
        %v831 = vunpack.c.l.b16 %v814
        %v832 = vunpack.c.h.b16 %v814
        %v833 = vpack.c.b16 %v823, %v821
        %v834 = vpack.c.b16 %v824, %v822
        %v835 = vpack.c.b16 %v827, %v825
        %v836 = vpack.c.b16 %v828, %v826
        %v837 = vpack.c.b16 %v831, %v829
        %v838 = vpack.c.b16 %v832, %v830
        %vm845 = vcmask 392192
        %v847 = vsel %vm845, %v766, 0
        %v850 = vsel %vm845, %v767, 0
        %852 = vmatprep.subr.bf16.mxu0 0
        %853 = vmatpush1.bf16.msra.mxu0 0
        %854 = vmatprep.subr.bf16.mxu0 0
        %855 = vmatpush1.bf16.msra.mxu0 0
        %856 = vmatprep.subr.bf16.mxu0 0
        %857 = vmatpush1.bf16.msra.mxu0 0
        %858 = vmatprep.subr.bf16.mxu0 0
        %859 = vmatpush1.bf16.msra.mxu0 0
        %860 = vmatprep.subr.bf16.mxu0 0
        %861 = vmatpush1.bf16.msra.mxu0 0
        %862 = vmatprep.subr.bf16.mxu0 %v838
        %863 = vmatpush1.bf16.msra.mxu0 %v837
        %864 = vmatprep.subr.bf16.mxu0 %v836
        %865 = vmatpush1.bf16.msra.mxu0 %v835
        %866 = vmatprep.subr.bf16.mxu0 %v834
        %867 = vmatpush1.bf16.msra.mxu0 %v833
        %868 = vmatprep.subr.bf16.mxu0 0
        %869 = vmatpush2.bf16.msra.mxu0 0
        %870 = vmatprep.subr.bf16.mxu0 0
        %871 = vmatpush2.bf16.msra.mxu0 0
        %872 = vmatprep.subr.bf16.mxu0 0
        %873 = vmatpush2.bf16.msra.mxu0 0
        %874 = vmatprep.subr.bf16.mxu0 0
        %875 = vmatpush2.bf16.msra.mxu0 0
        %876 = vmatprep.subr.bf16.mxu0 0
        %877 = vmatpush2.bf16.msra.mxu0 0
        %878 = vmatprep.subr.bf16.mxu0 0
        %879 = vmatpush2.bf16.msra.mxu0 0
        %880 = vmatprep.subr.bf16.mxu0 0
        %881 = vmatpush2.bf16.msra.mxu0 0
        %882 = vmatprep.subr.bf16.mxu0 0
        %883 = vmatpush2.bf16.msra.mxu0 0
        %884 = vmatprep.mubr.bf16.mxu0 0
        %885 = vmatmul.mubr.bf16.gmra.mxu0 %v847
        %v886 = vpop.f32.mrf.mxu0
        %v887 = vadd.f32 0.0, %v886
        %v888 = vpop.f32.mrf.mxu0
        %v889 = vadd.f32 0.0, %v888
        %v890 = vpop.f32.mrf.mxu0
        %v891 = vadd.f32 0.0, %v890
        %v892 = vpop.f32.mrf.mxu0
        %v893 = vadd.f32 0.0, %v892
        %894 = vmatprep.mubr.bf16.mxu0 0
        %895 = vmatmul.mubr.bf16.gmra.mxu0 %v850
        %v896 = vpop.f32.mrf.mxu0
        %v897 = vadd.f32 0.0, %v896
        %v898 = vpop.f32.mrf.mxu0
        %v899 = vadd.f32 0.0, %v898
        %v900 = vpop.f32.mrf.mxu0
        %v901 = vadd.f32 0.0, %v900
        %v902 = vpop.f32.mrf.mxu0
        %v903 = vadd.f32 0.0, %v902
        %904 = vdwg.mxu0
        %v911 = vunpack.c.l.b16 %v701
        %v912 = vunpack.c.h.b16 %v701
        %v913 = vunpack.c.l.b16 %v702
        %v914 = vunpack.c.h.b16 %v702
        %v915 = vunpack.c.l.b16 %v703
        %v916 = vunpack.c.h.b16 %v703
        %v917 = vunpack.c.l.b16 %v704
        %v918 = vunpack.c.h.b16 %v704
        %v919 = vunpack.c.l.b16 %v705
        %v920 = vunpack.c.h.b16 %v705
        %v921 = vunpack.c.l.b16 %v706
        %v922 = vunpack.c.h.b16 %v706
        %v923 = vpack.c.b16 %v913, %v911
        %v924 = vpack.c.b16 %v914, %v912
        %v925 = vpack.c.b16 %v917, %v915
        %v926 = vpack.c.b16 %v918, %v916
        %v927 = vpack.c.b16 %v921, %v919
        %v928 = vpack.c.b16 %v922, %v920
        %v935 = vsel %vm845, %v719, 0
        %v937 = vsel %vm845, %v720, 0
        %939 = vmatprep.subr.bf16.mxu0 0
        %940 = vmatpush1.bf16.msra.mxu0 0
        %941 = vmatprep.subr.bf16.mxu0 0
        %942 = vmatpush1.bf16.msra.mxu0 0
        %943 = vmatprep.subr.bf16.mxu0 0
        %944 = vmatpush1.bf16.msra.mxu0 0
        %945 = vmatprep.subr.bf16.mxu0 0
        %946 = vmatpush1.bf16.msra.mxu0 0
        %947 = vmatprep.subr.bf16.mxu0 0
        %948 = vmatpush1.bf16.msra.mxu0 0
        %949 = vmatprep.subr.bf16.mxu0 %v928
        %950 = vmatpush1.bf16.msra.mxu0 %v927
        %951 = vmatprep.subr.bf16.mxu0 %v926
        %952 = vmatpush1.bf16.msra.mxu0 %v925
        %953 = vmatprep.subr.bf16.mxu0 %v924
        %954 = vmatpush1.bf16.msra.mxu0 %v923
        %955 = vmatprep.subr.bf16.mxu0 0
        %956 = vmatpush2.bf16.msra.mxu0 0
        %957 = vmatprep.subr.bf16.mxu0 0
        %958 = vmatpush2.bf16.msra.mxu0 0
        %959 = vmatprep.subr.bf16.mxu0 0
        %960 = vmatpush2.bf16.msra.mxu0 0
        %961 = vmatprep.subr.bf16.mxu0 0
        %962 = vmatpush2.bf16.msra.mxu0 0
        %963 = vmatprep.subr.bf16.mxu0 0
        %964 = vmatpush2.bf16.msra.mxu0 0
        %965 = vmatprep.subr.bf16.mxu0 0
        %966 = vmatpush2.bf16.msra.mxu0 0
        %967 = vmatprep.subr.bf16.mxu0 0
        %968 = vmatpush2.bf16.msra.mxu0 0
        %969 = vmatprep.subr.bf16.mxu0 0
        %970 = vmatpush2.bf16.msra.mxu0 0
        %971 = vmatprep.mubr.bf16.mxu0 0
        %972 = vmatmul.mubr.bf16.gmra.mxu0 %v935
        %v973 = vpop.f32.mrf.mxu0
        %v974 = vadd.f32 %v887, %v973
        %v975 = vpop.f32.mrf.mxu0
        %v976 = vadd.f32 %v889, %v975
        %v977 = vpop.f32.mrf.mxu0
        %v978 = vadd.f32 %v891, %v977
        %v979 = vpop.f32.mrf.mxu0
        %v980 = vadd.f32 %v893, %v979
        %981 = vmatprep.mubr.bf16.mxu0 0
        %982 = vmatmul.mubr.bf16.gmra.mxu0 %v937
        %v983 = vpop.f32.mrf.mxu0
        %v984 = vadd.f32 %v897, %v983
        %v985 = vpop.f32.mrf.mxu0
        %v986 = vadd.f32 %v899, %v985
        %v987 = vpop.f32.mrf.mxu0
        %v988 = vadd.f32 %v901, %v987
        %v989 = vpop.f32.mrf.mxu0
        %v990 = vadd.f32 %v903, %v989
        %991 = vdwg.mxu0
        %s992 = scalar_lea.vmem %s1, 96
        %v993 = vld [vmem:[%s992] sm:$0xff]
        %v994 = vld [vmem:[%s992 + $0x8] sm:$0xff]
        %v995 = vld [vmem:[%s992 + $0x10] sm:$0xff]
        %v996 = vld [vmem:[%s992 + $0x18] sm:$0xff]
        %v997 = vld [vmem:[%s992 + $0x20] sm:$0xff]
        %v998 = vld [vmem:[%s992 + $0x28] sm:$0xff]
        %v1005 = vunpack.c.l.b16 %v993
        %v1006 = vunpack.c.h.b16 %v993
        %v1007 = vunpack.c.l.b16 %v994
        %v1008 = vunpack.c.h.b16 %v994
        %v1009 = vunpack.c.l.b16 %v995
        %v1010 = vunpack.c.h.b16 %v995
        %v1011 = vunpack.c.l.b16 %v996
        %v1012 = vunpack.c.h.b16 %v996
        %v1013 = vunpack.c.l.b16 %v997
        %v1014 = vunpack.c.h.b16 %v997
        %v1015 = vunpack.c.l.b16 %v998
        %v1016 = vunpack.c.h.b16 %v998
        %v1017 = vpack.c.b16 %v1007, %v1005
        %v1018 = vpack.c.b16 %v1008, %v1006
        %v1019 = vpack.c.b16 %v1011, %v1009
        %v1020 = vpack.c.b16 %v1012, %v1010
        %v1021 = vpack.c.b16 %v1015, %v1013
        %v1022 = vpack.c.b16 %v1016, %v1014
        %v1030 = vsel %vm845, %v807, 0
        %v1033 = vsel %vm845, %v808, 0
        %1035 = vmatprep.subr.bf16.mxu0 0
        %1036 = vmatpush1.bf16.msra.mxu0 0
        %1037 = vmatprep.subr.bf16.mxu0 0
        %1038 = vmatpush1.bf16.msra.mxu0 0
        %1039 = vmatprep.subr.bf16.mxu0 0
        %1040 = vmatpush1.bf16.msra.mxu0 0
        %1041 = vmatprep.subr.bf16.mxu0 0
        %1042 = vmatpush1.bf16.msra.mxu0 0
        %1043 = vmatprep.subr.bf16.mxu0 0
        %1044 = vmatpush1.bf16.msra.mxu0 0
        %1045 = vmatprep.subr.bf16.mxu0 %v1022
        %1046 = vmatpush1.bf16.msra.mxu0 %v1021
        %1047 = vmatprep.subr.bf16.mxu0 %v1020
        %1048 = vmatpush1.bf16.msra.mxu0 %v1019
        %1049 = vmatprep.subr.bf16.mxu0 %v1018
        %1050 = vmatpush1.bf16.msra.mxu0 %v1017
        %1051 = vmatprep.subr.bf16.mxu0 0
        %1052 = vmatpush2.bf16.msra.mxu0 0
        %1053 = vmatprep.subr.bf16.mxu0 0
        %1054 = vmatpush2.bf16.msra.mxu0 0
        %1055 = vmatprep.subr.bf16.mxu0 0
        %1056 = vmatpush2.bf16.msra.mxu0 0
        %1057 = vmatprep.subr.bf16.mxu0 0
        %1058 = vmatpush2.bf16.msra.mxu0 0
        %1059 = vmatprep.subr.bf16.mxu0 0
        %1060 = vmatpush2.bf16.msra.mxu0 0
        %1061 = vmatprep.subr.bf16.mxu0 0
        %1062 = vmatpush2.bf16.msra.mxu0 0
        %1063 = vmatprep.subr.bf16.mxu0 0
        %1064 = vmatpush2.bf16.msra.mxu0 0
        %1065 = vmatprep.subr.bf16.mxu0 0
        %1066 = vmatpush2.bf16.msra.mxu0 0
        %1067 = vmatprep.mubr.bf16.mxu0 0
        %1068 = vmatmul.mubr.bf16.gmra.mxu0 %v1030
        %v1069 = vpop.f32.mrf.mxu0
        %v1070 = vadd.f32 0.0, %v1069
        %v1071 = vpop.f32.mrf.mxu0
        %v1072 = vadd.f32 0.0, %v1071
        %v1073 = vpop.f32.mrf.mxu0
        %v1074 = vadd.f32 0.0, %v1073
        %v1075 = vpop.f32.mrf.mxu0
        %v1076 = vadd.f32 0.0, %v1075
        %1077 = vmatprep.mubr.bf16.mxu0 0
        %1078 = vmatmul.mubr.bf16.gmra.mxu0 %v1033
        %v1079 = vpop.f32.mrf.mxu0
        %v1080 = vadd.f32 0.0, %v1079
        %v1081 = vpop.f32.mrf.mxu0
        %v1082 = vadd.f32 0.0, %v1081
        %v1083 = vpop.f32.mrf.mxu0
        %v1084 = vadd.f32 0.0, %v1083
        %v1085 = vpop.f32.mrf.mxu0
        %v1086 = vadd.f32 0.0, %v1085
        %1087 = vdwg.mxu0
        %v1088 = vadd.f32 %v974, %v1070
        %v1089 = vadd.f32 %v976, %v1072
        %v1090 = vadd.f32 %v978, %v1074
        %v1091 = vadd.f32 %v980, %v1076
        %v1092 = vadd.f32 %v984, %v1080
        %v1093 = vadd.f32 %v986, %v1082
        %v1094 = vadd.f32 %v988, %v1084
        %v1095 = vadd.f32 %v990, %v1086
        %v1096 = vld [vmem:[%s2] sm:$0x3]
        %v1098 = vlaneseq
        %v1099 = vshrl.u32 %v1098, 7
        %v1100 = vsub.s32 0, %v1099
        %v1101 = vrot.slane %v1096, %v1100
        %v1102 = vlaneseq
        %v1103 = vshrl.u32 %v1102, 7
        %v1104 = vsub.s32 1, %v1103
        %v1105 = vrot.slane %v1096, %v1104
        %v1108 = vadd.f32 %v1088, %v1101
        %v1109 = vadd.f32 %v1089, %v1105
        %v1110 = vadd.f32 %v1090, %v1101
        %v1111 = vadd.f32 %v1091, %v1105
        %v1112 = vadd.f32 %v1092, %v1101
        %v1113 = vadd.f32 %v1093, %v1105
        %v1114 = vadd.f32 %v1094, %v1101
        %v1115 = vadd.f32 %v1095, %v1105
        %v1116 = vmax.f32 %v1108, 0.0
        %v1117 = vmax.f32 %v1109, 0.0
        %v1118 = vmax.f32 %v1110, 0.0
        %v1119 = vmax.f32 %v1111, 0.0
        %v1120 = vmax.f32 %v1112, 0.0
        %v1121 = vmax.f32 %v1113, 0.0
        %v1122 = vmax.f32 %v1114, 0.0
        %v1123 = vmax.f32 %v1115, 0.0
        %v1124 = vmax.f32 %v1116, %v1117
        %v1125 = vmax.f32 %v1118, %v1119
        %v1126 = vmax.f32 %v1120, %v1121
        %v1127 = vmax.f32 %v1122, %v1123
        %vm1132 = vcmask 1046528
        %v1133 = vrot.slane %v1124, 1
        %v1134 = vrot.slane %v1125, 1
        %v1135 = vsel %vm1132, %v1133, %v1134
        %v1136 = vrot.slane %v1126, 1
        %v1137 = vsel %vm1132, %v1134, %v1136
        %v1138 = vrot.slane %v1127, 1
        %v1139 = vsel %vm1132, %v1136, %v1138
        %v1144 = vsel %vm1132, %v1138, 0.0
        %v1145 = vmax.f32 %v1124, %v1135
        %v1146 = vmax.f32 %v1125, %v1137
        %v1147 = vmax.f32 %v1126, %v1139
        %v1148 = vmax.f32 %v1127, %v1144
        %v1149 = vpack.c.bf16 %v1146, %v1145
        %v1150 = vpack.c.bf16 %v1148, %v1147
        %s1151 = scalar_lea.vmem %s3, 128
        %v1152 = vld [vmem:[%s1151] sm:$0xff]
        %v1153 = vld [vmem:[%s1151 + $0x8] sm:$0xff]
        %v1154 = vld [vmem:[%s1151 + $0x10] sm:$0xff]
        %v1155 = vld [vmem:[%s1151 + $0x18] sm:$0xff]
        %v1156 = vld [vmem:[%s1151 + $0x20] sm:$0xff]
        %v1157 = vld [vmem:[%s1151 + $0x28] sm:$0xff]
        %v1158 = vld [vmem:[%s1151 + $0x30] sm:$0xff]
        %v1159 = vld [vmem:[%s1151 + $0x38] sm:$0xff]
        %v1160 = vld [vmem:[%s1151 + $0x40] sm:$0xff]
        %v1161 = vld [vmem:[%s1151 + $0x48] sm:$0xff]
        %v1162 = vld [vmem:[%s1151 + $0x50] sm:$0xff]
        %v1163 = vld [vmem:[%s1151 + $0x58] sm:$0xff]
        %v1164 = vld [vmem:[%s1151 + $0x60] sm:$0xff]
        %v1165 = vld [vmem:[%s1151 + $0x68] sm:$0xff]
        %v1166 = vld [vmem:[%s1151 + $0x70] sm:$0xff]
        %v1167 = vld [vmem:[%s1151 + $0x78] sm:$0xff]
        %vm1168 = vcmp.ge.s32.totalorder %v692, 2
        %vm1169 = vcmp.ge.s32.totalorder %v693, 2
        %vm1170 = vcmp.ge.s32.totalorder %v694, 2
        %vm1171 = vcmp.ge.s32.totalorder %v695, 2
        %v1174 = vrot.slane %v1149, 7
        %v1175 = vrot.slane %v1150, 7
        %v1176 = vsel %vm739, %v1174, %v1175
        %vm1178 = vcmask 1040384
        %v1181 = vsel %vm1178, 0, %v1174
        %v1183 = vsel %vm1168, 1, 0
        %v1184 = vsel %vm1169, 1, 0
        %v1185 = vsel %vm1170, 1, 0
        %v1186 = vsel %vm1171, 1, 0
        %vm1187 = vcmp.eq.s32.totalorder %v1183, 1
        %vm1188 = vcmp.eq.s32.totalorder %v1184, 1
        %vm1189 = vcmp.eq.s32.totalorder %v1185, 1
        %vm1190 = vcmp.eq.s32.totalorder %v1186, 1
        %vm1191 = vmpackc.low %vm1187, %vm1187
        %vm1192 = vmpackc.low %vm1188, %vm1188
        %vm1193 = vmpackc.low %vm1189, %vm1189
        %vm1194 = vmpackc.low %vm1190, %vm1190
        %v1195 = vsel %vm1191, 65537, 0
        %v1196 = vsel %vm1192, 65537, 0
        %v1197 = vsel %vm1193, 65537, 0
        %v1198 = vsel %vm1194, 65537, 0
        %v1199 = vunpack.c.l.b16 %v1195
        %v1200 = vunpack.c.l.b16 %v1196
        %v1201 = vunpack.c.l.b16 %v1197
        %v1202 = vunpack.c.l.b16 %v1198
        %v1203 = vpack.c.b16 %v1200, %v1199
        %v1204 = vpack.c.b16 %v1202, %v1201
        %vm1205 = vcmp.ne.s16.totalorder %v1203, 0
        %vm1206 = vcmp.ne.s16.totalorder %v1204, 0
        %v1207 = vsel %vm1205, %v1181, 0
        %v1208 = vsel %vm1206, %v1176, 0
        %vm1209 = vcmp.lt.s32.totalorder %v692, 14
        %vm1210 = vcmp.lt.s32.totalorder %v693, 14
        %vm1211 = vcmp.lt.s32.totalorder %v694, 14
        %vm1212 = vcmp.lt.s32.totalorder %v695, 14
        %vm1213 = vcmask 1046528
        %v1214 = vrot.slane %v1149, 1
        %v1215 = vrot.slane %v1150, 1
        %v1216 = vsel %vm1213, %v1214, %v1215
        %v1219 = vsel %vm1132, %v1215, 0
        %v1221 = vsel %vm1209, 1, 0
        %v1222 = vsel %vm1210, 1, 0
        %v1223 = vsel %vm1211, 1, 0
        %v1224 = vsel %vm1212, 1, 0
        %vm1225 = vcmp.eq.s32.totalorder %v1221, 1
        %vm1226 = vcmp.eq.s32.totalorder %v1222, 1
        %vm1227 = vcmp.eq.s32.totalorder %v1223, 1
        %vm1228 = vcmp.eq.s32.totalorder %v1224, 1
        %vm1229 = vmpackc.low %vm1225, %vm1225
        %vm1230 = vmpackc.low %vm1226, %vm1226
        %vm1231 = vmpackc.low %vm1227, %vm1227
        %vm1232 = vmpackc.low %vm1228, %vm1228
        %v1233 = vsel %vm1229, 65537, 0
        %v1234 = vsel %vm1230, 65537, 0
        %v1235 = vsel %vm1231, 65537, 0
        %v1236 = vsel %vm1232, 65537, 0
        %v1237 = vunpack.c.l.b16 %v1233
        %v1238 = vunpack.c.l.b16 %v1234
        %v1239 = vunpack.c.l.b16 %v1235
        %v1240 = vunpack.c.l.b16 %v1236
        %v1241 = vpack.c.b16 %v1238, %v1237
        %v1242 = vpack.c.b16 %v1240, %v1239
        %vm1243 = vcmp.ne.s16.totalorder %v1241, 0
        %vm1244 = vcmp.ne.s16.totalorder %v1242, 0
        %v1245 = vsel %vm1243, %v1216, 0
        %v1246 = vsel %vm1244, %v1219, 0
        %v1247 = vld [vmem:[%s3] sm:$0xff]
        %v1248 = vld [vmem:[%s3 + $0x8] sm:$0xff]
        %v1249 = vld [vmem:[%s3 + $0x10] sm:$0xff]
        %v1250 = vld [vmem:[%s3 + $0x18] sm:$0xff]
        %v1251 = vld [vmem:[%s3 + $0x20] sm:$0xff]
        %v1252 = vld [vmem:[%s3 + $0x28] sm:$0xff]
        %v1253 = vld [vmem:[%s3 + $0x30] sm:$0xff]
        %v1254 = vld [vmem:[%s3 + $0x38] sm:$0xff]
        %v1255 = vld [vmem:[%s3 + $0x40] sm:$0xff]
        %v1256 = vld [vmem:[%s3 + $0x48] sm:$0xff]
        %v1257 = vld [vmem:[%s3 + $0x50] sm:$0xff]
        %v1258 = vld [vmem:[%s3 + $0x58] sm:$0xff]
        %v1259 = vld [vmem:[%s3 + $0x60] sm:$0xff]
        %v1260 = vld [vmem:[%s3 + $0x68] sm:$0xff]
        %v1261 = vld [vmem:[%s3 + $0x70] sm:$0xff]
        %v1262 = vld [vmem:[%s3 + $0x78] sm:$0xff]
        %v1279 = vunpack.c.l.b16 %v1247
        %v1280 = vunpack.c.h.b16 %v1247
        %v1281 = vunpack.c.l.b16 %v1248
        %v1282 = vunpack.c.h.b16 %v1248
        %v1283 = vunpack.c.l.b16 %v1249
        %v1284 = vunpack.c.h.b16 %v1249
        %v1285 = vunpack.c.l.b16 %v1250
        %v1286 = vunpack.c.h.b16 %v1250
        %v1287 = vunpack.c.l.b16 %v1251
        %v1288 = vunpack.c.h.b16 %v1251
        %v1289 = vunpack.c.l.b16 %v1252
        %v1290 = vunpack.c.h.b16 %v1252
        %v1291 = vunpack.c.l.b16 %v1253
        %v1292 = vunpack.c.h.b16 %v1253
        %v1293 = vunpack.c.l.b16 %v1254
        %v1294 = vunpack.c.h.b16 %v1254
        %v1295 = vunpack.c.l.b16 %v1255
        %v1296 = vunpack.c.h.b16 %v1255
        %v1297 = vunpack.c.l.b16 %v1256
        %v1298 = vunpack.c.h.b16 %v1256
        %v1299 = vunpack.c.l.b16 %v1257
        %v1300 = vunpack.c.h.b16 %v1257
        %v1301 = vunpack.c.l.b16 %v1258
        %v1302 = vunpack.c.h.b16 %v1258
        %v1303 = vunpack.c.l.b16 %v1259
        %v1304 = vunpack.c.h.b16 %v1259
        %v1305 = vunpack.c.l.b16 %v1260
        %v1306 = vunpack.c.h.b16 %v1260
        %v1307 = vunpack.c.l.b16 %v1261
        %v1308 = vunpack.c.h.b16 %v1261
        %v1309 = vunpack.c.l.b16 %v1262
        %v1310 = vunpack.c.h.b16 %v1262
        %v1311 = vpack.c.b16 %v1281, %v1279
        %v1312 = vpack.c.b16 %v1282, %v1280
        %v1313 = vpack.c.b16 %v1285, %v1283
        %v1314 = vpack.c.b16 %v1286, %v1284
        %v1315 = vpack.c.b16 %v1289, %v1287
        %v1316 = vpack.c.b16 %v1290, %v1288
        %v1317 = vpack.c.b16 %v1293, %v1291
        %v1318 = vpack.c.b16 %v1294, %v1292
        %v1319 = vpack.c.b16 %v1297, %v1295
        %v1320 = vpack.c.b16 %v1298, %v1296
        %v1321 = vpack.c.b16 %v1301, %v1299
        %v1322 = vpack.c.b16 %v1302, %v1300
        %v1323 = vpack.c.b16 %v1305, %v1303
        %v1324 = vpack.c.b16 %v1306, %v1304
        %v1325 = vpack.c.b16 %v1309, %v1307
        %v1326 = vpack.c.b16 %v1310, %v1308
        %1343 = vmatprep.subr.bf16.mxu0 %v1326
        %1344 = vmatpush1.bf16.msra.mxu0 %v1325
        %1345 = vmatprep.subr.bf16.mxu0 %v1324
        %1346 = vmatpush1.bf16.msra.mxu0 %v1323
        %1347 = vmatprep.subr.bf16.mxu0 %v1322
        %1348 = vmatpush1.bf16.msra.mxu0 %v1321
        %1349 = vmatprep.subr.bf16.mxu0 %v1320
        %1350 = vmatpush1.bf16.msra.mxu0 %v1319
        %1351 = vmatprep.subr.bf16.mxu0 %v1318
        %1352 = vmatpush1.bf16.msra.mxu0 %v1317
        %1353 = vmatprep.subr.bf16.mxu0 %v1316
        %1354 = vmatpush1.bf16.msra.mxu0 %v1315
        %1355 = vmatprep.subr.bf16.mxu0 %v1314
        %1356 = vmatpush1.bf16.msra.mxu0 %v1313
        %1357 = vmatprep.subr.bf16.mxu0 %v1312
        %1358 = vmatpush1.bf16.msra.mxu0 %v1311
        %1359 = vmatprep.subr.bf16.mxu0 0
        %1360 = vmatpush2.bf16.msra.mxu0 0
        %1361 = vmatprep.subr.bf16.mxu0 0
        %1362 = vmatpush2.bf16.msra.mxu0 0
        %1363 = vmatprep.subr.bf16.mxu0 0
        %1364 = vmatpush2.bf16.msra.mxu0 0
        %1365 = vmatprep.subr.bf16.mxu0 0
        %1366 = vmatpush2.bf16.msra.mxu0 0
        %1367 = vmatprep.subr.bf16.mxu0 0
        %1368 = vmatpush2.bf16.msra.mxu0 0
        %1369 = vmatprep.subr.bf16.mxu0 0
        %1370 = vmatpush2.bf16.msra.mxu0 0
        %1371 = vmatprep.subr.bf16.mxu0 0
        %1372 = vmatpush2.bf16.msra.mxu0 0
        %1373 = vmatprep.subr.bf16.mxu0 0
        %1374 = vmatpush2.bf16.msra.mxu0 0
        %1375 = vmatprep.mubr.bf16.mxu0 0
        %1376 = vmatmul.mubr.bf16.gmra.mxu0 %v1207
        %v1377 = vpop.f32.mrf.mxu0
        %v1378 = vadd.f32 0.0, %v1377
        %v1379 = vpop.f32.mrf.mxu0
        %v1380 = vadd.f32 0.0, %v1379
        %v1381 = vpop.f32.mrf.mxu0
        %v1382 = vadd.f32 0.0, %v1381
        %v1383 = vpop.f32.mrf.mxu0
        %v1384 = vadd.f32 0.0, %v1383
        %1385 = vmatprep.mubr.bf16.mxu0 0
        %1386 = vmatmul.mubr.bf16.gmra.mxu0 %v1208
        %v1387 = vpop.f32.mrf.mxu0
        %v1388 = vadd.f32 0.0, %v1387
        %v1389 = vpop.f32.mrf.mxu0
        %v1390 = vadd.f32 0.0, %v1389
        %v1391 = vpop.f32.mrf.mxu0
        %v1392 = vadd.f32 0.0, %v1391
        %v1393 = vpop.f32.mrf.mxu0
        %v1394 = vadd.f32 0.0, %v1393
        %1395 = vdwg.mxu0
        %v1412 = vunpack.c.l.b16 %v1152
        %v1413 = vunpack.c.h.b16 %v1152
        %v1414 = vunpack.c.l.b16 %v1153
        %v1415 = vunpack.c.h.b16 %v1153
        %v1416 = vunpack.c.l.b16 %v1154
        %v1417 = vunpack.c.h.b16 %v1154
        %v1418 = vunpack.c.l.b16 %v1155
        %v1419 = vunpack.c.h.b16 %v1155
        %v1420 = vunpack.c.l.b16 %v1156
        %v1421 = vunpack.c.h.b16 %v1156
        %v1422 = vunpack.c.l.b16 %v1157
        %v1423 = vunpack.c.h.b16 %v1157
        %v1424 = vunpack.c.l.b16 %v1158
        %v1425 = vunpack.c.h.b16 %v1158
        %v1426 = vunpack.c.l.b16 %v1159
        %v1427 = vunpack.c.h.b16 %v1159
        %v1428 = vunpack.c.l.b16 %v1160
        %v1429 = vunpack.c.h.b16 %v1160
        %v1430 = vunpack.c.l.b16 %v1161
        %v1431 = vunpack.c.h.b16 %v1161
        %v1432 = vunpack.c.l.b16 %v1162
        %v1433 = vunpack.c.h.b16 %v1162
        %v1434 = vunpack.c.l.b16 %v1163
        %v1435 = vunpack.c.h.b16 %v1163
        %v1436 = vunpack.c.l.b16 %v1164
        %v1437 = vunpack.c.h.b16 %v1164
        %v1438 = vunpack.c.l.b16 %v1165
        %v1439 = vunpack.c.h.b16 %v1165
        %v1440 = vunpack.c.l.b16 %v1166
        %v1441 = vunpack.c.h.b16 %v1166
        %v1442 = vunpack.c.l.b16 %v1167
        %v1443 = vunpack.c.h.b16 %v1167
        %v1444 = vpack.c.b16 %v1414, %v1412
        %v1445 = vpack.c.b16 %v1415, %v1413
        %v1446 = vpack.c.b16 %v1418, %v1416
        %v1447 = vpack.c.b16 %v1419, %v1417
        %v1448 = vpack.c.b16 %v1422, %v1420
        %v1449 = vpack.c.b16 %v1423, %v1421
        %v1450 = vpack.c.b16 %v1426, %v1424
        %v1451 = vpack.c.b16 %v1427, %v1425
        %v1452 = vpack.c.b16 %v1430, %v1428
        %v1453 = vpack.c.b16 %v1431, %v1429
        %v1454 = vpack.c.b16 %v1434, %v1432
        %v1455 = vpack.c.b16 %v1435, %v1433
        %v1456 = vpack.c.b16 %v1438, %v1436
        %v1457 = vpack.c.b16 %v1439, %v1437
        %v1458 = vpack.c.b16 %v1442, %v1440
        %v1459 = vpack.c.b16 %v1443, %v1441
        %1476 = vmatprep.subr.bf16.mxu0 %v1459
        %1477 = vmatpush1.bf16.msra.mxu0 %v1458
        %1478 = vmatprep.subr.bf16.mxu0 %v1457
        %1479 = vmatpush1.bf16.msra.mxu0 %v1456
        %1480 = vmatprep.subr.bf16.mxu0 %v1455
        %1481 = vmatpush1.bf16.msra.mxu0 %v1454
        %1482 = vmatprep.subr.bf16.mxu0 %v1453
        %1483 = vmatpush1.bf16.msra.mxu0 %v1452
        %1484 = vmatprep.subr.bf16.mxu0 %v1451
        %1485 = vmatpush1.bf16.msra.mxu0 %v1450
        %1486 = vmatprep.subr.bf16.mxu0 %v1449
        %1487 = vmatpush1.bf16.msra.mxu0 %v1448
        %1488 = vmatprep.subr.bf16.mxu0 %v1447
        %1489 = vmatpush1.bf16.msra.mxu0 %v1446
        %1490 = vmatprep.subr.bf16.mxu0 %v1445
        %1491 = vmatpush1.bf16.msra.mxu0 %v1444
        %1492 = vmatprep.subr.bf16.mxu0 0
        %1493 = vmatpush2.bf16.msra.mxu0 0
        %1494 = vmatprep.subr.bf16.mxu0 0
        %1495 = vmatpush2.bf16.msra.mxu0 0
        %1496 = vmatprep.subr.bf16.mxu0 0
        %1497 = vmatpush2.bf16.msra.mxu0 0
        %1498 = vmatprep.subr.bf16.mxu0 0
        %1499 = vmatpush2.bf16.msra.mxu0 0
        %1500 = vmatprep.subr.bf16.mxu0 0
        %1501 = vmatpush2.bf16.msra.mxu0 0
        %1502 = vmatprep.subr.bf16.mxu0 0
        %1503 = vmatpush2.bf16.msra.mxu0 0
        %1504 = vmatprep.subr.bf16.mxu0 0
        %1505 = vmatpush2.bf16.msra.mxu0 0
        %1506 = vmatprep.subr.bf16.mxu0 0
        %1507 = vmatpush2.bf16.msra.mxu0 0
        %1508 = vmatprep.mubr.bf16.mxu0 0
        %1509 = vmatmul.mubr.bf16.gmra.mxu0 %v1149
        %v1510 = vpop.f32.mrf.mxu0
        %v1511 = vadd.f32 %v1378, %v1510
        %v1512 = vpop.f32.mrf.mxu0
        %v1513 = vadd.f32 %v1380, %v1512
        %v1514 = vpop.f32.mrf.mxu0
        %v1515 = vadd.f32 %v1382, %v1514
        %v1516 = vpop.f32.mrf.mxu0
        %v1517 = vadd.f32 %v1384, %v1516
        %1518 = vmatprep.mubr.bf16.mxu0 0
        %1519 = vmatmul.mubr.bf16.gmra.mxu0 %v1150
        %v1520 = vpop.f32.mrf.mxu0
        %v1521 = vadd.f32 %v1388, %v1520
        %v1522 = vpop.f32.mrf.mxu0
        %v1523 = vadd.f32 %v1390, %v1522
        %v1524 = vpop.f32.mrf.mxu0
        %v1525 = vadd.f32 %v1392, %v1524
        %v1526 = vpop.f32.mrf.mxu0
        %v1527 = vadd.f32 %v1394, %v1526
        %1528 = vdwg.mxu0
        %s1529 = scalar_lea.vmem %s3, 256
        %v1530 = vld [vmem:[%s1529] sm:$0xff]
        %v1531 = vld [vmem:[%s1529 + $0x8] sm:$0xff]
        %v1532 = vld [vmem:[%s1529 + $0x10] sm:$0xff]
        %v1533 = vld [vmem:[%s1529 + $0x18] sm:$0xff]
        %v1534 = vld [vmem:[%s1529 + $0x20] sm:$0xff]
        %v1535 = vld [vmem:[%s1529 + $0x28] sm:$0xff]
        %v1536 = vld [vmem:[%s1529 + $0x30] sm:$0xff]
        %v1537 = vld [vmem:[%s1529 + $0x38] sm:$0xff]
        %v1538 = vld [vmem:[%s1529 + $0x40] sm:$0xff]
        %v1539 = vld [vmem:[%s1529 + $0x48] sm:$0xff]
        %v1540 = vld [vmem:[%s1529 + $0x50] sm:$0xff]
        %v1541 = vld [vmem:[%s1529 + $0x58] sm:$0xff]
        %v1542 = vld [vmem:[%s1529 + $0x60] sm:$0xff]
        %v1543 = vld [vmem:[%s1529 + $0x68] sm:$0xff]
        %v1544 = vld [vmem:[%s1529 + $0x70] sm:$0xff]
        %v1545 = vld [vmem:[%s1529 + $0x78] sm:$0xff]
        %v1562 = vunpack.c.l.b16 %v1530
        %v1563 = vunpack.c.h.b16 %v1530
        %v1564 = vunpack.c.l.b16 %v1531
        %v1565 = vunpack.c.h.b16 %v1531
        %v1566 = vunpack.c.l.b16 %v1532
        %v1567 = vunpack.c.h.b16 %v1532
        %v1568 = vunpack.c.l.b16 %v1533
        %v1569 = vunpack.c.h.b16 %v1533
        %v1570 = vunpack.c.l.b16 %v1534
        %v1571 = vunpack.c.h.b16 %v1534
        %v1572 = vunpack.c.l.b16 %v1535
        %v1573 = vunpack.c.h.b16 %v1535
        %v1574 = vunpack.c.l.b16 %v1536
        %v1575 = vunpack.c.h.b16 %v1536
        %v1576 = vunpack.c.l.b16 %v1537
        %v1577 = vunpack.c.h.b16 %v1537
        %v1578 = vunpack.c.l.b16 %v1538
        %v1579 = vunpack.c.h.b16 %v1538
        %v1580 = vunpack.c.l.b16 %v1539
        %v1581 = vunpack.c.h.b16 %v1539
        %v1582 = vunpack.c.l.b16 %v1540
        %v1583 = vunpack.c.h.b16 %v1540
        %v1584 = vunpack.c.l.b16 %v1541
        %v1585 = vunpack.c.h.b16 %v1541
        %v1586 = vunpack.c.l.b16 %v1542
        %v1587 = vunpack.c.h.b16 %v1542
        %v1588 = vunpack.c.l.b16 %v1543
        %v1589 = vunpack.c.h.b16 %v1543
        %v1590 = vunpack.c.l.b16 %v1544
        %v1591 = vunpack.c.h.b16 %v1544
        %v1592 = vunpack.c.l.b16 %v1545
        %v1593 = vunpack.c.h.b16 %v1545
        %v1594 = vpack.c.b16 %v1564, %v1562
        %v1595 = vpack.c.b16 %v1565, %v1563
        %v1596 = vpack.c.b16 %v1568, %v1566
        %v1597 = vpack.c.b16 %v1569, %v1567
        %v1598 = vpack.c.b16 %v1572, %v1570
        %v1599 = vpack.c.b16 %v1573, %v1571
        %v1600 = vpack.c.b16 %v1576, %v1574
        %v1601 = vpack.c.b16 %v1577, %v1575
        %v1602 = vpack.c.b16 %v1580, %v1578
        %v1603 = vpack.c.b16 %v1581, %v1579
        %v1604 = vpack.c.b16 %v1584, %v1582
        %v1605 = vpack.c.b16 %v1585, %v1583
        %v1606 = vpack.c.b16 %v1588, %v1586
        %v1607 = vpack.c.b16 %v1589, %v1587
        %v1608 = vpack.c.b16 %v1592, %v1590
        %v1609 = vpack.c.b16 %v1593, %v1591
        %1626 = vmatprep.subr.bf16.mxu0 %v1609
        %1627 = vmatpush1.bf16.msra.mxu0 %v1608
        %1628 = vmatprep.subr.bf16.mxu0 %v1607
        %1629 = vmatpush1.bf16.msra.mxu0 %v1606
        %1630 = vmatprep.subr.bf16.mxu0 %v1605
        %1631 = vmatpush1.bf16.msra.mxu0 %v1604
        %1632 = vmatprep.subr.bf16.mxu0 %v1603
        %1633 = vmatpush1.bf16.msra.mxu0 %v1602
        %1634 = vmatprep.subr.bf16.mxu0 %v1601
        %1635 = vmatpush1.bf16.msra.mxu0 %v1600
        %1636 = vmatprep.subr.bf16.mxu0 %v1599
        %1637 = vmatpush1.bf16.msra.mxu0 %v1598
        %1638 = vmatprep.subr.bf16.mxu0 %v1597
        %1639 = vmatpush1.bf16.msra.mxu0 %v1596
        %1640 = vmatprep.subr.bf16.mxu0 %v1595
        %1641 = vmatpush1.bf16.msra.mxu0 %v1594
        %1642 = vmatprep.subr.bf16.mxu0 0
        %1643 = vmatpush2.bf16.msra.mxu0 0
        %1644 = vmatprep.subr.bf16.mxu0 0
        %1645 = vmatpush2.bf16.msra.mxu0 0
        %1646 = vmatprep.subr.bf16.mxu0 0
        %1647 = vmatpush2.bf16.msra.mxu0 0
        %1648 = vmatprep.subr.bf16.mxu0 0
        %1649 = vmatpush2.bf16.msra.mxu0 0
        %1650 = vmatprep.subr.bf16.mxu0 0
        %1651 = vmatpush2.bf16.msra.mxu0 0
        %1652 = vmatprep.subr.bf16.mxu0 0
        %1653 = vmatpush2.bf16.msra.mxu0 0
        %1654 = vmatprep.subr.bf16.mxu0 0
        %1655 = vmatpush2.bf16.msra.mxu0 0
        %1656 = vmatprep.subr.bf16.mxu0 0
        %1657 = vmatpush2.bf16.msra.mxu0 0
        %1658 = vmatprep.mubr.bf16.mxu0 0
        %1659 = vmatmul.mubr.bf16.gmra.mxu0 %v1245
        %v1660 = vpop.f32.mrf.mxu0
        %v1661 = vadd.f32 0.0, %v1660
        %v1662 = vpop.f32.mrf.mxu0
        %v1663 = vadd.f32 0.0, %v1662
        %v1664 = vpop.f32.mrf.mxu0
        %v1665 = vadd.f32 0.0, %v1664
        %v1666 = vpop.f32.mrf.mxu0
        %v1667 = vadd.f32 0.0, %v1666
        %1668 = vmatprep.mubr.bf16.mxu0 0
        %1669 = vmatmul.mubr.bf16.gmra.mxu0 %v1246
        %v1670 = vpop.f32.mrf.mxu0
        %v1671 = vadd.f32 0.0, %v1670
        %v1672 = vpop.f32.mrf.mxu0
        %v1673 = vadd.f32 0.0, %v1672
        %v1674 = vpop.f32.mrf.mxu0
        %v1675 = vadd.f32 0.0, %v1674
        %v1676 = vpop.f32.mrf.mxu0
        %v1677 = vadd.f32 0.0, %v1676
        %1678 = vdwg.mxu0
        %v1679 = vadd.f32 %v1511, %v1661
        %v1680 = vadd.f32 %v1513, %v1663
        %v1681 = vadd.f32 %v1515, %v1665
        %v1682 = vadd.f32 %v1517, %v1667
        %v1683 = vadd.f32 %v1521, %v1671
        %v1684 = vadd.f32 %v1523, %v1673
        %v1685 = vadd.f32 %v1525, %v1675
        %v1686 = vadd.f32 %v1527, %v1677
        %v1687 = vld [vmem:[%s4] sm:$0x3]
        %v1689 = vlaneseq
        %v1690 = vshrl.u32 %v1689, 7
        %v1691 = vsub.s32 0, %v1690
        %v1692 = vrot.slane %v1687, %v1691
        %v1693 = vlaneseq
        %v1694 = vshrl.u32 %v1693, 7
        %v1695 = vsub.s32 1, %v1694
        %v1696 = vrot.slane %v1687, %v1695
        %v1699 = vadd.f32 %v1679, %v1692
        %v1700 = vadd.f32 %v1680, %v1696
        %v1701 = vadd.f32 %v1681, %v1692
        %v1702 = vadd.f32 %v1682, %v1696
        %v1703 = vadd.f32 %v1683, %v1692
        %v1704 = vadd.f32 %v1684, %v1696
        %v1705 = vadd.f32 %v1685, %v1692
        %v1706 = vadd.f32 %v1686, %v1696
        %v1707 = vmax.f32 %v1699, 0.0
        %v1708 = vmax.f32 %v1700, 0.0
        %v1709 = vmax.f32 %v1701, 0.0
        %v1710 = vmax.f32 %v1702, 0.0
        %v1711 = vmax.f32 %v1703, 0.0
        %v1712 = vmax.f32 %v1704, 0.0
        %v1713 = vmax.f32 %v1705, 0.0
        %v1714 = vmax.f32 %v1706, 0.0
        %v1715 = vmax.f32 %v1707, %v1708
        %v1716 = vmax.f32 %v1709, %v1710
        %v1717 = vmax.f32 %v1711, %v1712
        %v1718 = vmax.f32 %v1713, %v1714
        %vm1723 = vcmask 1045504
        %v1724 = vrot.slane %v1715, 2
        %v1725 = vrot.slane %v1716, 2
        %v1726 = vsel %vm1723, %v1724, %v1725
        %v1727 = vrot.slane %v1717, 2
        %v1728 = vsel %vm1723, %v1725, %v1727
        %v1729 = vrot.slane %v1718, 2
        %v1730 = vsel %vm1723, %v1727, %v1729
        %v1735 = vsel %vm1723, %v1729, 0.0
        %v1736 = vmax.f32 %v1715, %v1726
        %v1737 = vmax.f32 %v1716, %v1728
        %v1738 = vmax.f32 %v1717, %v1730
        %v1739 = vmax.f32 %v1718, %v1735
        %v1740 = vpack.c.bf16 %v1737, %v1736
        %v1741 = vpack.c.bf16 %v1739, %v1738
        %s1742 = scalar_lea.vmem [#allocation2], 128
        %v1743 = vld [vmem:[%s1742] sm:$0xff]
        %v1744 = vld [vmem:[%s1742 + $0x8] sm:$0xff]
        %v1745 = vld [vmem:[%s1742 + $0x10] sm:$0xff]
        %v1746 = vld [vmem:[%s1742 + $0x18] sm:$0xff]
        %v1747 = vld [vmem:[%s1742 + $0x20] sm:$0xff]
        %v1748 = vld [vmem:[%s1742 + $0x28] sm:$0xff]
        %v1749 = vld [vmem:[%s1742 + $0x30] sm:$0xff]
        %v1750 = vld [vmem:[%s1742 + $0x38] sm:$0xff]
        %v1751 = vld [vmem:[%s1742 + $0x40] sm:$0xff]
        %v1752 = vld [vmem:[%s1742 + $0x48] sm:$0xff]
        %v1753 = vld [vmem:[%s1742 + $0x50] sm:$0xff]
        %v1754 = vld [vmem:[%s1742 + $0x58] sm:$0xff]
        %v1755 = vld [vmem:[%s1742 + $0x60] sm:$0xff]
        %v1756 = vld [vmem:[%s1742 + $0x68] sm:$0xff]
        %v1757 = vld [vmem:[%s1742 + $0x70] sm:$0xff]
        %v1758 = vld [vmem:[%s1742 + $0x78] sm:$0xff]
        %vm1759 = vcmp.ge.s32.totalorder %v692, 4
        %vm1760 = vcmp.ge.s32.totalorder %v693, 4
        %vm1761 = vcmp.ge.s32.totalorder %v694, 4
        %vm1762 = vcmp.ge.s32.totalorder %v695, 4
        %vm1765 = vcmask 1041408
        %v1766 = vrot.slane %v1740, 6
        %v1767 = vrot.slane %v1741, 6
        %v1768 = vsel %vm1765, %v1766, %v1767
        %vm1770 = vcmask 1041408
        %v1772 = vsel %vm1770, 0, %v1766
        %v1774 = vsel %vm1759, 1, 0
        %v1775 = vsel %vm1760, 1, 0
        %v1776 = vsel %vm1761, 1, 0
        %v1777 = vsel %vm1762, 1, 0
        %vm1778 = vcmp.eq.s32.totalorder %v1774, 1
        %vm1779 = vcmp.eq.s32.totalorder %v1775, 1
        %vm1780 = vcmp.eq.s32.totalorder %v1776, 1
        %vm1781 = vcmp.eq.s32.totalorder %v1777, 1
        %vm1782 = vmpackc.low %vm1778, %vm1778
        %vm1783 = vmpackc.low %vm1779, %vm1779
        %vm1784 = vmpackc.low %vm1780, %vm1780
        %vm1785 = vmpackc.low %vm1781, %vm1781
        %v1786 = vsel %vm1782, 65537, 0
        %v1787 = vsel %vm1783, 65537, 0
        %v1788 = vsel %vm1784, 65537, 0
        %v1789 = vsel %vm1785, 65537, 0
        %v1790 = vunpack.c.l.b16 %v1786
        %v1791 = vunpack.c.l.b16 %v1787
        %v1792 = vunpack.c.l.b16 %v1788
        %v1793 = vunpack.c.l.b16 %v1789
        %v1794 = vpack.c.b16 %v1791, %v1790
        %v1795 = vpack.c.b16 %v1793, %v1792
        %vm1796 = vcmp.ne.s16.totalorder %v1794, 0
        %vm1797 = vcmp.ne.s16.totalorder %v1795, 0
        %v1798 = vsel %vm1796, %v1772, 0
        %v1799 = vsel %vm1797, %v1768, 0
        %vm1800 = vcmp.lt.s32.totalorder %v692, 12
        %vm1801 = vcmp.lt.s32.totalorder %v693, 12
        %vm1802 = vcmp.lt.s32.totalorder %v694, 12
        %vm1803 = vcmp.lt.s32.totalorder %v695, 12
        %vm1804 = vcmask 1045504
        %v1805 = vrot.slane %v1740, 2
        %v1806 = vrot.slane %v1741, 2
        %v1807 = vsel %vm1804, %v1805, %v1806
        %v1810 = vsel %vm1723, %v1806, 0
        %v1812 = vsel %vm1800, 1, 0
        %v1813 = vsel %vm1801, 1, 0
        %v1814 = vsel %vm1802, 1, 0
        %v1815 = vsel %vm1803, 1, 0
        %vm1816 = vcmp.eq.s32.totalorder %v1812, 1
        %vm1817 = vcmp.eq.s32.totalorder %v1813, 1
        %vm1818 = vcmp.eq.s32.totalorder %v1814, 1
        %vm1819 = vcmp.eq.s32.totalorder %v1815, 1
        %vm1820 = vmpackc.low %vm1816, %vm1816
        %vm1821 = vmpackc.low %vm1817, %vm1817
        %vm1822 = vmpackc.low %vm1818, %vm1818
        %vm1823 = vmpackc.low %vm1819, %vm1819
        %v1824 = vsel %vm1820, 65537, 0
        %v1825 = vsel %vm1821, 65537, 0
        %v1826 = vsel %vm1822, 65537, 0
        %v1827 = vsel %vm1823, 65537, 0
        %v1828 = vunpack.c.l.b16 %v1824
        %v1829 = vunpack.c.l.b16 %v1825
        %v1830 = vunpack.c.l.b16 %v1826
        %v1831 = vunpack.c.l.b16 %v1827
        %v1832 = vpack.c.b16 %v1829, %v1828
        %v1833 = vpack.c.b16 %v1831, %v1830
        %vm1834 = vcmp.ne.s16.totalorder %v1832, 0
        %vm1835 = vcmp.ne.s16.totalorder %v1833, 0
        %v1836 = vsel %vm1834, %v1807, 0
        %v1837 = vsel %vm1835, %v1810, 0
        %v1838 = vld [vmem:[#allocation2] sm:$0xff]
        %v1839 = vld [vmem:[#allocation2 + $0x8] sm:$0xff]
        %v1840 = vld [vmem:[#allocation2 + $0x10] sm:$0xff]
        %v1841 = vld [vmem:[#allocation2 + $0x18] sm:$0xff]
        %v1842 = vld [vmem:[#allocation2 + $0x20] sm:$0xff]
        %v1843 = vld [vmem:[#allocation2 + $0x28] sm:$0xff]
        %v1844 = vld [vmem:[#allocation2 + $0x30] sm:$0xff]
        %v1845 = vld [vmem:[#allocation2 + $0x38] sm:$0xff]
        %v1846 = vld [vmem:[#allocation2 + $0x40] sm:$0xff]
        %v1847 = vld [vmem:[#allocation2 + $0x48] sm:$0xff]
        %v1848 = vld [vmem:[#allocation2 + $0x50] sm:$0xff]
        %v1849 = vld [vmem:[#allocation2 + $0x58] sm:$0xff]
        %v1850 = vld [vmem:[#allocation2 + $0x60] sm:$0xff]
        %v1851 = vld [vmem:[#allocation2 + $0x68] sm:$0xff]
        %v1852 = vld [vmem:[#allocation2 + $0x70] sm:$0xff]
        %v1853 = vld [vmem:[#allocation2 + $0x78] sm:$0xff]
        %v1870 = vunpack.c.l.b16 %v1838
        %v1871 = vunpack.c.h.b16 %v1838
        %v1872 = vunpack.c.l.b16 %v1839
        %v1873 = vunpack.c.h.b16 %v1839
        %v1874 = vunpack.c.l.b16 %v1840
        %v1875 = vunpack.c.h.b16 %v1840
        %v1876 = vunpack.c.l.b16 %v1841
        %v1877 = vunpack.c.h.b16 %v1841
        %v1878 = vunpack.c.l.b16 %v1842
        %v1879 = vunpack.c.h.b16 %v1842
        %v1880 = vunpack.c.l.b16 %v1843
        %v1881 = vunpack.c.h.b16 %v1843
        %v1882 = vunpack.c.l.b16 %v1844
        %v1883 = vunpack.c.h.b16 %v1844
        %v1884 = vunpack.c.l.b16 %v1845
        %v1885 = vunpack.c.h.b16 %v1845
        %v1886 = vunpack.c.l.b16 %v1846
        %v1887 = vunpack.c.h.b16 %v1846
        %v1888 = vunpack.c.l.b16 %v1847
        %v1889 = vunpack.c.h.b16 %v1847
        %v1890 = vunpack.c.l.b16 %v1848
        %v1891 = vunpack.c.h.b16 %v1848
        %v1892 = vunpack.c.l.b16 %v1849
        %v1893 = vunpack.c.h.b16 %v1849
        %v1894 = vunpack.c.l.b16 %v1850
        %v1895 = vunpack.c.h.b16 %v1850
        %v1896 = vunpack.c.l.b16 %v1851
        %v1897 = vunpack.c.h.b16 %v1851
        %v1898 = vunpack.c.l.b16 %v1852
        %v1899 = vunpack.c.h.b16 %v1852
        %v1900 = vunpack.c.l.b16 %v1853
        %v1901 = vunpack.c.h.b16 %v1853
        %v1902 = vpack.c.b16 %v1872, %v1870
        %v1903 = vpack.c.b16 %v1873, %v1871
        %v1904 = vpack.c.b16 %v1876, %v1874
        %v1905 = vpack.c.b16 %v1877, %v1875
        %v1906 = vpack.c.b16 %v1880, %v1878
        %v1907 = vpack.c.b16 %v1881, %v1879
        %v1908 = vpack.c.b16 %v1884, %v1882
        %v1909 = vpack.c.b16 %v1885, %v1883
        %v1910 = vpack.c.b16 %v1888, %v1886
        %v1911 = vpack.c.b16 %v1889, %v1887
        %v1912 = vpack.c.b16 %v1892, %v1890
        %v1913 = vpack.c.b16 %v1893, %v1891
        %v1914 = vpack.c.b16 %v1896, %v1894
        %v1915 = vpack.c.b16 %v1897, %v1895
        %v1916 = vpack.c.b16 %v1900, %v1898
        %v1917 = vpack.c.b16 %v1901, %v1899
        %1934 = vmatprep.subr.bf16.mxu0 %v1917
        %1935 = vmatpush1.bf16.msra.mxu0 %v1916
        %1936 = vmatprep.subr.bf16.mxu0 %v1915
        %1937 = vmatpush1.bf16.msra.mxu0 %v1914
        %1938 = vmatprep.subr.bf16.mxu0 %v1913
        %1939 = vmatpush1.bf16.msra.mxu0 %v1912
        %1940 = vmatprep.subr.bf16.mxu0 %v1911
        %1941 = vmatpush1.bf16.msra.mxu0 %v1910
        %1942 = vmatprep.subr.bf16.mxu0 %v1909
        %1943 = vmatpush1.bf16.msra.mxu0 %v1908
        %1944 = vmatprep.subr.bf16.mxu0 %v1907
        %1945 = vmatpush1.bf16.msra.mxu0 %v1906
        %1946 = vmatprep.subr.bf16.mxu0 %v1905
        %1947 = vmatpush1.bf16.msra.mxu0 %v1904
        %1948 = vmatprep.subr.bf16.mxu0 %v1903
        %1949 = vmatpush1.bf16.msra.mxu0 %v1902
        %1950 = vmatprep.subr.bf16.mxu0 0
        %1951 = vmatpush2.bf16.msra.mxu0 0
        %1952 = vmatprep.subr.bf16.mxu0 0
        %1953 = vmatpush2.bf16.msra.mxu0 0
        %1954 = vmatprep.subr.bf16.mxu0 0
        %1955 = vmatpush2.bf16.msra.mxu0 0
        %1956 = vmatprep.subr.bf16.mxu0 0
        %1957 = vmatpush2.bf16.msra.mxu0 0
        %1958 = vmatprep.subr.bf16.mxu0 0
        %1959 = vmatpush2.bf16.msra.mxu0 0
        %1960 = vmatprep.subr.bf16.mxu0 0
        %1961 = vmatpush2.bf16.msra.mxu0 0
        %1962 = vmatprep.subr.bf16.mxu0 0
        %1963 = vmatpush2.bf16.msra.mxu0 0
        %1964 = vmatprep.subr.bf16.mxu0 0
        %1965 = vmatpush2.bf16.msra.mxu0 0
        %1966 = vmatprep.mubr.bf16.mxu0 0
        %1967 = vmatmul.mubr.bf16.gmra.mxu0 %v1798
        %v1968 = vpop.f32.mrf.mxu0
        %v1969 = vadd.f32 0.0, %v1968
        %v1970 = vpop.f32.mrf.mxu0
        %v1971 = vadd.f32 0.0, %v1970
        %v1972 = vpop.f32.mrf.mxu0
        %v1973 = vadd.f32 0.0, %v1972
        %v1974 = vpop.f32.mrf.mxu0
        %v1975 = vadd.f32 0.0, %v1974
        %1976 = vmatprep.mubr.bf16.mxu0 0
        %1977 = vmatmul.mubr.bf16.gmra.mxu0 %v1799
        %v1978 = vpop.f32.mrf.mxu0
        %v1979 = vadd.f32 0.0, %v1978
        %v1980 = vpop.f32.mrf.mxu0
        %v1981 = vadd.f32 0.0, %v1980
        %v1982 = vpop.f32.mrf.mxu0
        %v1983 = vadd.f32 0.0, %v1982
        %v1984 = vpop.f32.mrf.mxu0
        %v1985 = vadd.f32 0.0, %v1984
        %1986 = vdwg.mxu0
        %v2003 = vunpack.c.l.b16 %v1743
        %v2004 = vunpack.c.h.b16 %v1743
        %v2005 = vunpack.c.l.b16 %v1744
        %v2006 = vunpack.c.h.b16 %v1744
        %v2007 = vunpack.c.l.b16 %v1745
        %v2008 = vunpack.c.h.b16 %v1745
        %v2009 = vunpack.c.l.b16 %v1746
        %v2010 = vunpack.c.h.b16 %v1746
        %v2011 = vunpack.c.l.b16 %v1747
        %v2012 = vunpack.c.h.b16 %v1747
        %v2013 = vunpack.c.l.b16 %v1748
        %v2014 = vunpack.c.h.b16 %v1748
        %v2015 = vunpack.c.l.b16 %v1749
        %v2016 = vunpack.c.h.b16 %v1749
        %v2017 = vunpack.c.l.b16 %v1750
        %v2018 = vunpack.c.h.b16 %v1750
        %v2019 = vunpack.c.l.b16 %v1751
        %v2020 = vunpack.c.h.b16 %v1751
        %v2021 = vunpack.c.l.b16 %v1752
        %v2022 = vunpack.c.h.b16 %v1752
        %v2023 = vunpack.c.l.b16 %v1753
        %v2024 = vunpack.c.h.b16 %v1753
        %v2025 = vunpack.c.l.b16 %v1754
        %v2026 = vunpack.c.h.b16 %v1754
        %v2027 = vunpack.c.l.b16 %v1755
        %v2028 = vunpack.c.h.b16 %v1755
        %v2029 = vunpack.c.l.b16 %v1756
        %v2030 = vunpack.c.h.b16 %v1756
        %v2031 = vunpack.c.l.b16 %v1757
        %v2032 = vunpack.c.h.b16 %v1757
        %v2033 = vunpack.c.l.b16 %v1758
        %v2034 = vunpack.c.h.b16 %v1758
        %v2035 = vpack.c.b16 %v2005, %v2003
        %v2036 = vpack.c.b16 %v2006, %v2004
        %v2037 = vpack.c.b16 %v2009, %v2007
        %v2038 = vpack.c.b16 %v2010, %v2008
        %v2039 = vpack.c.b16 %v2013, %v2011
        %v2040 = vpack.c.b16 %v2014, %v2012
        %v2041 = vpack.c.b16 %v2017, %v2015
        %v2042 = vpack.c.b16 %v2018, %v2016
        %v2043 = vpack.c.b16 %v2021, %v2019
        %v2044 = vpack.c.b16 %v2022, %v2020
        %v2045 = vpack.c.b16 %v2025, %v2023
        %v2046 = vpack.c.b16 %v2026, %v2024
        %v2047 = vpack.c.b16 %v2029, %v2027
        %v2048 = vpack.c.b16 %v2030, %v2028
        %v2049 = vpack.c.b16 %v2033, %v2031
        %v2050 = vpack.c.b16 %v2034, %v2032
        %2067 = vmatprep.subr.bf16.mxu0 %v2050
        %2068 = vmatpush1.bf16.msra.mxu0 %v2049
        %2069 = vmatprep.subr.bf16.mxu0 %v2048
        %2070 = vmatpush1.bf16.msra.mxu0 %v2047
        %2071 = vmatprep.subr.bf16.mxu0 %v2046
        %2072 = vmatpush1.bf16.msra.mxu0 %v2045
        %2073 = vmatprep.subr.bf16.mxu0 %v2044
        %2074 = vmatpush1.bf16.msra.mxu0 %v2043
        %2075 = vmatprep.subr.bf16.mxu0 %v2042
        %2076 = vmatpush1.bf16.msra.mxu0 %v2041
        %2077 = vmatprep.subr.bf16.mxu0 %v2040
        %2078 = vmatpush1.bf16.msra.mxu0 %v2039
        %2079 = vmatprep.subr.bf16.mxu0 %v2038
        %2080 = vmatpush1.bf16.msra.mxu0 %v2037
        %2081 = vmatprep.subr.bf16.mxu0 %v2036
        %2082 = vmatpush1.bf16.msra.mxu0 %v2035
        %2083 = vmatprep.subr.bf16.mxu0 0
        %2084 = vmatpush2.bf16.msra.mxu0 0
        %2085 = vmatprep.subr.bf16.mxu0 0
        %2086 = vmatpush2.bf16.msra.mxu0 0
        %2087 = vmatprep.subr.bf16.mxu0 0
        %2088 = vmatpush2.bf16.msra.mxu0 0
        %2089 = vmatprep.subr.bf16.mxu0 0
        %2090 = vmatpush2.bf16.msra.mxu0 0
        %2091 = vmatprep.subr.bf16.mxu0 0
        %2092 = vmatpush2.bf16.msra.mxu0 0
        %2093 = vmatprep.subr.bf16.mxu0 0
        %2094 = vmatpush2.bf16.msra.mxu0 0
        %2095 = vmatprep.subr.bf16.mxu0 0
        %2096 = vmatpush2.bf16.msra.mxu0 0
        %2097 = vmatprep.subr.bf16.mxu0 0
        %2098 = vmatpush2.bf16.msra.mxu0 0
        %2099 = vmatprep.mubr.bf16.mxu0 0
        %2100 = vmatmul.mubr.bf16.gmra.mxu0 %v1740
        %v2101 = vpop.f32.mrf.mxu0
        %v2102 = vadd.f32 %v1969, %v2101
        %v2103 = vpop.f32.mrf.mxu0
        %v2104 = vadd.f32 %v1971, %v2103
        %v2105 = vpop.f32.mrf.mxu0
        %v2106 = vadd.f32 %v1973, %v2105
        %v2107 = vpop.f32.mrf.mxu0
        %v2108 = vadd.f32 %v1975, %v2107
        %2109 = vmatprep.mubr.bf16.mxu0 0
        %2110 = vmatmul.mubr.bf16.gmra.mxu0 %v1741
        %v2111 = vpop.f32.mrf.mxu0
        %v2112 = vadd.f32 %v1979, %v2111
        %v2113 = vpop.f32.mrf.mxu0
        %v2114 = vadd.f32 %v1981, %v2113
        %v2115 = vpop.f32.mrf.mxu0
        %v2116 = vadd.f32 %v1983, %v2115
        %v2117 = vpop.f32.mrf.mxu0
        %v2118 = vadd.f32 %v1985, %v2117
        %2119 = vdwg.mxu0
        %s2120 = scalar_lea.vmem [#allocation2], 256
        %v2121 = vld [vmem:[%s2120] sm:$0xff]
        %v2122 = vld [vmem:[%s2120 + $0x8] sm:$0xff]
        %v2123 = vld [vmem:[%s2120 + $0x10] sm:$0xff]
        %v2124 = vld [vmem:[%s2120 + $0x18] sm:$0xff]
        %v2125 = vld [vmem:[%s2120 + $0x20] sm:$0xff]
        %v2126 = vld [vmem:[%s2120 + $0x28] sm:$0xff]
        %v2127 = vld [vmem:[%s2120 + $0x30] sm:$0xff]
        %v2128 = vld [vmem:[%s2120 + $0x38] sm:$0xff]
        %v2129 = vld [vmem:[%s2120 + $0x40] sm:$0xff]
        %v2130 = vld [vmem:[%s2120 + $0x48] sm:$0xff]
        %v2131 = vld [vmem:[%s2120 + $0x50] sm:$0xff]
        %v2132 = vld [vmem:[%s2120 + $0x58] sm:$0xff]
        %v2133 = vld [vmem:[%s2120 + $0x60] sm:$0xff]
        %v2134 = vld [vmem:[%s2120 + $0x68] sm:$0xff]
        %v2135 = vld [vmem:[%s2120 + $0x70] sm:$0xff]
        %v2136 = vld [vmem:[%s2120 + $0x78] sm:$0xff]
        %v2153 = vunpack.c.l.b16 %v2121
        %v2154 = vunpack.c.h.b16 %v2121
        %v2155 = vunpack.c.l.b16 %v2122
        %v2156 = vunpack.c.h.b16 %v2122
        %v2157 = vunpack.c.l.b16 %v2123
        %v2158 = vunpack.c.h.b16 %v2123
        %v2159 = vunpack.c.l.b16 %v2124
        %v2160 = vunpack.c.h.b16 %v2124
        %v2161 = vunpack.c.l.b16 %v2125
        %v2162 = vunpack.c.h.b16 %v2125
        %v2163 = vunpack.c.l.b16 %v2126
        %v2164 = vunpack.c.h.b16 %v2126
        %v2165 = vunpack.c.l.b16 %v2127
        %v2166 = vunpack.c.h.b16 %v2127
        %v2167 = vunpack.c.l.b16 %v2128
        %v2168 = vunpack.c.h.b16 %v2128
        %v2169 = vunpack.c.l.b16 %v2129
        %v2170 = vunpack.c.h.b16 %v2129
        %v2171 = vunpack.c.l.b16 %v2130
        %v2172 = vunpack.c.h.b16 %v2130
        %v2173 = vunpack.c.l.b16 %v2131
        %v2174 = vunpack.c.h.b16 %v2131
        %v2175 = vunpack.c.l.b16 %v2132
        %v2176 = vunpack.c.h.b16 %v2132
        %v2177 = vunpack.c.l.b16 %v2133
        %v2178 = vunpack.c.h.b16 %v2133
        %v2179 = vunpack.c.l.b16 %v2134
        %v2180 = vunpack.c.h.b16 %v2134
        %v2181 = vunpack.c.l.b16 %v2135
        %v2182 = vunpack.c.h.b16 %v2135
        %v2183 = vunpack.c.l.b16 %v2136
        %v2184 = vunpack.c.h.b16 %v2136
        %v2185 = vpack.c.b16 %v2155, %v2153
        %v2186 = vpack.c.b16 %v2156, %v2154
        %v2187 = vpack.c.b16 %v2159, %v2157
        %v2188 = vpack.c.b16 %v2160, %v2158
        %v2189 = vpack.c.b16 %v2163, %v2161
        %v2190 = vpack.c.b16 %v2164, %v2162
        %v2191 = vpack.c.b16 %v2167, %v2165
        %v2192 = vpack.c.b16 %v2168, %v2166
        %v2193 = vpack.c.b16 %v2171, %v2169
        %v2194 = vpack.c.b16 %v2172, %v2170
        %v2195 = vpack.c.b16 %v2175, %v2173
        %v2196 = vpack.c.b16 %v2176, %v2174
        %v2197 = vpack.c.b16 %v2179, %v2177
        %v2198 = vpack.c.b16 %v2180, %v2178
        %v2199 = vpack.c.b16 %v2183, %v2181
        %v2200 = vpack.c.b16 %v2184, %v2182
        %2217 = vmatprep.subr.bf16.mxu0 %v2200
        %2218 = vmatpush1.bf16.msra.mxu0 %v2199
        %2219 = vmatprep.subr.bf16.mxu0 %v2198
        %2220 = vmatpush1.bf16.msra.mxu0 %v2197
        %2221 = vmatprep.subr.bf16.mxu0 %v2196
        %2222 = vmatpush1.bf16.msra.mxu0 %v2195
        %2223 = vmatprep.subr.bf16.mxu0 %v2194
        %2224 = vmatpush1.bf16.msra.mxu0 %v2193
        %2225 = vmatprep.subr.bf16.mxu0 %v2192
        %2226 = vmatpush1.bf16.msra.mxu0 %v2191
        %2227 = vmatprep.subr.bf16.mxu0 %v2190
        %2228 = vmatpush1.bf16.msra.mxu0 %v2189
        %2229 = vmatprep.subr.bf16.mxu0 %v2188
        %2230 = vmatpush1.bf16.msra.mxu0 %v2187
        %2231 = vmatprep.subr.bf16.mxu0 %v2186
        %2232 = vmatpush1.bf16.msra.mxu0 %v2185
        %2233 = vmatprep.subr.bf16.mxu0 0
        %2234 = vmatpush2.bf16.msra.mxu0 0
        %2235 = vmatprep.subr.bf16.mxu0 0
        %2236 = vmatpush2.bf16.msra.mxu0 0
        %2237 = vmatprep.subr.bf16.mxu0 0
        %2238 = vmatpush2.bf16.msra.mxu0 0
        %2239 = vmatprep.subr.bf16.mxu0 0
        %2240 = vmatpush2.bf16.msra.mxu0 0
        %2241 = vmatprep.subr.bf16.mxu0 0
        %2242 = vmatpush2.bf16.msra.mxu0 0
        %2243 = vmatprep.subr.bf16.mxu0 0
        %2244 = vmatpush2.bf16.msra.mxu0 0
        %2245 = vmatprep.subr.bf16.mxu0 0
        %2246 = vmatpush2.bf16.msra.mxu0 0
        %2247 = vmatprep.subr.bf16.mxu0 0
        %2248 = vmatpush2.bf16.msra.mxu0 0
        %2249 = vmatprep.mubr.bf16.mxu0 0
        %2250 = vmatmul.mubr.bf16.gmra.mxu0 %v1836
        %v2251 = vpop.f32.mrf.mxu0
        %v2252 = vadd.f32 0.0, %v2251
        %v2253 = vpop.f32.mrf.mxu0
        %v2254 = vadd.f32 0.0, %v2253
        %v2255 = vpop.f32.mrf.mxu0
        %v2256 = vadd.f32 0.0, %v2255
        %v2257 = vpop.f32.mrf.mxu0
        %v2258 = vadd.f32 0.0, %v2257
        %2259 = vmatprep.mubr.bf16.mxu0 0
        %2260 = vmatmul.mubr.bf16.gmra.mxu0 %v1837
        %v2261 = vpop.f32.mrf.mxu0
        %v2262 = vadd.f32 0.0, %v2261
        %v2263 = vpop.f32.mrf.mxu0
        %v2264 = vadd.f32 0.0, %v2263
        %v2265 = vpop.f32.mrf.mxu0
        %v2266 = vadd.f32 0.0, %v2265
        %v2267 = vpop.f32.mrf.mxu0
        %v2268 = vadd.f32 0.0, %v2267
        %2269 = vdwg.mxu0
        %v2270 = vadd.f32 %v2102, %v2252
        %v2271 = vadd.f32 %v2104, %v2254
        %v2272 = vadd.f32 %v2106, %v2256
        %v2273 = vadd.f32 %v2108, %v2258
        %v2274 = vadd.f32 %v2112, %v2262
        %v2275 = vadd.f32 %v2114, %v2264
        %v2276 = vadd.f32 %v2116, %v2266
        %v2277 = vadd.f32 %v2118, %v2268
        %v2278 = vld [vmem:[%s6] sm:$0x3]
        %v2280 = vlaneseq
        %v2281 = vshrl.u32 %v2280, 7
        %v2282 = vsub.s32 0, %v2281
        %v2283 = vrot.slane %v2278, %v2282
        %v2284 = vlaneseq
        %v2285 = vshrl.u32 %v2284, 7
        %v2286 = vsub.s32 1, %v2285
        %v2287 = vrot.slane %v2278, %v2286
        %v2290 = vadd.f32 %v2270, %v2283
        %v2291 = vadd.f32 %v2271, %v2287
        %v2292 = vadd.f32 %v2272, %v2283
        %v2293 = vadd.f32 %v2273, %v2287
        %v2294 = vadd.f32 %v2274, %v2283
        %v2295 = vadd.f32 %v2275, %v2287
        %v2296 = vadd.f32 %v2276, %v2283
        %v2297 = vadd.f32 %v2277, %v2287
        %v2298 = vmax.f32 %v2290, 0.0
        %v2299 = vmax.f32 %v2291, 0.0
        %v2300 = vmax.f32 %v2292, 0.0
        %v2301 = vmax.f32 %v2293, 0.0
        %v2302 = vmax.f32 %v2294, 0.0
        %v2303 = vmax.f32 %v2295, 0.0
        %v2304 = vmax.f32 %v2296, 0.0
        %v2305 = vmax.f32 %v2297, 0.0
        %v2306 = vmax.f32 %v2298, %v2299
        %v2307 = vmax.f32 %v2300, %v2301
        %v2308 = vmax.f32 %v2302, %v2303
        %v2309 = vmax.f32 %v2304, %v2305
        %vm2314 = vcmask 1043456
        %v2315 = vrot.slane %v2306, 4
        %v2316 = vrot.slane %v2307, 4
        %v2317 = vsel %vm2314, %v2315, %v2316
        %v2318 = vrot.slane %v2308, 4
        %v2319 = vsel %vm2314, %v2316, %v2318
        %v2320 = vrot.slane %v2309, 4
        %v2321 = vsel %vm2314, %v2318, %v2320
        %v2326 = vsel %vm2314, %v2320, 0.0
        %v2327 = vmax.f32 %v2306, %v2317
        %v2328 = vmax.f32 %v2307, %v2319
        %v2329 = vmax.f32 %v2308, %v2321
        %v2330 = vmax.f32 %v2309, %v2326
        %v2331 = vpack.c.bf16 %v2328, %v2327
        %v2332 = vpack.c.bf16 %v2330, %v2329
        %s2333 = scalar_lea.vmem [#allocation4], 128
        %v2334 = vld [vmem:[%s2333] sm:$0xff]
        %v2335 = vld [vmem:[%s2333 + $0x8] sm:$0xff]
        %v2336 = vld [vmem:[%s2333 + $0x10] sm:$0xff]
        %v2337 = vld [vmem:[%s2333 + $0x18] sm:$0xff]
        %v2338 = vld [vmem:[%s2333 + $0x20] sm:$0xff]
        %v2339 = vld [vmem:[%s2333 + $0x28] sm:$0xff]
        %v2340 = vld [vmem:[%s2333 + $0x30] sm:$0xff]
        %v2341 = vld [vmem:[%s2333 + $0x38] sm:$0xff]
        %v2342 = vld [vmem:[%s2333 + $0x40] sm:$0xff]
        %v2343 = vld [vmem:[%s2333 + $0x48] sm:$0xff]
        %v2344 = vld [vmem:[%s2333 + $0x50] sm:$0xff]
        %v2345 = vld [vmem:[%s2333 + $0x58] sm:$0xff]
        %v2346 = vld [vmem:[%s2333 + $0x60] sm:$0xff]
        %v2347 = vld [vmem:[%s2333 + $0x68] sm:$0xff]
        %v2348 = vld [vmem:[%s2333 + $0x70] sm:$0xff]
        %v2349 = vld [vmem:[%s2333 + $0x78] sm:$0xff]
        %vm2350 = vcmp.ge.s32.totalorder %v692, 8
        %vm2351 = vcmp.ge.s32.totalorder %v693, 8
        %vm2352 = vcmp.ge.s32.totalorder %v694, 8
        %vm2353 = vcmp.ge.s32.totalorder %v695, 8
        %vm2356 = vcmask 1043456
        %v2357 = vrot.slane %v2331, 4
        %v2358 = vrot.slane %v2332, 4
        %v2359 = vsel %vm2356, %v2357, %v2358
        %v2362 = vsel %vm2314, 0, %v2357
        %v2364 = vsel %vm2350, 1, 0
        %v2365 = vsel %vm2351, 1, 0
        %v2366 = vsel %vm2352, 1, 0
        %v2367 = vsel %vm2353, 1, 0
        %vm2368 = vcmp.eq.s32.totalorder %v2364, 1
        %vm2369 = vcmp.eq.s32.totalorder %v2365, 1
        %vm2370 = vcmp.eq.s32.totalorder %v2366, 1
        %vm2371 = vcmp.eq.s32.totalorder %v2367, 1
        %vm2372 = vmpackc.low %vm2368, %vm2368
        %vm2373 = vmpackc.low %vm2369, %vm2369
        %vm2374 = vmpackc.low %vm2370, %vm2370
        %vm2375 = vmpackc.low %vm2371, %vm2371
        %v2376 = vsel %vm2372, 65537, 0
        %v2377 = vsel %vm2373, 65537, 0
        %v2378 = vsel %vm2374, 65537, 0
        %v2379 = vsel %vm2375, 65537, 0
        %v2380 = vunpack.c.l.b16 %v2376
        %v2381 = vunpack.c.l.b16 %v2377
        %v2382 = vunpack.c.l.b16 %v2378
        %v2383 = vunpack.c.l.b16 %v2379
        %v2384 = vpack.c.b16 %v2381, %v2380
        %v2385 = vpack.c.b16 %v2383, %v2382
        %vm2386 = vcmp.ne.s16.totalorder %v2384, 0
        %vm2387 = vcmp.ne.s16.totalorder %v2385, 0
        %v2388 = vsel %vm2386, %v2362, 0
        %v2389 = vsel %vm2387, %v2359, 0
        %vm2390 = vcmp.lt.s32.totalorder %v692, 8
        %vm2391 = vcmp.lt.s32.totalorder %v693, 8
        %vm2392 = vcmp.lt.s32.totalorder %v694, 8
        %vm2393 = vcmp.lt.s32.totalorder %v695, 8
        %v2395 = vsel %vm2314, %v2358, 0
        %v2397 = vsel %vm2390, 1, 0
        %v2398 = vsel %vm2391, 1, 0
        %v2399 = vsel %vm2392, 1, 0
        %v2400 = vsel %vm2393, 1, 0
        %vm2401 = vcmp.eq.s32.totalorder %v2397, 1
        %vm2402 = vcmp.eq.s32.totalorder %v2398, 1
        %vm2403 = vcmp.eq.s32.totalorder %v2399, 1
        %vm2404 = vcmp.eq.s32.totalorder %v2400, 1
        %vm2405 = vmpackc.low %vm2401, %vm2401
        %vm2406 = vmpackc.low %vm2402, %vm2402
        %vm2407 = vmpackc.low %vm2403, %vm2403
        %vm2408 = vmpackc.low %vm2404, %vm2404
        %v2409 = vsel %vm2405, 65537, 0
        %v2410 = vsel %vm2406, 65537, 0
        %v2411 = vsel %vm2407, 65537, 0
        %v2412 = vsel %vm2408, 65537, 0
        %v2413 = vunpack.c.l.b16 %v2409
        %v2414 = vunpack.c.l.b16 %v2410
        %v2415 = vunpack.c.l.b16 %v2411
        %v2416 = vunpack.c.l.b16 %v2412
        %v2417 = vpack.c.b16 %v2414, %v2413
        %v2418 = vpack.c.b16 %v2416, %v2415
        %vm2419 = vcmp.ne.s16.totalorder %v2417, 0
        %vm2420 = vcmp.ne.s16.totalorder %v2418, 0
        %v2421 = vsel %vm2419, %v2359, 0
        %v2422 = vsel %vm2420, %v2395, 0
        %v2423 = vld [vmem:[#allocation4] sm:$0xff]
        %v2424 = vld [vmem:[#allocation4 + $0x8] sm:$0xff]
        %v2425 = vld [vmem:[#allocation4 + $0x10] sm:$0xff]
        %v2426 = vld [vmem:[#allocation4 + $0x18] sm:$0xff]
        %v2427 = vld [vmem:[#allocation4 + $0x20] sm:$0xff]
        %v2428 = vld [vmem:[#allocation4 + $0x28] sm:$0xff]
        %v2429 = vld [vmem:[#allocation4 + $0x30] sm:$0xff]
        %v2430 = vld [vmem:[#allocation4 + $0x38] sm:$0xff]
        %v2431 = vld [vmem:[#allocation4 + $0x40] sm:$0xff]
        %v2432 = vld [vmem:[#allocation4 + $0x48] sm:$0xff]
        %v2433 = vld [vmem:[#allocation4 + $0x50] sm:$0xff]
        %v2434 = vld [vmem:[#allocation4 + $0x58] sm:$0xff]
        %v2435 = vld [vmem:[#allocation4 + $0x60] sm:$0xff]
        %v2436 = vld [vmem:[#allocation4 + $0x68] sm:$0xff]
        %v2437 = vld [vmem:[#allocation4 + $0x70] sm:$0xff]
        %v2438 = vld [vmem:[#allocation4 + $0x78] sm:$0xff]
        %v2455 = vunpack.c.l.b16 %v2423
        %v2456 = vunpack.c.h.b16 %v2423
        %v2457 = vunpack.c.l.b16 %v2424
        %v2458 = vunpack.c.h.b16 %v2424
        %v2459 = vunpack.c.l.b16 %v2425
        %v2460 = vunpack.c.h.b16 %v2425
        %v2461 = vunpack.c.l.b16 %v2426
        %v2462 = vunpack.c.h.b16 %v2426
        %v2463 = vunpack.c.l.b16 %v2427
        %v2464 = vunpack.c.h.b16 %v2427
        %v2465 = vunpack.c.l.b16 %v2428
        %v2466 = vunpack.c.h.b16 %v2428
        %v2467 = vunpack.c.l.b16 %v2429
        %v2468 = vunpack.c.h.b16 %v2429
        %v2469 = vunpack.c.l.b16 %v2430
        %v2470 = vunpack.c.h.b16 %v2430
        %v2471 = vunpack.c.l.b16 %v2431
        %v2472 = vunpack.c.h.b16 %v2431
        %v2473 = vunpack.c.l.b16 %v2432
        %v2474 = vunpack.c.h.b16 %v2432
        %v2475 = vunpack.c.l.b16 %v2433
        %v2476 = vunpack.c.h.b16 %v2433
        %v2477 = vunpack.c.l.b16 %v2434
        %v2478 = vunpack.c.h.b16 %v2434
        %v2479 = vunpack.c.l.b16 %v2435
        %v2480 = vunpack.c.h.b16 %v2435
        %v2481 = vunpack.c.l.b16 %v2436
        %v2482 = vunpack.c.h.b16 %v2436
        %v2483 = vunpack.c.l.b16 %v2437
        %v2484 = vunpack.c.h.b16 %v2437
        %v2485 = vunpack.c.l.b16 %v2438
        %v2486 = vunpack.c.h.b16 %v2438
        %v2487 = vpack.c.b16 %v2457, %v2455
        %v2488 = vpack.c.b16 %v2458, %v2456
        %v2489 = vpack.c.b16 %v2461, %v2459
        %v2490 = vpack.c.b16 %v2462, %v2460
        %v2491 = vpack.c.b16 %v2465, %v2463
        %v2492 = vpack.c.b16 %v2466, %v2464
        %v2493 = vpack.c.b16 %v2469, %v2467
        %v2494 = vpack.c.b16 %v2470, %v2468
        %v2495 = vpack.c.b16 %v2473, %v2471
        %v2496 = vpack.c.b16 %v2474, %v2472
        %v2497 = vpack.c.b16 %v2477, %v2475
        %v2498 = vpack.c.b16 %v2478, %v2476
        %v2499 = vpack.c.b16 %v2481, %v2479
        %v2500 = vpack.c.b16 %v2482, %v2480
        %v2501 = vpack.c.b16 %v2485, %v2483
        %v2502 = vpack.c.b16 %v2486, %v2484
        %2519 = vmatprep.subr.bf16.mxu0 %v2502
        %2520 = vmatpush1.bf16.msra.mxu0 %v2501
        %2521 = vmatprep.subr.bf16.mxu0 %v2500
        %2522 = vmatpush1.bf16.msra.mxu0 %v2499
        %2523 = vmatprep.subr.bf16.mxu0 %v2498
        %2524 = vmatpush1.bf16.msra.mxu0 %v2497
        %2525 = vmatprep.subr.bf16.mxu0 %v2496
        %2526 = vmatpush1.bf16.msra.mxu0 %v2495
        %2527 = vmatprep.subr.bf16.mxu0 %v2494
        %2528 = vmatpush1.bf16.msra.mxu0 %v2493
        %2529 = vmatprep.subr.bf16.mxu0 %v2492
        %2530 = vmatpush1.bf16.msra.mxu0 %v2491
        %2531 = vmatprep.subr.bf16.mxu0 %v2490
        %2532 = vmatpush1.bf16.msra.mxu0 %v2489
        %2533 = vmatprep.subr.bf16.mxu0 %v2488
        %2534 = vmatpush1.bf16.msra.mxu0 %v2487
        %2535 = vmatprep.subr.bf16.mxu0 0
        %2536 = vmatpush2.bf16.msra.mxu0 0
        %2537 = vmatprep.subr.bf16.mxu0 0
        %2538 = vmatpush2.bf16.msra.mxu0 0
        %2539 = vmatprep.subr.bf16.mxu0 0
        %2540 = vmatpush2.bf16.msra.mxu0 0
        %2541 = vmatprep.subr.bf16.mxu0 0
        %2542 = vmatpush2.bf16.msra.mxu0 0
        %2543 = vmatprep.subr.bf16.mxu0 0
        %2544 = vmatpush2.bf16.msra.mxu0 0
        %2545 = vmatprep.subr.bf16.mxu0 0
        %2546 = vmatpush2.bf16.msra.mxu0 0
        %2547 = vmatprep.subr.bf16.mxu0 0
        %2548 = vmatpush2.bf16.msra.mxu0 0
        %2549 = vmatprep.subr.bf16.mxu0 0
        %2550 = vmatpush2.bf16.msra.mxu0 0
        %2551 = vmatprep.mubr.bf16.mxu0 0
        %2552 = vmatmul.mubr.bf16.gmra.mxu0 %v2388
        %v2553 = vpop.f32.mrf.mxu0
        %v2554 = vadd.f32 0.0, %v2553
        %v2555 = vpop.f32.mrf.mxu0
        %v2556 = vadd.f32 0.0, %v2555
        %v2557 = vpop.f32.mrf.mxu0
        %v2558 = vadd.f32 0.0, %v2557
        %v2559 = vpop.f32.mrf.mxu0
        %v2560 = vadd.f32 0.0, %v2559
        %2561 = vmatprep.mubr.bf16.mxu0 0
        %2562 = vmatmul.mubr.bf16.gmra.mxu0 %v2389
        %v2563 = vpop.f32.mrf.mxu0
        %v2564 = vadd.f32 0.0, %v2563
        %v2565 = vpop.f32.mrf.mxu0
        %v2566 = vadd.f32 0.0, %v2565
        %v2567 = vpop.f32.mrf.mxu0
        %v2568 = vadd.f32 0.0, %v2567
        %v2569 = vpop.f32.mrf.mxu0
        %v2570 = vadd.f32 0.0, %v2569
        %2571 = vdwg.mxu0
        %v2588 = vunpack.c.l.b16 %v2334
        %v2589 = vunpack.c.h.b16 %v2334
        %v2590 = vunpack.c.l.b16 %v2335
        %v2591 = vunpack.c.h.b16 %v2335
        %v2592 = vunpack.c.l.b16 %v2336
        %v2593 = vunpack.c.h.b16 %v2336
        %v2594 = vunpack.c.l.b16 %v2337
        %v2595 = vunpack.c.h.b16 %v2337
        %v2596 = vunpack.c.l.b16 %v2338
        %v2597 = vunpack.c.h.b16 %v2338
        %v2598 = vunpack.c.l.b16 %v2339
        %v2599 = vunpack.c.h.b16 %v2339
        %v2600 = vunpack.c.l.b16 %v2340
        %v2601 = vunpack.c.h.b16 %v2340
        %v2602 = vunpack.c.l.b16 %v2341
        %v2603 = vunpack.c.h.b16 %v2341
        %v2604 = vunpack.c.l.b16 %v2342
        %v2605 = vunpack.c.h.b16 %v2342
        %v2606 = vunpack.c.l.b16 %v2343
        %v2607 = vunpack.c.h.b16 %v2343
        %v2608 = vunpack.c.l.b16 %v2344
        %v2609 = vunpack.c.h.b16 %v2344
        %v2610 = vunpack.c.l.b16 %v2345
        %v2611 = vunpack.c.h.b16 %v2345
        %v2612 = vunpack.c.l.b16 %v2346
        %v2613 = vunpack.c.h.b16 %v2346
        %v2614 = vunpack.c.l.b16 %v2347
        %v2615 = vunpack.c.h.b16 %v2347
        %v2616 = vunpack.c.l.b16 %v2348
        %v2617 = vunpack.c.h.b16 %v2348
        %v2618 = vunpack.c.l.b16 %v2349
        %v2619 = vunpack.c.h.b16 %v2349
        %v2620 = vpack.c.b16 %v2590, %v2588
        %v2621 = vpack.c.b16 %v2591, %v2589
        %v2622 = vpack.c.b16 %v2594, %v2592
        %v2623 = vpack.c.b16 %v2595, %v2593
        %v2624 = vpack.c.b16 %v2598, %v2596
        %v2625 = vpack.c.b16 %v2599, %v2597
        %v2626 = vpack.c.b16 %v2602, %v2600
        %v2627 = vpack.c.b16 %v2603, %v2601
        %v2628 = vpack.c.b16 %v2606, %v2604
        %v2629 = vpack.c.b16 %v2607, %v2605
        %v2630 = vpack.c.b16 %v2610, %v2608
        %v2631 = vpack.c.b16 %v2611, %v2609
        %v2632 = vpack.c.b16 %v2614, %v2612
        %v2633 = vpack.c.b16 %v2615, %v2613
        %v2634 = vpack.c.b16 %v2618, %v2616
        %v2635 = vpack.c.b16 %v2619, %v2617
        %2652 = vmatprep.subr.bf16.mxu0 %v2635
        %2653 = vmatpush1.bf16.msra.mxu0 %v2634
        %2654 = vmatprep.subr.bf16.mxu0 %v2633
        %2655 = vmatpush1.bf16.msra.mxu0 %v2632
        %2656 = vmatprep.subr.bf16.mxu0 %v2631
        %2657 = vmatpush1.bf16.msra.mxu0 %v2630
        %2658 = vmatprep.subr.bf16.mxu0 %v2629
        %2659 = vmatpush1.bf16.msra.mxu0 %v2628
        %2660 = vmatprep.subr.bf16.mxu0 %v2627
        %2661 = vmatpush1.bf16.msra.mxu0 %v2626
        %2662 = vmatprep.subr.bf16.mxu0 %v2625
        %2663 = vmatpush1.bf16.msra.mxu0 %v2624
        %2664 = vmatprep.subr.bf16.mxu0 %v2623
        %2665 = vmatpush1.bf16.msra.mxu0 %v2622
        %2666 = vmatprep.subr.bf16.mxu0 %v2621
        %2667 = vmatpush1.bf16.msra.mxu0 %v2620
        %2668 = vmatprep.subr.bf16.mxu0 0
        %2669 = vmatpush2.bf16.msra.mxu0 0
        %2670 = vmatprep.subr.bf16.mxu0 0
        %2671 = vmatpush2.bf16.msra.mxu0 0
        %2672 = vmatprep.subr.bf16.mxu0 0
        %2673 = vmatpush2.bf16.msra.mxu0 0
        %2674 = vmatprep.subr.bf16.mxu0 0
        %2675 = vmatpush2.bf16.msra.mxu0 0
        %2676 = vmatprep.subr.bf16.mxu0 0
        %2677 = vmatpush2.bf16.msra.mxu0 0
        %2678 = vmatprep.subr.bf16.mxu0 0
        %2679 = vmatpush2.bf16.msra.mxu0 0
        %2680 = vmatprep.subr.bf16.mxu0 0
        %2681 = vmatpush2.bf16.msra.mxu0 0
        %2682 = vmatprep.subr.bf16.mxu0 0
        %2683 = vmatpush2.bf16.msra.mxu0 0
        %2684 = vmatprep.mubr.bf16.mxu0 0
        %2685 = vmatmul.mubr.bf16.gmra.mxu0 %v2331
        %v2686 = vpop.f32.mrf.mxu0
        %v2687 = vadd.f32 %v2554, %v2686
        %v2688 = vpop.f32.mrf.mxu0
        %v2689 = vadd.f32 %v2556, %v2688
        %v2690 = vpop.f32.mrf.mxu0
        %v2691 = vadd.f32 %v2558, %v2690
        %v2692 = vpop.f32.mrf.mxu0
        %v2693 = vadd.f32 %v2560, %v2692
        %2694 = vmatprep.mubr.bf16.mxu0 0
        %2695 = vmatmul.mubr.bf16.gmra.mxu0 %v2332
        %v2696 = vpop.f32.mrf.mxu0
        %v2697 = vadd.f32 %v2564, %v2696
        %v2698 = vpop.f32.mrf.mxu0
        %v2699 = vadd.f32 %v2566, %v2698
        %v2700 = vpop.f32.mrf.mxu0
        %v2701 = vadd.f32 %v2568, %v2700
        %v2702 = vpop.f32.mrf.mxu0
        %v2703 = vadd.f32 %v2570, %v2702
        %2704 = vdwg.mxu0
        %s2705 = scalar_lea.vmem [#allocation4], 256
        %v2706 = vld [vmem:[%s2705] sm:$0xff]
        %v2707 = vld [vmem:[%s2705 + $0x8] sm:$0xff]
        %v2708 = vld [vmem:[%s2705 + $0x10] sm:$0xff]
        %v2709 = vld [vmem:[%s2705 + $0x18] sm:$0xff]
        %v2710 = vld [vmem:[%s2705 + $0x20] sm:$0xff]
        %v2711 = vld [vmem:[%s2705 + $0x28] sm:$0xff]
        %v2712 = vld [vmem:[%s2705 + $0x30] sm:$0xff]
        %v2713 = vld [vmem:[%s2705 + $0x38] sm:$0xff]
        %v2714 = vld [vmem:[%s2705 + $0x40] sm:$0xff]
        %v2715 = vld [vmem:[%s2705 + $0x48] sm:$0xff]
        %v2716 = vld [vmem:[%s2705 + $0x50] sm:$0xff]
        %v2717 = vld [vmem:[%s2705 + $0x58] sm:$0xff]
        %v2718 = vld [vmem:[%s2705 + $0x60] sm:$0xff]
        %v2719 = vld [vmem:[%s2705 + $0x68] sm:$0xff]
        %v2720 = vld [vmem:[%s2705 + $0x70] sm:$0xff]
        %v2721 = vld [vmem:[%s2705 + $0x78] sm:$0xff]
        %v2738 = vunpack.c.l.b16 %v2706
        %v2739 = vunpack.c.h.b16 %v2706
        %v2740 = vunpack.c.l.b16 %v2707
        %v2741 = vunpack.c.h.b16 %v2707
        %v2742 = vunpack.c.l.b16 %v2708
        %v2743 = vunpack.c.h.b16 %v2708
        %v2744 = vunpack.c.l.b16 %v2709
        %v2745 = vunpack.c.h.b16 %v2709
        %v2746 = vunpack.c.l.b16 %v2710
        %v2747 = vunpack.c.h.b16 %v2710
        %v2748 = vunpack.c.l.b16 %v2711
        %v2749 = vunpack.c.h.b16 %v2711
        %v2750 = vunpack.c.l.b16 %v2712
        %v2751 = vunpack.c.h.b16 %v2712
        %v2752 = vunpack.c.l.b16 %v2713
        %v2753 = vunpack.c.h.b16 %v2713
        %v2754 = vunpack.c.l.b16 %v2714
        %v2755 = vunpack.c.h.b16 %v2714
        %v2756 = vunpack.c.l.b16 %v2715
        %v2757 = vunpack.c.h.b16 %v2715
        %v2758 = vunpack.c.l.b16 %v2716
        %v2759 = vunpack.c.h.b16 %v2716
        %v2760 = vunpack.c.l.b16 %v2717
        %v2761 = vunpack.c.h.b16 %v2717
        %v2762 = vunpack.c.l.b16 %v2718
        %v2763 = vunpack.c.h.b16 %v2718
        %v2764 = vunpack.c.l.b16 %v2719
        %v2765 = vunpack.c.h.b16 %v2719
        %v2766 = vunpack.c.l.b16 %v2720
        %v2767 = vunpack.c.h.b16 %v2720
        %v2768 = vunpack.c.l.b16 %v2721
        %v2769 = vunpack.c.h.b16 %v2721
        %v2770 = vpack.c.b16 %v2740, %v2738
        %v2771 = vpack.c.b16 %v2741, %v2739
        %v2772 = vpack.c.b16 %v2744, %v2742
        %v2773 = vpack.c.b16 %v2745, %v2743
        %v2774 = vpack.c.b16 %v2748, %v2746
        %v2775 = vpack.c.b16 %v2749, %v2747
        %v2776 = vpack.c.b16 %v2752, %v2750
        %v2777 = vpack.c.b16 %v2753, %v2751
        %v2778 = vpack.c.b16 %v2756, %v2754
        %v2779 = vpack.c.b16 %v2757, %v2755
        %v2780 = vpack.c.b16 %v2760, %v2758
        %v2781 = vpack.c.b16 %v2761, %v2759
        %v2782 = vpack.c.b16 %v2764, %v2762
        %v2783 = vpack.c.b16 %v2765, %v2763
        %v2784 = vpack.c.b16 %v2768, %v2766
        %v2785 = vpack.c.b16 %v2769, %v2767
        %2802 = vmatprep.subr.bf16.mxu0 %v2785
        %2803 = vmatpush1.bf16.msra.mxu0 %v2784
        %2804 = vmatprep.subr.bf16.mxu0 %v2783
        %2805 = vmatpush1.bf16.msra.mxu0 %v2782
        %2806 = vmatprep.subr.bf16.mxu0 %v2781
        %2807 = vmatpush1.bf16.msra.mxu0 %v2780
        %2808 = vmatprep.subr.bf16.mxu0 %v2779
        %2809 = vmatpush1.bf16.msra.mxu0 %v2778
        %2810 = vmatprep.subr.bf16.mxu0 %v2777
        %2811 = vmatpush1.bf16.msra.mxu0 %v2776
        %2812 = vmatprep.subr.bf16.mxu0 %v2775
        %2813 = vmatpush1.bf16.msra.mxu0 %v2774
        %2814 = vmatprep.subr.bf16.mxu0 %v2773
        %2815 = vmatpush1.bf16.msra.mxu0 %v2772
        %2816 = vmatprep.subr.bf16.mxu0 %v2771
        %2817 = vmatpush1.bf16.msra.mxu0 %v2770
        %2818 = vmatprep.subr.bf16.mxu0 0
        %2819 = vmatpush2.bf16.msra.mxu0 0
        %2820 = vmatprep.subr.bf16.mxu0 0
        %2821 = vmatpush2.bf16.msra.mxu0 0
        %2822 = vmatprep.subr.bf16.mxu0 0
        %2823 = vmatpush2.bf16.msra.mxu0 0
        %2824 = vmatprep.subr.bf16.mxu0 0
        %2825 = vmatpush2.bf16.msra.mxu0 0
        %2826 = vmatprep.subr.bf16.mxu0 0
        %2827 = vmatpush2.bf16.msra.mxu0 0
        %2828 = vmatprep.subr.bf16.mxu0 0
        %2829 = vmatpush2.bf16.msra.mxu0 0
        %2830 = vmatprep.subr.bf16.mxu0 0
        %2831 = vmatpush2.bf16.msra.mxu0 0
        %2832 = vmatprep.subr.bf16.mxu0 0
        %2833 = vmatpush2.bf16.msra.mxu0 0
        %2834 = vmatprep.mubr.bf16.mxu0 0
        %2835 = vmatmul.mubr.bf16.gmra.mxu0 %v2421
        %v2836 = vpop.f32.mrf.mxu0
        %v2837 = vadd.f32 0.0, %v2836
        %v2838 = vpop.f32.mrf.mxu0
        %v2839 = vadd.f32 0.0, %v2838
        %v2840 = vpop.f32.mrf.mxu0
        %v2841 = vadd.f32 0.0, %v2840
        %v2842 = vpop.f32.mrf.mxu0
        %v2843 = vadd.f32 0.0, %v2842
        %2844 = vmatprep.mubr.bf16.mxu0 0
        %2845 = vmatmul.mubr.bf16.gmra.mxu0 %v2422
        %v2846 = vpop.f32.mrf.mxu0
        %v2847 = vadd.f32 0.0, %v2846
        %v2848 = vpop.f32.mrf.mxu0
        %v2849 = vadd.f32 0.0, %v2848
        %v2850 = vpop.f32.mrf.mxu0
        %v2851 = vadd.f32 0.0, %v2850
        %v2852 = vpop.f32.mrf.mxu0
        %v2853 = vadd.f32 0.0, %v2852
        %2854 = vdwg.mxu0
        %v2855 = vadd.f32 %v2687, %v2837
        %v2856 = vadd.f32 %v2689, %v2839
        %v2857 = vadd.f32 %v2691, %v2841
        %v2858 = vadd.f32 %v2693, %v2843
        %v2859 = vadd.f32 %v2697, %v2847
        %v2860 = vadd.f32 %v2699, %v2849
        %v2861 = vadd.f32 %v2701, %v2851
        %v2862 = vadd.f32 %v2703, %v2853
        %v2863 = vld [vmem:[%s8] sm:$0x3]
        %v2865 = vlaneseq
        %v2866 = vshrl.u32 %v2865, 7
        %v2867 = vsub.s32 0, %v2866
        %v2868 = vrot.slane %v2863, %v2867
        %v2869 = vlaneseq
        %v2870 = vshrl.u32 %v2869, 7
        %v2871 = vsub.s32 1, %v2870
        %v2872 = vrot.slane %v2863, %v2871
        %v2875 = vadd.f32 %v2855, %v2868
        %v2876 = vadd.f32 %v2856, %v2872
        %v2877 = vadd.f32 %v2857, %v2868
        %v2878 = vadd.f32 %v2858, %v2872
        %v2879 = vadd.f32 %v2859, %v2868
        %v2880 = vadd.f32 %v2860, %v2872
        %v2881 = vadd.f32 %v2861, %v2868
        %v2882 = vadd.f32 %v2862, %v2872
        %v2883 = vmax.f32 %v2875, 0.0
        %v2884 = vmax.f32 %v2876, 0.0
        %v2885 = vmax.f32 %v2877, 0.0
        %v2886 = vmax.f32 %v2878, 0.0
        %v2887 = vmax.f32 %v2879, 0.0
        %v2888 = vmax.f32 %v2880, 0.0
        %v2889 = vmax.f32 %v2881, 0.0
        %v2890 = vmax.f32 %v2882, 0.0
        %v2891 = vmax.f32 %v2883, %v2884
        %v2892 = vmax.f32 %v2885, %v2886
        %v2893 = vmax.f32 %v2887, %v2888
        %v2894 = vmax.f32 %v2889, %v2890
        %v2895 = vmax.f32 %v2891, %v2892
        %v2896 = vmax.f32 %v2892, %v2893
        %v2897 = vmax.f32 %v2893, %v2894
        %v2898 = vmax.f32 %v2894, 0.0
        %v2899 = vpack.c.bf16 %v2896, %v2895
        %v2900 = vpack.c.bf16 %v2898, %v2897
        %s2901 = scalar_lea.vmem [#allocation6], 128
        %v2902 = vld [vmem:[%s2901] sm:$0xff]
        %v2903 = vld [vmem:[%s2901 + $0x8] sm:$0xff]
        %v2904 = vld [vmem:[%s2901 + $0x10] sm:$0xff]
        %v2905 = vld [vmem:[%s2901 + $0x18] sm:$0xff]
        %v2906 = vld [vmem:[%s2901 + $0x20] sm:$0xff]
        %v2907 = vld [vmem:[%s2901 + $0x28] sm:$0xff]
        %v2908 = vld [vmem:[%s2901 + $0x30] sm:$0xff]
        %v2909 = vld [vmem:[%s2901 + $0x38] sm:$0xff]
        %v2910 = vld [vmem:[%s2901 + $0x40] sm:$0xff]
        %v2911 = vld [vmem:[%s2901 + $0x48] sm:$0xff]
        %v2912 = vld [vmem:[%s2901 + $0x50] sm:$0xff]
        %v2913 = vld [vmem:[%s2901 + $0x58] sm:$0xff]
        %v2914 = vld [vmem:[%s2901 + $0x60] sm:$0xff]
        %v2915 = vld [vmem:[%s2901 + $0x68] sm:$0xff]
        %v2916 = vld [vmem:[%s2901 + $0x70] sm:$0xff]
        %v2917 = vld [vmem:[%s2901 + $0x78] sm:$0xff]
        %v2934 = vunpack.c.l.b16 %v2902
        %v2935 = vunpack.c.h.b16 %v2902
        %v2936 = vunpack.c.l.b16 %v2903
        %v2937 = vunpack.c.h.b16 %v2903
        %v2938 = vunpack.c.l.b16 %v2904
        %v2939 = vunpack.c.h.b16 %v2904
        %v2940 = vunpack.c.l.b16 %v2905
        %v2941 = vunpack.c.h.b16 %v2905
        %v2942 = vunpack.c.l.b16 %v2906
        %v2943 = vunpack.c.h.b16 %v2906
        %v2944 = vunpack.c.l.b16 %v2907
        %v2945 = vunpack.c.h.b16 %v2907
        %v2946 = vunpack.c.l.b16 %v2908
        %v2947 = vunpack.c.h.b16 %v2908
        %v2948 = vunpack.c.l.b16 %v2909
        %v2949 = vunpack.c.h.b16 %v2909
        %v2950 = vunpack.c.l.b16 %v2910
        %v2951 = vunpack.c.h.b16 %v2910
        %v2952 = vunpack.c.l.b16 %v2911
        %v2953 = vunpack.c.h.b16 %v2911
        %v2954 = vunpack.c.l.b16 %v2912
        %v2955 = vunpack.c.h.b16 %v2912
        %v2956 = vunpack.c.l.b16 %v2913
        %v2957 = vunpack.c.h.b16 %v2913
        %v2958 = vunpack.c.l.b16 %v2914
        %v2959 = vunpack.c.h.b16 %v2914
        %v2960 = vunpack.c.l.b16 %v2915
        %v2961 = vunpack.c.h.b16 %v2915
        %v2962 = vunpack.c.l.b16 %v2916
        %v2963 = vunpack.c.h.b16 %v2916
        %v2964 = vunpack.c.l.b16 %v2917
        %v2965 = vunpack.c.h.b16 %v2917
        %v2966 = vpack.c.b16 %v2936, %v2934
        %v2967 = vpack.c.b16 %v2937, %v2935
        %v2968 = vpack.c.b16 %v2940, %v2938
        %v2969 = vpack.c.b16 %v2941, %v2939
        %v2970 = vpack.c.b16 %v2944, %v2942
        %v2971 = vpack.c.b16 %v2945, %v2943
        %v2972 = vpack.c.b16 %v2948, %v2946
        %v2973 = vpack.c.b16 %v2949, %v2947
        %v2974 = vpack.c.b16 %v2952, %v2950
        %v2975 = vpack.c.b16 %v2953, %v2951
        %v2976 = vpack.c.b16 %v2956, %v2954
        %v2977 = vpack.c.b16 %v2957, %v2955
        %v2978 = vpack.c.b16 %v2960, %v2958
        %v2979 = vpack.c.b16 %v2961, %v2959
        %v2980 = vpack.c.b16 %v2964, %v2962
        %v2981 = vpack.c.b16 %v2965, %v2963
        %2998 = vmatprep.subr.bf16.mxu0 %v2981
        %2999 = vmatpush1.bf16.msra.mxu0 %v2980
        %3000 = vmatprep.subr.bf16.mxu0 %v2979
        %3001 = vmatpush1.bf16.msra.mxu0 %v2978
        %3002 = vmatprep.subr.bf16.mxu0 %v2977
        %3003 = vmatpush1.bf16.msra.mxu0 %v2976
        %3004 = vmatprep.subr.bf16.mxu0 %v2975
        %3005 = vmatpush1.bf16.msra.mxu0 %v2974
        %3006 = vmatprep.subr.bf16.mxu0 %v2973
        %3007 = vmatpush1.bf16.msra.mxu0 %v2972
        %3008 = vmatprep.subr.bf16.mxu0 %v2971
        %3009 = vmatpush1.bf16.msra.mxu0 %v2970
        %3010 = vmatprep.subr.bf16.mxu0 %v2969
        %3011 = vmatpush1.bf16.msra.mxu0 %v2968
        %3012 = vmatprep.subr.bf16.mxu0 %v2967
        %3013 = vmatpush1.bf16.msra.mxu0 %v2966
        %3014 = vmatprep.subr.bf16.mxu0 0
        %3015 = vmatpush2.bf16.msra.mxu0 0
        %3016 = vmatprep.subr.bf16.mxu0 0
        %3017 = vmatpush2.bf16.msra.mxu0 0
        %3018 = vmatprep.subr.bf16.mxu0 0
        %3019 = vmatpush2.bf16.msra.mxu0 0
        %3020 = vmatprep.subr.bf16.mxu0 0
        %3021 = vmatpush2.bf16.msra.mxu0 0
        %3022 = vmatprep.subr.bf16.mxu0 0
        %3023 = vmatpush2.bf16.msra.mxu0 0
        %3024 = vmatprep.subr.bf16.mxu0 0
        %3025 = vmatpush2.bf16.msra.mxu0 0
        %3026 = vmatprep.subr.bf16.mxu0 0
        %3027 = vmatpush2.bf16.msra.mxu0 0
        %3028 = vmatprep.subr.bf16.mxu0 0
        %3029 = vmatpush2.bf16.msra.mxu0 0
        %3030 = vmatprep.mubr.bf16.mxu0 0
        %3031 = vmatmul.mubr.bf16.gmra.mxu0 %v2899
        %v3032 = vpop.f32.mrf.mxu0
        %v3033 = vadd.f32 0.0, %v3032
        %v3034 = vpop.f32.mrf.mxu0
        %v3035 = vadd.f32 0.0, %v3034
        %v3036 = vpop.f32.mrf.mxu0
        %v3037 = vadd.f32 0.0, %v3036
        %v3038 = vpop.f32.mrf.mxu0
        %v3039 = vadd.f32 0.0, %v3038
        %3040 = vmatprep.mubr.bf16.mxu0 0
        %3041 = vmatmul.mubr.bf16.gmra.mxu0 %v2900
        %v3042 = vpop.f32.mrf.mxu0
        %v3043 = vadd.f32 0.0, %v3042
        %v3044 = vpop.f32.mrf.mxu0
        %v3045 = vadd.f32 0.0, %v3044
        %v3046 = vpop.f32.mrf.mxu0
        %v3047 = vadd.f32 0.0, %v3046
        %v3048 = vpop.f32.mrf.mxu0
        %3049 = vdwg.mxu0
        %vm3050 = vcmp.lt.s32.totalorder %v692, 0
        %v3051 = vsub.s32 0, %v692
        %v3052 = vsel %vm3050, %v3051, %v692
        %v3053 = vshrl.u32 %v3052, 4
        %v3054 = vand.u32 %v3052, 15
        %v3055 = vsub.s32 0, %v3054
        %v3056 = vsel %vm3050, %v3055, %v3054
        %vm3057 = vcmp.lt.s32.totalorder %v693, 0
        %v3058 = vsub.s32 0, %v693
        %v3059 = vsel %vm3057, %v3058, %v693
        %v3060 = vshrl.u32 %v3059, 4
        %v3061 = vand.u32 %v3059, 15
        %v3062 = vsub.s32 0, %v3061
        %v3063 = vsel %vm3057, %v3062, %v3061
        %vm3064 = vcmp.lt.s32.totalorder %v694, 0
        %v3065 = vsub.s32 0, %v694
        %v3066 = vsel %vm3064, %v3065, %v694
        %v3067 = vshrl.u32 %v3066, 4
        %v3068 = vand.u32 %v3066, 15
        %v3069 = vsub.s32 0, %v3068
        %v3070 = vsel %vm3064, %v3069, %v3068
        %vm3071 = vcmp.lt.s32.totalorder %v695, 0
        %v3072 = vsub.s32 0, %v695
        %v3073 = vsel %vm3071, %v3072, %v695
        %v3074 = vshrl.u32 %v3073, 4
        %v3075 = vand.u32 %v3073, 15
        %v3076 = vsub.s32 0, %v3075
        %v3077 = vsel %vm3071, %v3076, %v3075
        %vm3078 = vcmp.ne.s32.totalorder %v3056, 0
        %vm3079 = vcmp.ne.s32.totalorder %v3063, 0
        %vm3080 = vcmp.ne.s32.totalorder %v3070, 0
        %vm3081 = vcmp.ne.s32.totalorder %v3077, 0
        %vm3082 = vcmp.lt.s32.totalorder %v3056, 0
        %vm3083 = vcmp.lt.s32.totalorder %v3063, 0
        %vm3084 = vcmp.lt.s32.totalorder %v3070, 0
        %vm3085 = vcmp.lt.s32.totalorder %v3077, 0
        %vm3086 = vmand %vm3082, %vm3078
        %vm3087 = vmand %vm3083, %vm3079
        %vm3088 = vmand %vm3084, %vm3080
        %vm3089 = vmand %vm3085, %vm3081
        %v3090 = vadd.s32 %v3056, 16
        %v3091 = vadd.s32 %v3063, 16
        %v3092 = vadd.s32 %v3070, 16
        %v3093 = vadd.s32 %v3077, 16
        %v3094 = vsel %vm3086, %v3090, %v3056
        %v3095 = vsel %vm3087, %v3091, %v3063
        %v3096 = vsel %vm3088, %v3092, %v3070
        %v3097 = vsel %vm3089, %v3093, %v3077
        %vm3098 = vcmp.eq.s32.totalorder %v3094, 0
        %vm3099 = vcmp.eq.s32.totalorder %v3095, 0
        %vm3100 = vcmp.eq.s32.totalorder %v3096, 0
        %vm3101 = vcmp.eq.s32.totalorder %v3097, 0
        %v3102 = vsel %vm3098, 1, 0
        %v3103 = vsel %vm3099, 1, 0
        %v3104 = vsel %vm3100, 1, 0
        %v3105 = vsel %vm3101, 1, 0
        %vm3106 = vcmp.eq.s32.totalorder %v3102, 1
        %vm3107 = vcmp.eq.s32.totalorder %v3103, 1
        %vm3108 = vcmp.eq.s32.totalorder %v3104, 1
        %vm3109 = vcmp.eq.s32.totalorder %v3105, 1
        %v3110 = vsel %vm3106, %v3033, 0.0
        %v3111 = vsel %vm3107, %v3037, 0.0
        %v3112 = vsel %vm3108, %v3043, 0.0
        %v3113 = vsel %vm3109, %v3047, 0.0
        %v3114 = vsel %vm3106, %v3035, 0.0
        %v3115 = vsel %vm3107, %v3039, 0.0
        %v3116 = vsel %vm3108, %v3045, 0.0
        %v3117 = vadd.f32 %v3110, 0.0
        %v3118 = vadd.f32 %v3111, %v3114
        %v3119 = vadd.f32 %v3112, %v3115
        %v3120 = vadd.f32 %v3113, %v3116
        %v3121 = vld [vmem:[%s10] sm:$0x1]
        %v3123 = vlaneseq
        %v3124 = vshrl.u32 %v3123, 7
        %v3125 = vsub.s32 0, %v3124
        %v3126 = vrot.slane %v3121, %v3125
        %v3128 = vadd.f32 %v3117, %v3126
        %v3129 = vadd.f32 %v3118, %v3126
        %v3130 = vadd.f32 %v3119, %v3126
        %v3131 = vadd.f32 %v3120, %v3126
        %v3132 = vmax.f32 %v3128, 0.0
        %v3133 = vmax.f32 %v3129, 0.0
        %v3134 = vmax.f32 %v3130, 0.0
        %v3135 = vmax.f32 %v3131, 0.0
        %v3136 = vpack.c.bf16 %v3133, %v3132
        %v3137 = vpack.c.bf16 %v3135, %v3134
        %s3138 = scalar_lea.vmem [#allocation7], 128
        %v3139 = vld [vmem:[%s3138] sm:$0xff]
        %v3140 = vld [vmem:[%s3138 + $0x8] sm:$0xff]
        %v3141 = vld [vmem:[%s3138 + $0x10] sm:$0xff]
        %v3142 = vld [vmem:[%s3138 + $0x18] sm:$0xff]
        %v3143 = vld [vmem:[%s3138 + $0x20] sm:$0xff]
        %v3144 = vld [vmem:[%s3138 + $0x28] sm:$0xff]
        %v3145 = vld [vmem:[%s3138 + $0x30] sm:$0xff]
        %v3146 = vld [vmem:[%s3138 + $0x38] sm:$0xff]
        %v3147 = vld [vmem:[%s3138 + $0x40] sm:$0xff]
        %v3148 = vld [vmem:[%s3138 + $0x48] sm:$0xff]
        %v3149 = vld [vmem:[%s3138 + $0x50] sm:$0xff]
        %v3150 = vld [vmem:[%s3138 + $0x58] sm:$0xff]
        %v3151 = vld [vmem:[%s3138 + $0x60] sm:$0xff]
        %v3152 = vld [vmem:[%s3138 + $0x68] sm:$0xff]
        %v3153 = vld [vmem:[%s3138 + $0x70] sm:$0xff]
        %v3154 = vld [vmem:[%s3138 + $0x78] sm:$0xff]
        %v3157 = vrot.slane %v3136, 4
        %v3158 = vrot.slane %v3137, 4
        %v3159 = vsel %vm2356, %v3157, %v3158
        %v3162 = vsel %vm2314, 0, %v3157
        %v3164 = vsel %vm2386, %v3162, 0
        %v3165 = vsel %vm2387, %v3159, 0
        %v3167 = vsel %vm2314, %v3158, 0
        %v3169 = vsel %vm2419, %v3159, 0
        %v3170 = vsel %vm2420, %v3167, 0
        %v3171 = vld [vmem:[#allocation7] sm:$0xff]
        %v3172 = vld [vmem:[#allocation7 + $0x8] sm:$0xff]
        %v3173 = vld [vmem:[#allocation7 + $0x10] sm:$0xff]
        %v3174 = vld [vmem:[#allocation7 + $0x18] sm:$0xff]
        %v3175 = vld [vmem:[#allocation7 + $0x20] sm:$0xff]
        %v3176 = vld [vmem:[#allocation7 + $0x28] sm:$0xff]
        %v3177 = vld [vmem:[#allocation7 + $0x30] sm:$0xff]
        %v3178 = vld [vmem:[#allocation7 + $0x38] sm:$0xff]
        %v3179 = vld [vmem:[#allocation7 + $0x40] sm:$0xff]
        %v3180 = vld [vmem:[#allocation7 + $0x48] sm:$0xff]
        %v3181 = vld [vmem:[#allocation7 + $0x50] sm:$0xff]
        %v3182 = vld [vmem:[#allocation7 + $0x58] sm:$0xff]
        %v3183 = vld [vmem:[#allocation7 + $0x60] sm:$0xff]
        %v3184 = vld [vmem:[#allocation7 + $0x68] sm:$0xff]
        %v3185 = vld [vmem:[#allocation7 + $0x70] sm:$0xff]
        %v3186 = vld [vmem:[#allocation7 + $0x78] sm:$0xff]
        %v3203 = vunpack.c.l.b16 %v3171
        %v3204 = vunpack.c.h.b16 %v3171
        %v3205 = vunpack.c.l.b16 %v3172
        %v3206 = vunpack.c.h.b16 %v3172
        %v3207 = vunpack.c.l.b16 %v3173
        %v3208 = vunpack.c.h.b16 %v3173
        %v3209 = vunpack.c.l.b16 %v3174
        %v3210 = vunpack.c.h.b16 %v3174
        %v3211 = vunpack.c.l.b16 %v3175
        %v3212 = vunpack.c.h.b16 %v3175
        %v3213 = vunpack.c.l.b16 %v3176
        %v3214 = vunpack.c.h.b16 %v3176
        %v3215 = vunpack.c.l.b16 %v3177
        %v3216 = vunpack.c.h.b16 %v3177
        %v3217 = vunpack.c.l.b16 %v3178
        %v3218 = vunpack.c.h.b16 %v3178
        %v3219 = vunpack.c.l.b16 %v3179
        %v3220 = vunpack.c.h.b16 %v3179
        %v3221 = vunpack.c.l.b16 %v3180
        %v3222 = vunpack.c.h.b16 %v3180
        %v3223 = vunpack.c.l.b16 %v3181
        %v3224 = vunpack.c.h.b16 %v3181
        %v3225 = vunpack.c.l.b16 %v3182
        %v3226 = vunpack.c.h.b16 %v3182
        %v3227 = vunpack.c.l.b16 %v3183
        %v3228 = vunpack.c.h.b16 %v3183
        %v3229 = vunpack.c.l.b16 %v3184
        %v3230 = vunpack.c.h.b16 %v3184
        %v3231 = vunpack.c.l.b16 %v3185
        %v3232 = vunpack.c.h.b16 %v3185
        %v3233 = vunpack.c.l.b16 %v3186
        %v3234 = vunpack.c.h.b16 %v3186
        %v3235 = vpack.c.b16 %v3205, %v3203
        %v3236 = vpack.c.b16 %v3206, %v3204
        %v3237 = vpack.c.b16 %v3209, %v3207
        %v3238 = vpack.c.b16 %v3210, %v3208
        %v3239 = vpack.c.b16 %v3213, %v3211
        %v3240 = vpack.c.b16 %v3214, %v3212
        %v3241 = vpack.c.b16 %v3217, %v3215
        %v3242 = vpack.c.b16 %v3218, %v3216
        %v3243 = vpack.c.b16 %v3221, %v3219
        %v3244 = vpack.c.b16 %v3222, %v3220
        %v3245 = vpack.c.b16 %v3225, %v3223
        %v3246 = vpack.c.b16 %v3226, %v3224
        %v3247 = vpack.c.b16 %v3229, %v3227
        %v3248 = vpack.c.b16 %v3230, %v3228
        %v3249 = vpack.c.b16 %v3233, %v3231
        %v3250 = vpack.c.b16 %v3234, %v3232
        %3267 = vmatprep.subr.bf16.mxu0 %v3250
        %3268 = vmatpush1.bf16.msra.mxu0 %v3249
        %3269 = vmatprep.subr.bf16.mxu0 %v3248
        %3270 = vmatpush1.bf16.msra.mxu0 %v3247
        %3271 = vmatprep.subr.bf16.mxu0 %v3246
        %3272 = vmatpush1.bf16.msra.mxu0 %v3245
        %3273 = vmatprep.subr.bf16.mxu0 %v3244
        %3274 = vmatpush1.bf16.msra.mxu0 %v3243
        %3275 = vmatprep.subr.bf16.mxu0 %v3242
        %3276 = vmatpush1.bf16.msra.mxu0 %v3241
        %3277 = vmatprep.subr.bf16.mxu0 %v3240
        %3278 = vmatpush1.bf16.msra.mxu0 %v3239
        %3279 = vmatprep.subr.bf16.mxu0 %v3238
        %3280 = vmatpush1.bf16.msra.mxu0 %v3237
        %3281 = vmatprep.subr.bf16.mxu0 %v3236
        %3282 = vmatpush1.bf16.msra.mxu0 %v3235
        %3283 = vmatprep.subr.bf16.mxu0 0
        %3284 = vmatpush2.bf16.msra.mxu0 0
        %3285 = vmatprep.subr.bf16.mxu0 0
        %3286 = vmatpush2.bf16.msra.mxu0 0
        %3287 = vmatprep.subr.bf16.mxu0 0
        %3288 = vmatpush2.bf16.msra.mxu0 0
        %3289 = vmatprep.subr.bf16.mxu0 0
        %3290 = vmatpush2.bf16.msra.mxu0 0
        %3291 = vmatprep.subr.bf16.mxu0 0
        %3292 = vmatpush2.bf16.msra.mxu0 0
        %3293 = vmatprep.subr.bf16.mxu0 0
        %3294 = vmatpush2.bf16.msra.mxu0 0
        %3295 = vmatprep.subr.bf16.mxu0 0
        %3296 = vmatpush2.bf16.msra.mxu0 0
        %3297 = vmatprep.subr.bf16.mxu0 0
        %3298 = vmatpush2.bf16.msra.mxu0 0
        %3299 = vmatprep.mubr.bf16.mxu0 0
        %3300 = vmatmul.mubr.bf16.gmra.mxu0 %v3164
        %v3301 = vpop.f32.mrf.mxu0
        %v3302 = vadd.f32 0.0, %v3301
        %v3303 = vpop.f32.mrf.mxu0
        %v3304 = vadd.f32 0.0, %v3303
        %v3305 = vpop.f32.mrf.mxu0
        %v3306 = vadd.f32 0.0, %v3305
        %v3307 = vpop.f32.mrf.mxu0
        %v3308 = vadd.f32 0.0, %v3307
        %3309 = vmatprep.mubr.bf16.mxu0 0
        %3310 = vmatmul.mubr.bf16.gmra.mxu0 %v3165
        %v3311 = vpop.f32.mrf.mxu0
        %v3312 = vadd.f32 0.0, %v3311
        %v3313 = vpop.f32.mrf.mxu0
        %v3314 = vadd.f32 0.0, %v3313
        %v3315 = vpop.f32.mrf.mxu0
        %v3316 = vadd.f32 0.0, %v3315
        %v3317 = vpop.f32.mrf.mxu0
        %v3318 = vadd.f32 0.0, %v3317
        %3319 = vdwg.mxu0
        %v3336 = vunpack.c.l.b16 %v3139
        %v3337 = vunpack.c.h.b16 %v3139
        %v3338 = vunpack.c.l.b16 %v3140
        %v3339 = vunpack.c.h.b16 %v3140
        %v3340 = vunpack.c.l.b16 %v3141
        %v3341 = vunpack.c.h.b16 %v3141
        %v3342 = vunpack.c.l.b16 %v3142
        %v3343 = vunpack.c.h.b16 %v3142
        %v3344 = vunpack.c.l.b16 %v3143
        %v3345 = vunpack.c.h.b16 %v3143
        %v3346 = vunpack.c.l.b16 %v3144
        %v3347 = vunpack.c.h.b16 %v3144
        %v3348 = vunpack.c.l.b16 %v3145
        %v3349 = vunpack.c.h.b16 %v3145
        %v3350 = vunpack.c.l.b16 %v3146
        %v3351 = vunpack.c.h.b16 %v3146
        %v3352 = vunpack.c.l.b16 %v3147
        %v3353 = vunpack.c.h.b16 %v3147
        %v3354 = vunpack.c.l.b16 %v3148
        %v3355 = vunpack.c.h.b16 %v3148
        %v3356 = vunpack.c.l.b16 %v3149
        %v3357 = vunpack.c.h.b16 %v3149
        %v3358 = vunpack.c.l.b16 %v3150
        %v3359 = vunpack.c.h.b16 %v3150
        %v3360 = vunpack.c.l.b16 %v3151
        %v3361 = vunpack.c.h.b16 %v3151
        %v3362 = vunpack.c.l.b16 %v3152
        %v3363 = vunpack.c.h.b16 %v3152
        %v3364 = vunpack.c.l.b16 %v3153
        %v3365 = vunpack.c.h.b16 %v3153
        %v3366 = vunpack.c.l.b16 %v3154
        %v3367 = vunpack.c.h.b16 %v3154
        %v3368 = vpack.c.b16 %v3338, %v3336
        %v3369 = vpack.c.b16 %v3339, %v3337
        %v3370 = vpack.c.b16 %v3342, %v3340
        %v3371 = vpack.c.b16 %v3343, %v3341
        %v3372 = vpack.c.b16 %v3346, %v3344
        %v3373 = vpack.c.b16 %v3347, %v3345
        %v3374 = vpack.c.b16 %v3350, %v3348
        %v3375 = vpack.c.b16 %v3351, %v3349
        %v3376 = vpack.c.b16 %v3354, %v3352
        %v3377 = vpack.c.b16 %v3355, %v3353
        %v3378 = vpack.c.b16 %v3358, %v3356
        %v3379 = vpack.c.b16 %v3359, %v3357
        %v3380 = vpack.c.b16 %v3362, %v3360
        %v3381 = vpack.c.b16 %v3363, %v3361
        %v3382 = vpack.c.b16 %v3366, %v3364
        %v3383 = vpack.c.b16 %v3367, %v3365
        %3400 = vmatprep.subr.bf16.mxu0 %v3383
        %3401 = vmatpush1.bf16.msra.mxu0 %v3382
        %3402 = vmatprep.subr.bf16.mxu0 %v3381
        %3403 = vmatpush1.bf16.msra.mxu0 %v3380
        %3404 = vmatprep.subr.bf16.mxu0 %v3379
        %3405 = vmatpush1.bf16.msra.mxu0 %v3378
        %3406 = vmatprep.subr.bf16.mxu0 %v3377
        %3407 = vmatpush1.bf16.msra.mxu0 %v3376
        %3408 = vmatprep.subr.bf16.mxu0 %v3375
        %3409 = vmatpush1.bf16.msra.mxu0 %v3374
        %3410 = vmatprep.subr.bf16.mxu0 %v3373
        %3411 = vmatpush1.bf16.msra.mxu0 %v3372
        %3412 = vmatprep.subr.bf16.mxu0 %v3371
        %3413 = vmatpush1.bf16.msra.mxu0 %v3370
        %3414 = vmatprep.subr.bf16.mxu0 %v3369
        %3415 = vmatpush1.bf16.msra.mxu0 %v3368
        %3416 = vmatprep.subr.bf16.mxu0 0
        %3417 = vmatpush2.bf16.msra.mxu0 0
        %3418 = vmatprep.subr.bf16.mxu0 0
        %3419 = vmatpush2.bf16.msra.mxu0 0
        %3420 = vmatprep.subr.bf16.mxu0 0
        %3421 = vmatpush2.bf16.msra.mxu0 0
        %3422 = vmatprep.subr.bf16.mxu0 0
        %3423 = vmatpush2.bf16.msra.mxu0 0
        %3424 = vmatprep.subr.bf16.mxu0 0
        %3425 = vmatpush2.bf16.msra.mxu0 0
        %3426 = vmatprep.subr.bf16.mxu0 0
        %3427 = vmatpush2.bf16.msra.mxu0 0
        %3428 = vmatprep.subr.bf16.mxu0 0
        %3429 = vmatpush2.bf16.msra.mxu0 0
        %3430 = vmatprep.subr.bf16.mxu0 0
        %3431 = vmatpush2.bf16.msra.mxu0 0
        %3432 = vmatprep.mubr.bf16.mxu0 0
        %3433 = vmatmul.mubr.bf16.gmra.mxu0 %v3136
        %v3434 = vpop.f32.mrf.mxu0
        %v3435 = vadd.f32 %v3302, %v3434
        %v3436 = vpop.f32.mrf.mxu0
        %v3437 = vadd.f32 %v3304, %v3436
        %v3438 = vpop.f32.mrf.mxu0
        %v3439 = vadd.f32 %v3306, %v3438
        %v3440 = vpop.f32.mrf.mxu0
        %v3441 = vadd.f32 %v3308, %v3440
        %3442 = vmatprep.mubr.bf16.mxu0 0
        %3443 = vmatmul.mubr.bf16.gmra.mxu0 %v3137
        %v3444 = vpop.f32.mrf.mxu0
        %v3445 = vadd.f32 %v3312, %v3444
        %v3446 = vpop.f32.mrf.mxu0
        %v3447 = vadd.f32 %v3314, %v3446
        %v3448 = vpop.f32.mrf.mxu0
        %v3449 = vadd.f32 %v3316, %v3448
        %v3450 = vpop.f32.mrf.mxu0
        %v3451 = vadd.f32 %v3318, %v3450
        %3452 = vdwg.mxu0
        %s3453 = scalar_lea.vmem [#allocation7], 256
        %v3454 = vld [vmem:[%s3453] sm:$0xff]
        %v3455 = vld [vmem:[%s3453 + $0x8] sm:$0xff]
        %v3456 = vld [vmem:[%s3453 + $0x10] sm:$0xff]
        %v3457 = vld [vmem:[%s3453 + $0x18] sm:$0xff]
        %v3458 = vld [vmem:[%s3453 + $0x20] sm:$0xff]
        %v3459 = vld [vmem:[%s3453 + $0x28] sm:$0xff]
        %v3460 = vld [vmem:[%s3453 + $0x30] sm:$0xff]
        %v3461 = vld [vmem:[%s3453 + $0x38] sm:$0xff]
        %v3462 = vld [vmem:[%s3453 + $0x40] sm:$0xff]
        %v3463 = vld [vmem:[%s3453 + $0x48] sm:$0xff]
        %v3464 = vld [vmem:[%s3453 + $0x50] sm:$0xff]
        %v3465 = vld [vmem:[%s3453 + $0x58] sm:$0xff]
        %v3466 = vld [vmem:[%s3453 + $0x60] sm:$0xff]
        %v3467 = vld [vmem:[%s3453 + $0x68] sm:$0xff]
        %v3468 = vld [vmem:[%s3453 + $0x70] sm:$0xff]
        %v3469 = vld [vmem:[%s3453 + $0x78] sm:$0xff]
        %v3486 = vunpack.c.l.b16 %v3454
        %v3487 = vunpack.c.h.b16 %v3454
        %v3488 = vunpack.c.l.b16 %v3455
        %v3489 = vunpack.c.h.b16 %v3455
        %v3490 = vunpack.c.l.b16 %v3456
        %v3491 = vunpack.c.h.b16 %v3456
        %v3492 = vunpack.c.l.b16 %v3457
        %v3493 = vunpack.c.h.b16 %v3457
        %v3494 = vunpack.c.l.b16 %v3458
        %v3495 = vunpack.c.h.b16 %v3458
        %v3496 = vunpack.c.l.b16 %v3459
        %v3497 = vunpack.c.h.b16 %v3459
        %v3498 = vunpack.c.l.b16 %v3460
        %v3499 = vunpack.c.h.b16 %v3460
        %v3500 = vunpack.c.l.b16 %v3461
        %v3501 = vunpack.c.h.b16 %v3461
        %v3502 = vunpack.c.l.b16 %v3462
        %v3503 = vunpack.c.h.b16 %v3462
        %v3504 = vunpack.c.l.b16 %v3463
        %v3505 = vunpack.c.h.b16 %v3463
        %v3506 = vunpack.c.l.b16 %v3464
        %v3507 = vunpack.c.h.b16 %v3464
        %v3508 = vunpack.c.l.b16 %v3465
        %v3509 = vunpack.c.h.b16 %v3465
        %v3510 = vunpack.c.l.b16 %v3466
        %v3511 = vunpack.c.h.b16 %v3466
        %v3512 = vunpack.c.l.b16 %v3467
        %v3513 = vunpack.c.h.b16 %v3467
        %v3514 = vunpack.c.l.b16 %v3468
        %v3515 = vunpack.c.h.b16 %v3468
        %v3516 = vunpack.c.l.b16 %v3469
        %v3517 = vunpack.c.h.b16 %v3469
        %v3518 = vpack.c.b16 %v3488, %v3486
        %v3519 = vpack.c.b16 %v3489, %v3487
        %v3520 = vpack.c.b16 %v3492, %v3490
        %v3521 = vpack.c.b16 %v3493, %v3491
        %v3522 = vpack.c.b16 %v3496, %v3494
        %v3523 = vpack.c.b16 %v3497, %v3495
        %v3524 = vpack.c.b16 %v3500, %v3498
        %v3525 = vpack.c.b16 %v3501, %v3499
        %v3526 = vpack.c.b16 %v3504, %v3502
        %v3527 = vpack.c.b16 %v3505, %v3503
        %v3528 = vpack.c.b16 %v3508, %v3506
        %v3529 = vpack.c.b16 %v3509, %v3507
        %v3530 = vpack.c.b16 %v3512, %v3510
        %v3531 = vpack.c.b16 %v3513, %v3511
        %v3532 = vpack.c.b16 %v3516, %v3514
        %v3533 = vpack.c.b16 %v3517, %v3515
        %3550 = vmatprep.subr.bf16.mxu0 %v3533
        %3551 = vmatpush1.bf16.msra.mxu0 %v3532
        %3552 = vmatprep.subr.bf16.mxu0 %v3531
        %3553 = vmatpush1.bf16.msra.mxu0 %v3530
        %3554 = vmatprep.subr.bf16.mxu0 %v3529
        %3555 = vmatpush1.bf16.msra.mxu0 %v3528
        %3556 = vmatprep.subr.bf16.mxu0 %v3527
        %3557 = vmatpush1.bf16.msra.mxu0 %v3526
        %3558 = vmatprep.subr.bf16.mxu0 %v3525
        %3559 = vmatpush1.bf16.msra.mxu0 %v3524
        %3560 = vmatprep.subr.bf16.mxu0 %v3523
        %3561 = vmatpush1.bf16.msra.mxu0 %v3522
        %3562 = vmatprep.subr.bf16.mxu0 %v3521
        %3563 = vmatpush1.bf16.msra.mxu0 %v3520
        %3564 = vmatprep.subr.bf16.mxu0 %v3519
        %3565 = vmatpush1.bf16.msra.mxu0 %v3518
        %3566 = vmatprep.subr.bf16.mxu0 0
        %3567 = vmatpush2.bf16.msra.mxu0 0
        %3568 = vmatprep.subr.bf16.mxu0 0
        %3569 = vmatpush2.bf16.msra.mxu0 0
        %3570 = vmatprep.subr.bf16.mxu0 0
        %3571 = vmatpush2.bf16.msra.mxu0 0
        %3572 = vmatprep.subr.bf16.mxu0 0
        %3573 = vmatpush2.bf16.msra.mxu0 0
        %3574 = vmatprep.subr.bf16.mxu0 0
        %3575 = vmatpush2.bf16.msra.mxu0 0
        %3576 = vmatprep.subr.bf16.mxu0 0
        %3577 = vmatpush2.bf16.msra.mxu0 0
        %3578 = vmatprep.subr.bf16.mxu0 0
        %3579 = vmatpush2.bf16.msra.mxu0 0
        %3580 = vmatprep.subr.bf16.mxu0 0
        %3581 = vmatpush2.bf16.msra.mxu0 0
        %3582 = vmatprep.mubr.bf16.mxu0 0
        %3583 = vmatmul.mubr.bf16.gmra.mxu0 %v3169
        %v3584 = vpop.f32.mrf.mxu0
        %v3585 = vadd.f32 0.0, %v3584
        %v3586 = vpop.f32.mrf.mxu0
        %v3587 = vadd.f32 0.0, %v3586
        %v3588 = vpop.f32.mrf.mxu0
        %v3589 = vadd.f32 0.0, %v3588
        %v3590 = vpop.f32.mrf.mxu0
        %v3591 = vadd.f32 0.0, %v3590
        %3592 = vmatprep.mubr.bf16.mxu0 0
        %3593 = vmatmul.mubr.bf16.gmra.mxu0 %v3170
        %v3594 = vpop.f32.mrf.mxu0
        %v3595 = vadd.f32 0.0, %v3594
        %v3596 = vpop.f32.mrf.mxu0
        %v3597 = vadd.f32 0.0, %v3596
        %v3598 = vpop.f32.mrf.mxu0
        %v3599 = vadd.f32 0.0, %v3598
        %v3600 = vpop.f32.mrf.mxu0
        %v3601 = vadd.f32 0.0, %v3600
        %3602 = vdwg.mxu0
        %v3603 = vadd.f32 %v3435, %v3585
        %v3604 = vadd.f32 %v3437, %v3587
        %v3605 = vadd.f32 %v3439, %v3589
        %v3606 = vadd.f32 %v3441, %v3591
        %v3607 = vadd.f32 %v3445, %v3595
        %v3608 = vadd.f32 %v3447, %v3597
        %v3609 = vadd.f32 %v3449, %v3599
        %v3610 = vadd.f32 %v3451, %v3601
        %vm3611 = vcmp.lt.s32.totalorder %v692, 0
        %v3612 = vsub.s32 0, %v692
        %v3613 = vsel %vm3611, %v3612, %v692
        %v3614 = vshrl.u32 %v3613, 3
        %v3615 = vand.u32 %v3613, 7
        %v3616 = vsub.s32 0, %v3615
        %v3617 = vsel %vm3611, %v3616, %v3615
        %vm3618 = vcmp.lt.s32.totalorder %v693, 0
        %v3619 = vsub.s32 0, %v693
        %v3620 = vsel %vm3618, %v3619, %v693
        %v3621 = vshrl.u32 %v3620, 3
        %v3622 = vand.u32 %v3620, 7
        %v3623 = vsub.s32 0, %v3622
        %v3624 = vsel %vm3618, %v3623, %v3622
        %vm3625 = vcmp.lt.s32.totalorder %v694, 0
        %v3626 = vsub.s32 0, %v694
        %v3627 = vsel %vm3625, %v3626, %v694
        %v3628 = vshrl.u32 %v3627, 3
        %v3629 = vand.u32 %v3627, 7
        %v3630 = vsub.s32 0, %v3629
        %v3631 = vsel %vm3625, %v3630, %v3629
        %vm3632 = vcmp.lt.s32.totalorder %v695, 0
        %v3633 = vsub.s32 0, %v695
        %v3634 = vsel %vm3632, %v3633, %v695
        %v3635 = vshrl.u32 %v3634, 3
        %v3636 = vand.u32 %v3634, 7
        %v3637 = vsub.s32 0, %v3636
        %v3638 = vsel %vm3632, %v3637, %v3636
        %vm3639 = vcmp.ne.s32.totalorder %v3617, 0
        %vm3640 = vcmp.ne.s32.totalorder %v3624, 0
        %vm3641 = vcmp.ne.s32.totalorder %v3631, 0
        %vm3642 = vcmp.ne.s32.totalorder %v3638, 0
        %vm3643 = vcmp.lt.s32.totalorder %v3617, 0
        %vm3644 = vcmp.lt.s32.totalorder %v3624, 0
        %vm3645 = vcmp.lt.s32.totalorder %v3631, 0
        %vm3646 = vcmp.lt.s32.totalorder %v3638, 0
        %vm3647 = vmand %vm3643, %vm3639
        %vm3648 = vmand %vm3644, %vm3640
        %vm3649 = vmand %vm3645, %vm3641
        %vm3650 = vmand %vm3646, %vm3642
        %v3651 = vadd.s32 %v3617, 8
        %v3652 = vadd.s32 %v3624, 8
        %v3653 = vadd.s32 %v3631, 8
        %v3654 = vadd.s32 %v3638, 8
        %v3655 = vsel %vm3647, %v3651, %v3617
        %v3656 = vsel %vm3648, %v3652, %v3624
        %v3657 = vsel %vm3649, %v3653, %v3631
        %v3658 = vsel %vm3650, %v3654, %v3638
        %vm3659 = vcmp.eq.s32.totalorder %v3655, 0
        %vm3660 = vcmp.eq.s32.totalorder %v3656, 0
        %vm3661 = vcmp.eq.s32.totalorder %v3657, 0
        %vm3662 = vcmp.eq.s32.totalorder %v3658, 0
        %v3663 = vsel %vm3659, 1, 0
        %v3664 = vsel %vm3660, 1, 0
        %v3665 = vsel %vm3661, 1, 0
        %v3666 = vsel %vm3662, 1, 0
        %vm3667 = vcmp.eq.s32.totalorder %v3663, 1
        %vm3668 = vcmp.eq.s32.totalorder %v3664, 1
        %vm3669 = vcmp.eq.s32.totalorder %v3665, 1
        %vm3670 = vcmp.eq.s32.totalorder %v3666, 1
        %v3671 = vsel %vm3667, %v3603, 0.0
        %v3672 = vsel %vm3668, %v3605, 0.0
        %v3673 = vsel %vm3669, %v3607, 0.0
        %v3674 = vsel %vm3670, %v3609, 0.0
        %v3675 = vsel %vm3667, %v3604, 0.0
        %v3676 = vsel %vm3668, %v3606, 0.0
        %v3677 = vsel %vm3669, %v3608, 0.0
        %v3678 = vsel %vm3670, %v3610, 0.0
        %v3683 = vrot.slane %v3675, 4
        %v3684 = vrot.slane %v3676, 4
        %v3685 = vsel %vm2314, %v3683, %v3684
        %v3686 = vrot.slane %v3677, 4
        %v3687 = vsel %vm2314, %v3684, %v3686
        %v3688 = vrot.slane %v3678, 4
        %v3689 = vsel %vm2314, %v3686, %v3688
        %v3694 = vsel %vm2314, 0.0, %v3683
        %v3695 = vadd.f32 %v3671, %v3694
        %v3696 = vadd.f32 %v3672, %v3685
        %v3697 = vadd.f32 %v3673, %v3687
        %v3698 = vadd.f32 %v3674, %v3689
        %v3699 = vld [vmem:[%s12] sm:$0x1]
        %v3701 = vlaneseq
        %v3702 = vshrl.u32 %v3701, 7
        %v3703 = vsub.s32 0, %v3702
        %v3704 = vrot.slane %v3699, %v3703
        %v3706 = vadd.f32 %v3695, %v3704
        %v3707 = vadd.f32 %v3696, %v3704
        %v3708 = vadd.f32 %v3697, %v3704
        %v3709 = vadd.f32 %v3698, %v3704
        %v3710 = vmax.f32 %v3706, 0.0
        %v3711 = vmax.f32 %v3707, 0.0
        %v3712 = vmax.f32 %v3708, 0.0
        %v3713 = vmax.f32 %v3709, 0.0
        %v3714 = vpack.c.bf16 %v3711, %v3710
        %v3715 = vpack.c.bf16 %v3713, %v3712
        %s3716 = scalar_lea.vmem [#allocation9], 128
        %v3717 = vld [vmem:[%s3716] sm:$0xff]
        %v3718 = vld [vmem:[%s3716 + $0x8] sm:$0xff]
        %v3719 = vld [vmem:[%s3716 + $0x10] sm:$0xff]
        %v3720 = vld [vmem:[%s3716 + $0x18] sm:$0xff]
        %v3721 = vld [vmem:[%s3716 + $0x20] sm:$0xff]
        %v3722 = vld [vmem:[%s3716 + $0x28] sm:$0xff]
        %v3723 = vld [vmem:[%s3716 + $0x30] sm:$0xff]
        %v3724 = vld [vmem:[%s3716 + $0x38] sm:$0xff]
        %v3725 = vld [vmem:[%s3716 + $0x40] sm:$0xff]
        %v3726 = vld [vmem:[%s3716 + $0x48] sm:$0xff]
        %v3727 = vld [vmem:[%s3716 + $0x50] sm:$0xff]
        %v3728 = vld [vmem:[%s3716 + $0x58] sm:$0xff]
        %v3729 = vld [vmem:[%s3716 + $0x60] sm:$0xff]
        %v3730 = vld [vmem:[%s3716 + $0x68] sm:$0xff]
        %v3731 = vld [vmem:[%s3716 + $0x70] sm:$0xff]
        %v3732 = vld [vmem:[%s3716 + $0x78] sm:$0xff]
        %v3735 = vrot.slane %v3714, 6
        %v3736 = vrot.slane %v3715, 6
        %v3737 = vsel %vm1765, %v3735, %v3736
        %v3740 = vsel %vm1770, 0, %v3735
        %v3742 = vsel %vm1796, %v3740, 0
        %v3743 = vsel %vm1797, %v3737, 0
        %v3744 = vrot.slane %v3714, 2
        %v3745 = vrot.slane %v3715, 2
        %v3746 = vsel %vm1804, %v3744, %v3745
        %v3749 = vsel %vm1723, %v3745, 0
        %v3751 = vsel %vm1834, %v3746, 0
        %v3752 = vsel %vm1835, %v3749, 0
        %v3753 = vld [vmem:[#allocation9] sm:$0xff]
        %v3754 = vld [vmem:[#allocation9 + $0x8] sm:$0xff]
        %v3755 = vld [vmem:[#allocation9 + $0x10] sm:$0xff]
        %v3756 = vld [vmem:[#allocation9 + $0x18] sm:$0xff]
        %v3757 = vld [vmem:[#allocation9 + $0x20] sm:$0xff]
        %v3758 = vld [vmem:[#allocation9 + $0x28] sm:$0xff]
        %v3759 = vld [vmem:[#allocation9 + $0x30] sm:$0xff]
        %v3760 = vld [vmem:[#allocation9 + $0x38] sm:$0xff]
        %v3761 = vld [vmem:[#allocation9 + $0x40] sm:$0xff]
        %v3762 = vld [vmem:[#allocation9 + $0x48] sm:$0xff]
        %v3763 = vld [vmem:[#allocation9 + $0x50] sm:$0xff]
        %v3764 = vld [vmem:[#allocation9 + $0x58] sm:$0xff]
        %v3765 = vld [vmem:[#allocation9 + $0x60] sm:$0xff]
        %v3766 = vld [vmem:[#allocation9 + $0x68] sm:$0xff]
        %v3767 = vld [vmem:[#allocation9 + $0x70] sm:$0xff]
        %v3768 = vld [vmem:[#allocation9 + $0x78] sm:$0xff]
        %v3785 = vunpack.c.l.b16 %v3753
        %v3786 = vunpack.c.h.b16 %v3753
        %v3787 = vunpack.c.l.b16 %v3754
        %v3788 = vunpack.c.h.b16 %v3754
        %v3789 = vunpack.c.l.b16 %v3755
        %v3790 = vunpack.c.h.b16 %v3755
        %v3791 = vunpack.c.l.b16 %v3756
        %v3792 = vunpack.c.h.b16 %v3756
        %v3793 = vunpack.c.l.b16 %v3757
        %v3794 = vunpack.c.h.b16 %v3757
        %v3795 = vunpack.c.l.b16 %v3758
        %v3796 = vunpack.c.h.b16 %v3758
        %v3797 = vunpack.c.l.b16 %v3759
        %v3798 = vunpack.c.h.b16 %v3759
        %v3799 = vunpack.c.l.b16 %v3760
        %v3800 = vunpack.c.h.b16 %v3760
        %v3801 = vunpack.c.l.b16 %v3761
        %v3802 = vunpack.c.h.b16 %v3761
        %v3803 = vunpack.c.l.b16 %v3762
        %v3804 = vunpack.c.h.b16 %v3762
        %v3805 = vunpack.c.l.b16 %v3763
        %v3806 = vunpack.c.h.b16 %v3763
        %v3807 = vunpack.c.l.b16 %v3764
        %v3808 = vunpack.c.h.b16 %v3764
        %v3809 = vunpack.c.l.b16 %v3765
        %v3810 = vunpack.c.h.b16 %v3765
        %v3811 = vunpack.c.l.b16 %v3766
        %v3812 = vunpack.c.h.b16 %v3766
        %v3813 = vunpack.c.l.b16 %v3767
        %v3814 = vunpack.c.h.b16 %v3767
        %v3815 = vunpack.c.l.b16 %v3768
        %v3816 = vunpack.c.h.b16 %v3768
        %v3817 = vpack.c.b16 %v3787, %v3785
        %v3818 = vpack.c.b16 %v3788, %v3786
        %v3819 = vpack.c.b16 %v3791, %v3789
        %v3820 = vpack.c.b16 %v3792, %v3790
        %v3821 = vpack.c.b16 %v3795, %v3793
        %v3822 = vpack.c.b16 %v3796, %v3794
        %v3823 = vpack.c.b16 %v3799, %v3797
        %v3824 = vpack.c.b16 %v3800, %v3798
        %v3825 = vpack.c.b16 %v3803, %v3801
        %v3826 = vpack.c.b16 %v3804, %v3802
        %v3827 = vpack.c.b16 %v3807, %v3805
        %v3828 = vpack.c.b16 %v3808, %v3806
        %v3829 = vpack.c.b16 %v3811, %v3809
        %v3830 = vpack.c.b16 %v3812, %v3810
        %v3831 = vpack.c.b16 %v3815, %v3813
        %v3832 = vpack.c.b16 %v3816, %v3814
        %3849 = vmatprep.subr.bf16.mxu0 %v3832
        %3850 = vmatpush1.bf16.msra.mxu0 %v3831
        %3851 = vmatprep.subr.bf16.mxu0 %v3830
        %3852 = vmatpush1.bf16.msra.mxu0 %v3829
        %3853 = vmatprep.subr.bf16.mxu0 %v3828
        %3854 = vmatpush1.bf16.msra.mxu0 %v3827
        %3855 = vmatprep.subr.bf16.mxu0 %v3826
        %3856 = vmatpush1.bf16.msra.mxu0 %v3825
        %3857 = vmatprep.subr.bf16.mxu0 %v3824
        %3858 = vmatpush1.bf16.msra.mxu0 %v3823
        %3859 = vmatprep.subr.bf16.mxu0 %v3822
        %3860 = vmatpush1.bf16.msra.mxu0 %v3821
        %3861 = vmatprep.subr.bf16.mxu0 %v3820
        %3862 = vmatpush1.bf16.msra.mxu0 %v3819
        %3863 = vmatprep.subr.bf16.mxu0 %v3818
        %3864 = vmatpush1.bf16.msra.mxu0 %v3817
        %3865 = vmatprep.subr.bf16.mxu0 0
        %3866 = vmatpush2.bf16.msra.mxu0 0
        %3867 = vmatprep.subr.bf16.mxu0 0
        %3868 = vmatpush2.bf16.msra.mxu0 0
        %3869 = vmatprep.subr.bf16.mxu0 0
        %3870 = vmatpush2.bf16.msra.mxu0 0
        %3871 = vmatprep.subr.bf16.mxu0 0
        %3872 = vmatpush2.bf16.msra.mxu0 0
        %3873 = vmatprep.subr.bf16.mxu0 0
        %3874 = vmatpush2.bf16.msra.mxu0 0
        %3875 = vmatprep.subr.bf16.mxu0 0
        %3876 = vmatpush2.bf16.msra.mxu0 0
        %3877 = vmatprep.subr.bf16.mxu0 0
        %3878 = vmatpush2.bf16.msra.mxu0 0
        %3879 = vmatprep.subr.bf16.mxu0 0
        %3880 = vmatpush2.bf16.msra.mxu0 0
        %3881 = vmatprep.mubr.bf16.mxu0 0
        %3882 = vmatmul.mubr.bf16.gmra.mxu0 %v3742
        %v3883 = vpop.f32.mrf.mxu0
        %v3884 = vadd.f32 0.0, %v3883
        %v3885 = vpop.f32.mrf.mxu0
        %v3886 = vadd.f32 0.0, %v3885
        %v3887 = vpop.f32.mrf.mxu0
        %v3888 = vadd.f32 0.0, %v3887
        %v3889 = vpop.f32.mrf.mxu0
        %v3890 = vadd.f32 0.0, %v3889
        %3891 = vmatprep.mubr.bf16.mxu0 0
        %3892 = vmatmul.mubr.bf16.gmra.mxu0 %v3743
        %v3893 = vpop.f32.mrf.mxu0
        %v3894 = vadd.f32 0.0, %v3893
        %v3895 = vpop.f32.mrf.mxu0
        %v3896 = vadd.f32 0.0, %v3895
        %v3897 = vpop.f32.mrf.mxu0
        %v3898 = vadd.f32 0.0, %v3897
        %v3899 = vpop.f32.mrf.mxu0
        %v3900 = vadd.f32 0.0, %v3899
        %3901 = vdwg.mxu0
        %v3918 = vunpack.c.l.b16 %v3717
        %v3919 = vunpack.c.h.b16 %v3717
        %v3920 = vunpack.c.l.b16 %v3718
        %v3921 = vunpack.c.h.b16 %v3718
        %v3922 = vunpack.c.l.b16 %v3719
        %v3923 = vunpack.c.h.b16 %v3719
        %v3924 = vunpack.c.l.b16 %v3720
        %v3925 = vunpack.c.h.b16 %v3720
        %v3926 = vunpack.c.l.b16 %v3721
        %v3927 = vunpack.c.h.b16 %v3721
        %v3928 = vunpack.c.l.b16 %v3722
        %v3929 = vunpack.c.h.b16 %v3722
        %v3930 = vunpack.c.l.b16 %v3723
        %v3931 = vunpack.c.h.b16 %v3723
        %v3932 = vunpack.c.l.b16 %v3724
        %v3933 = vunpack.c.h.b16 %v3724
        %v3934 = vunpack.c.l.b16 %v3725
        %v3935 = vunpack.c.h.b16 %v3725
        %v3936 = vunpack.c.l.b16 %v3726
        %v3937 = vunpack.c.h.b16 %v3726
        %v3938 = vunpack.c.l.b16 %v3727
        %v3939 = vunpack.c.h.b16 %v3727
        %v3940 = vunpack.c.l.b16 %v3728
        %v3941 = vunpack.c.h.b16 %v3728
        %v3942 = vunpack.c.l.b16 %v3729
        %v3943 = vunpack.c.h.b16 %v3729
        %v3944 = vunpack.c.l.b16 %v3730
        %v3945 = vunpack.c.h.b16 %v3730
        %v3946 = vunpack.c.l.b16 %v3731
        %v3947 = vunpack.c.h.b16 %v3731
        %v3948 = vunpack.c.l.b16 %v3732
        %v3949 = vunpack.c.h.b16 %v3732
        %v3950 = vpack.c.b16 %v3920, %v3918
        %v3951 = vpack.c.b16 %v3921, %v3919
        %v3952 = vpack.c.b16 %v3924, %v3922
        %v3953 = vpack.c.b16 %v3925, %v3923
        %v3954 = vpack.c.b16 %v3928, %v3926
        %v3955 = vpack.c.b16 %v3929, %v3927
        %v3956 = vpack.c.b16 %v3932, %v3930
        %v3957 = vpack.c.b16 %v3933, %v3931
        %v3958 = vpack.c.b16 %v3936, %v3934
        %v3959 = vpack.c.b16 %v3937, %v3935
        %v3960 = vpack.c.b16 %v3940, %v3938
        %v3961 = vpack.c.b16 %v3941, %v3939
        %v3962 = vpack.c.b16 %v3944, %v3942
        %v3963 = vpack.c.b16 %v3945, %v3943
        %v3964 = vpack.c.b16 %v3948, %v3946
        %v3965 = vpack.c.b16 %v3949, %v3947
        %3982 = vmatprep.subr.bf16.mxu0 %v3965
        %3983 = vmatpush1.bf16.msra.mxu0 %v3964
        %3984 = vmatprep.subr.bf16.mxu0 %v3963
        %3985 = vmatpush1.bf16.msra.mxu0 %v3962
        %3986 = vmatprep.subr.bf16.mxu0 %v3961
        %3987 = vmatpush1.bf16.msra.mxu0 %v3960
        %3988 = vmatprep.subr.bf16.mxu0 %v3959
        %3989 = vmatpush1.bf16.msra.mxu0 %v3958
        %3990 = vmatprep.subr.bf16.mxu0 %v3957
        %3991 = vmatpush1.bf16.msra.mxu0 %v3956
        %3992 = vmatprep.subr.bf16.mxu0 %v3955
        %3993 = vmatpush1.bf16.msra.mxu0 %v3954
        %3994 = vmatprep.subr.bf16.mxu0 %v3953
        %3995 = vmatpush1.bf16.msra.mxu0 %v3952
        %3996 = vmatprep.subr.bf16.mxu0 %v3951
        %3997 = vmatpush1.bf16.msra.mxu0 %v3950
        %3998 = vmatprep.subr.bf16.mxu0 0
        %3999 = vmatpush2.bf16.msra.mxu0 0
        %4000 = vmatprep.subr.bf16.mxu0 0
        %4001 = vmatpush2.bf16.msra.mxu0 0
        %4002 = vmatprep.subr.bf16.mxu0 0
        %4003 = vmatpush2.bf16.msra.mxu0 0
        %4004 = vmatprep.subr.bf16.mxu0 0
        %4005 = vmatpush2.bf16.msra.mxu0 0
        %4006 = vmatprep.subr.bf16.mxu0 0
        %4007 = vmatpush2.bf16.msra.mxu0 0
        %4008 = vmatprep.subr.bf16.mxu0 0
        %4009 = vmatpush2.bf16.msra.mxu0 0
        %4010 = vmatprep.subr.bf16.mxu0 0
        %4011 = vmatpush2.bf16.msra.mxu0 0
        %4012 = vmatprep.subr.bf16.mxu0 0
        %4013 = vmatpush2.bf16.msra.mxu0 0
        %4014 = vmatprep.mubr.bf16.mxu0 0
        %4015 = vmatmul.mubr.bf16.gmra.mxu0 %v3714
        %v4016 = vpop.f32.mrf.mxu0
        %v4017 = vadd.f32 %v3884, %v4016
        %v4018 = vpop.f32.mrf.mxu0
        %v4019 = vadd.f32 %v3886, %v4018
        %v4020 = vpop.f32.mrf.mxu0
        %v4021 = vadd.f32 %v3888, %v4020
        %v4022 = vpop.f32.mrf.mxu0
        %v4023 = vadd.f32 %v3890, %v4022
        %4024 = vmatprep.mubr.bf16.mxu0 0
        %4025 = vmatmul.mubr.bf16.gmra.mxu0 %v3715
        %v4026 = vpop.f32.mrf.mxu0
        %v4027 = vadd.f32 %v3894, %v4026
        %v4028 = vpop.f32.mrf.mxu0
        %v4029 = vadd.f32 %v3896, %v4028
        %v4030 = vpop.f32.mrf.mxu0
        %v4031 = vadd.f32 %v3898, %v4030
        %v4032 = vpop.f32.mrf.mxu0
        %v4033 = vadd.f32 %v3900, %v4032
        %4034 = vdwg.mxu0
        %s4035 = scalar_lea.vmem [#allocation9], 256
        %v4036 = vld [vmem:[%s4035] sm:$0xff]
        %v4037 = vld [vmem:[%s4035 + $0x8] sm:$0xff]
        %v4038 = vld [vmem:[%s4035 + $0x10] sm:$0xff]
        %v4039 = vld [vmem:[%s4035 + $0x18] sm:$0xff]
        %v4040 = vld [vmem:[%s4035 + $0x20] sm:$0xff]
        %v4041 = vld [vmem:[%s4035 + $0x28] sm:$0xff]
        %v4042 = vld [vmem:[%s4035 + $0x30] sm:$0xff]
        %v4043 = vld [vmem:[%s4035 + $0x38] sm:$0xff]
        %v4044 = vld [vmem:[%s4035 + $0x40] sm:$0xff]
        %v4045 = vld [vmem:[%s4035 + $0x48] sm:$0xff]
        %v4046 = vld [vmem:[%s4035 + $0x50] sm:$0xff]
        %v4047 = vld [vmem:[%s4035 + $0x58] sm:$0xff]
        %v4048 = vld [vmem:[%s4035 + $0x60] sm:$0xff]
        %v4049 = vld [vmem:[%s4035 + $0x68] sm:$0xff]
        %v4050 = vld [vmem:[%s4035 + $0x70] sm:$0xff]
        %v4051 = vld [vmem:[%s4035 + $0x78] sm:$0xff]
        %v4068 = vunpack.c.l.b16 %v4036
        %v4069 = vunpack.c.h.b16 %v4036
        %v4070 = vunpack.c.l.b16 %v4037
        %v4071 = vunpack.c.h.b16 %v4037
        %v4072 = vunpack.c.l.b16 %v4038
        %v4073 = vunpack.c.h.b16 %v4038
        %v4074 = vunpack.c.l.b16 %v4039
        %v4075 = vunpack.c.h.b16 %v4039
        %v4076 = vunpack.c.l.b16 %v4040
        %v4077 = vunpack.c.h.b16 %v4040
        %v4078 = vunpack.c.l.b16 %v4041
        %v4079 = vunpack.c.h.b16 %v4041
        %v4080 = vunpack.c.l.b16 %v4042
        %v4081 = vunpack.c.h.b16 %v4042
        %v4082 = vunpack.c.l.b16 %v4043
        %v4083 = vunpack.c.h.b16 %v4043
        %v4084 = vunpack.c.l.b16 %v4044
        %v4085 = vunpack.c.h.b16 %v4044
        %v4086 = vunpack.c.l.b16 %v4045
        %v4087 = vunpack.c.h.b16 %v4045
        %v4088 = vunpack.c.l.b16 %v4046
        %v4089 = vunpack.c.h.b16 %v4046
        %v4090 = vunpack.c.l.b16 %v4047
        %v4091 = vunpack.c.h.b16 %v4047
        %v4092 = vunpack.c.l.b16 %v4048
        %v4093 = vunpack.c.h.b16 %v4048
        %v4094 = vunpack.c.l.b16 %v4049
        %v4095 = vunpack.c.h.b16 %v4049
        %v4096 = vunpack.c.l.b16 %v4050
        %v4097 = vunpack.c.h.b16 %v4050
        %v4098 = vunpack.c.l.b16 %v4051
        %v4099 = vunpack.c.h.b16 %v4051
        %v4100 = vpack.c.b16 %v4070, %v4068
        %v4101 = vpack.c.b16 %v4071, %v4069
        %v4102 = vpack.c.b16 %v4074, %v4072
        %v4103 = vpack.c.b16 %v4075, %v4073
        %v4104 = vpack.c.b16 %v4078, %v4076
        %v4105 = vpack.c.b16 %v4079, %v4077
        %v4106 = vpack.c.b16 %v4082, %v4080
        %v4107 = vpack.c.b16 %v4083, %v4081
        %v4108 = vpack.c.b16 %v4086, %v4084
        %v4109 = vpack.c.b16 %v4087, %v4085
        %v4110 = vpack.c.b16 %v4090, %v4088
        %v4111 = vpack.c.b16 %v4091, %v4089
        %v4112 = vpack.c.b16 %v4094, %v4092
        %v4113 = vpack.c.b16 %v4095, %v4093
        %v4114 = vpack.c.b16 %v4098, %v4096
        %v4115 = vpack.c.b16 %v4099, %v4097
        %4132 = vmatprep.subr.bf16.mxu0 %v4115
        %4133 = vmatpush1.bf16.msra.mxu0 %v4114
        %4134 = vmatprep.subr.bf16.mxu0 %v4113
        %4135 = vmatpush1.bf16.msra.mxu0 %v4112
        %4136 = vmatprep.subr.bf16.mxu0 %v4111
        %4137 = vmatpush1.bf16.msra.mxu0 %v4110
        %4138 = vmatprep.subr.bf16.mxu0 %v4109
        %4139 = vmatpush1.bf16.msra.mxu0 %v4108
        %4140 = vmatprep.subr.bf16.mxu0 %v4107
        %4141 = vmatpush1.bf16.msra.mxu0 %v4106
        %4142 = vmatprep.subr.bf16.mxu0 %v4105
        %4143 = vmatpush1.bf16.msra.mxu0 %v4104
        %4144 = vmatprep.subr.bf16.mxu0 %v4103
        %4145 = vmatpush1.bf16.msra.mxu0 %v4102
        %4146 = vmatprep.subr.bf16.mxu0 %v4101
        %4147 = vmatpush1.bf16.msra.mxu0 %v4100
        %4148 = vmatprep.subr.bf16.mxu0 0
        %4149 = vmatpush2.bf16.msra.mxu0 0
        %4150 = vmatprep.subr.bf16.mxu0 0
        %4151 = vmatpush2.bf16.msra.mxu0 0
        %4152 = vmatprep.subr.bf16.mxu0 0
        %4153 = vmatpush2.bf16.msra.mxu0 0
        %4154 = vmatprep.subr.bf16.mxu0 0
        %4155 = vmatpush2.bf16.msra.mxu0 0
        %4156 = vmatprep.subr.bf16.mxu0 0
        %4157 = vmatpush2.bf16.msra.mxu0 0
        %4158 = vmatprep.subr.bf16.mxu0 0
        %4159 = vmatpush2.bf16.msra.mxu0 0
        %4160 = vmatprep.subr.bf16.mxu0 0
        %4161 = vmatpush2.bf16.msra.mxu0 0
        %4162 = vmatprep.subr.bf16.mxu0 0
        %4163 = vmatpush2.bf16.msra.mxu0 0
        %4164 = vmatprep.mubr.bf16.mxu0 0
        %4165 = vmatmul.mubr.bf16.gmra.mxu0 %v3751
        %v4166 = vpop.f32.mrf.mxu0
        %v4167 = vadd.f32 0.0, %v4166
        %v4168 = vpop.f32.mrf.mxu0
        %v4169 = vadd.f32 0.0, %v4168
        %v4170 = vpop.f32.mrf.mxu0
        %v4171 = vadd.f32 0.0, %v4170
        %v4172 = vpop.f32.mrf.mxu0
        %v4173 = vadd.f32 0.0, %v4172
        %4174 = vmatprep.mubr.bf16.mxu0 0
        %4175 = vmatmul.mubr.bf16.gmra.mxu0 %v3752
        %v4176 = vpop.f32.mrf.mxu0
        %v4177 = vadd.f32 0.0, %v4176
        %v4178 = vpop.f32.mrf.mxu0
        %v4179 = vadd.f32 0.0, %v4178
        %v4180 = vpop.f32.mrf.mxu0
        %v4181 = vadd.f32 0.0, %v4180
        %v4182 = vpop.f32.mrf.mxu0
        %v4183 = vadd.f32 0.0, %v4182
        %4184 = vdwg.mxu0
        %v4185 = vadd.f32 %v4017, %v4167
        %v4186 = vadd.f32 %v4019, %v4169
        %v4187 = vadd.f32 %v4021, %v4171
        %v4188 = vadd.f32 %v4023, %v4173
        %v4189 = vadd.f32 %v4027, %v4177
        %v4190 = vadd.f32 %v4029, %v4179
        %v4191 = vadd.f32 %v4031, %v4181
        %v4192 = vadd.f32 %v4033, %v4183
        %vm4193 = vcmp.lt.s32.totalorder %v692, 0
        %v4194 = vsub.s32 0, %v692
        %v4195 = vsel %vm4193, %v4194, %v692
        %v4196 = vshrl.u32 %v4195, 2
        %v4197 = vand.u32 %v4195, 3
        %v4198 = vsub.s32 0, %v4197
        %v4199 = vsel %vm4193, %v4198, %v4197
        %vm4200 = vcmp.lt.s32.totalorder %v693, 0
        %v4201 = vsub.s32 0, %v693
        %v4202 = vsel %vm4200, %v4201, %v693
        %v4203 = vshrl.u32 %v4202, 2
        %v4204 = vand.u32 %v4202, 3
        %v4205 = vsub.s32 0, %v4204
        %v4206 = vsel %vm4200, %v4205, %v4204
        %vm4207 = vcmp.lt.s32.totalorder %v694, 0
        %v4208 = vsub.s32 0, %v694
        %v4209 = vsel %vm4207, %v4208, %v694
        %v4210 = vshrl.u32 %v4209, 2
        %v4211 = vand.u32 %v4209, 3
        %v4212 = vsub.s32 0, %v4211
        %v4213 = vsel %vm4207, %v4212, %v4211
        %vm4214 = vcmp.lt.s32.totalorder %v695, 0
        %v4215 = vsub.s32 0, %v695
        %v4216 = vsel %vm4214, %v4215, %v695
        %v4217 = vshrl.u32 %v4216, 2
        %v4218 = vand.u32 %v4216, 3
        %v4219 = vsub.s32 0, %v4218
        %v4220 = vsel %vm4214, %v4219, %v4218
        %vm4221 = vcmp.ne.s32.totalorder %v4199, 0
        %vm4222 = vcmp.ne.s32.totalorder %v4206, 0
        %vm4223 = vcmp.ne.s32.totalorder %v4213, 0
        %vm4224 = vcmp.ne.s32.totalorder %v4220, 0
        %vm4225 = vcmp.lt.s32.totalorder %v4199, 0
        %vm4226 = vcmp.lt.s32.totalorder %v4206, 0
        %vm4227 = vcmp.lt.s32.totalorder %v4213, 0
        %vm4228 = vcmp.lt.s32.totalorder %v4220, 0
        %vm4229 = vmand %vm4225, %vm4221
        %vm4230 = vmand %vm4226, %vm4222
        %vm4231 = vmand %vm4227, %vm4223
        %vm4232 = vmand %vm4228, %vm4224
        %v4233 = vadd.s32 %v4199, 4
        %v4234 = vadd.s32 %v4206, 4
        %v4235 = vadd.s32 %v4213, 4
        %v4236 = vadd.s32 %v4220, 4
        %v4237 = vsel %vm4229, %v4233, %v4199
        %v4238 = vsel %vm4230, %v4234, %v4206
        %v4239 = vsel %vm4231, %v4235, %v4213
        %v4240 = vsel %vm4232, %v4236, %v4220
        %vm4241 = vcmp.eq.s32.totalorder %v4237, 0
        %vm4242 = vcmp.eq.s32.totalorder %v4238, 0
        %vm4243 = vcmp.eq.s32.totalorder %v4239, 0
        %vm4244 = vcmp.eq.s32.totalorder %v4240, 0
        %v4245 = vsel %vm4241, 1, 0
        %v4246 = vsel %vm4242, 1, 0
        %v4247 = vsel %vm4243, 1, 0
        %v4248 = vsel %vm4244, 1, 0
        %vm4249 = vcmp.eq.s32.totalorder %v4245, 1
        %vm4250 = vcmp.eq.s32.totalorder %v4246, 1
        %vm4251 = vcmp.eq.s32.totalorder %v4247, 1
        %vm4252 = vcmp.eq.s32.totalorder %v4248, 1
        %v4253 = vsel %vm4249, %v4185, 0.0
        %v4254 = vsel %vm4250, %v4187, 0.0
        %v4255 = vsel %vm4251, %v4189, 0.0
        %v4256 = vsel %vm4252, %v4191, 0.0
        %v4257 = vsel %vm4249, %v4186, 0.0
        %v4258 = vsel %vm4250, %v4188, 0.0
        %v4259 = vsel %vm4251, %v4190, 0.0
        %v4260 = vsel %vm4252, %v4192, 0.0
        %v4265 = vrot.slane %v4257, 6
        %v4266 = vrot.slane %v4258, 6
        %v4267 = vsel %vm1770, %v4265, %v4266
        %v4268 = vrot.slane %v4259, 6
        %v4269 = vsel %vm1770, %v4266, %v4268
        %v4270 = vrot.slane %v4260, 6
        %v4271 = vsel %vm1770, %v4268, %v4270
        %v4276 = vsel %vm1770, 0.0, %v4265
        %v4277 = vadd.f32 %v4253, %v4276
        %v4278 = vadd.f32 %v4254, %v4267
        %v4279 = vadd.f32 %v4255, %v4269
        %v4280 = vadd.f32 %v4256, %v4271
        %v4281 = vld [vmem:[%s14] sm:$0x1]
        %v4283 = vlaneseq
        %v4284 = vshrl.u32 %v4283, 7
        %v4285 = vsub.s32 0, %v4284
        %v4286 = vrot.slane %v4281, %v4285
        %v4288 = vadd.f32 %v4277, %v4286
        %v4289 = vadd.f32 %v4278, %v4286
        %v4290 = vadd.f32 %v4279, %v4286
        %v4291 = vadd.f32 %v4280, %v4286
        %v4292 = vmax.f32 %v4288, 0.0
        %v4293 = vmax.f32 %v4289, 0.0
        %v4294 = vmax.f32 %v4290, 0.0
        %v4295 = vmax.f32 %v4291, 0.0
        %v4296 = vpack.c.bf16 %v4293, %v4292
        %v4297 = vpack.c.bf16 %v4295, %v4294
        %s4298 = scalar_lea.vmem [#allocation10], 128
        %v4299 = vld [vmem:[%s4298] sm:$0xff]
        %v4300 = vld [vmem:[%s4298 + $0x8] sm:$0xff]
        %v4301 = vld [vmem:[%s4298 + $0x10] sm:$0xff]
        %v4302 = vld [vmem:[%s4298 + $0x18] sm:$0xff]
        %v4303 = vld [vmem:[%s4298 + $0x20] sm:$0xff]
        %v4304 = vld [vmem:[%s4298 + $0x28] sm:$0xff]
        %v4305 = vld [vmem:[%s4298 + $0x30] sm:$0xff]
        %v4306 = vld [vmem:[%s4298 + $0x38] sm:$0xff]
        %v4307 = vld [vmem:[%s4298 + $0x40] sm:$0xff]
        %v4308 = vld [vmem:[%s4298 + $0x48] sm:$0xff]
        %v4309 = vld [vmem:[%s4298 + $0x50] sm:$0xff]
        %v4310 = vld [vmem:[%s4298 + $0x58] sm:$0xff]
        %v4311 = vld [vmem:[%s4298 + $0x60] sm:$0xff]
        %v4312 = vld [vmem:[%s4298 + $0x68] sm:$0xff]
        %v4313 = vld [vmem:[%s4298 + $0x70] sm:$0xff]
        %v4314 = vld [vmem:[%s4298 + $0x78] sm:$0xff]
        %v4317 = vrot.slane %v4296, 7
        %v4318 = vrot.slane %v4297, 7
        %v4319 = vsel %vm739, %v4317, %v4318
        %v4322 = vsel %vm1178, 0, %v4317
        %v4324 = vsel %vm1205, %v4322, 0
        %v4325 = vsel %vm1206, %v4319, 0
        %v4326 = vrot.slane %v4296, 1
        %v4327 = vrot.slane %v4297, 1
        %v4328 = vsel %vm1213, %v4326, %v4327
        %v4331 = vsel %vm1132, %v4327, 0
        %v4333 = vsel %vm1243, %v4328, 0
        %v4334 = vsel %vm1244, %v4331, 0
        %v4335 = vld [vmem:[#allocation10] sm:$0xff]
        %v4336 = vld [vmem:[#allocation10 + $0x8] sm:$0xff]
        %v4337 = vld [vmem:[#allocation10 + $0x10] sm:$0xff]
        %v4338 = vld [vmem:[#allocation10 + $0x18] sm:$0xff]
        %v4339 = vld [vmem:[#allocation10 + $0x20] sm:$0xff]
        %v4340 = vld [vmem:[#allocation10 + $0x28] sm:$0xff]
        %v4341 = vld [vmem:[#allocation10 + $0x30] sm:$0xff]
        %v4342 = vld [vmem:[#allocation10 + $0x38] sm:$0xff]
        %v4343 = vld [vmem:[#allocation10 + $0x40] sm:$0xff]
        %v4344 = vld [vmem:[#allocation10 + $0x48] sm:$0xff]
        %v4345 = vld [vmem:[#allocation10 + $0x50] sm:$0xff]
        %v4346 = vld [vmem:[#allocation10 + $0x58] sm:$0xff]
        %v4347 = vld [vmem:[#allocation10 + $0x60] sm:$0xff]
        %v4348 = vld [vmem:[#allocation10 + $0x68] sm:$0xff]
        %v4349 = vld [vmem:[#allocation10 + $0x70] sm:$0xff]
        %v4350 = vld [vmem:[#allocation10 + $0x78] sm:$0xff]
        %v4367 = vunpack.c.l.b16 %v4335
        %v4368 = vunpack.c.h.b16 %v4335
        %v4369 = vunpack.c.l.b16 %v4336
        %v4370 = vunpack.c.h.b16 %v4336
        %v4371 = vunpack.c.l.b16 %v4337
        %v4372 = vunpack.c.h.b16 %v4337
        %v4373 = vunpack.c.l.b16 %v4338
        %v4374 = vunpack.c.h.b16 %v4338
        %v4375 = vunpack.c.l.b16 %v4339
        %v4376 = vunpack.c.h.b16 %v4339
        %v4377 = vunpack.c.l.b16 %v4340
        %v4378 = vunpack.c.h.b16 %v4340
        %v4379 = vunpack.c.l.b16 %v4341
        %v4380 = vunpack.c.h.b16 %v4341
        %v4381 = vunpack.c.l.b16 %v4342
        %v4382 = vunpack.c.h.b16 %v4342
        %v4383 = vunpack.c.l.b16 %v4343
        %v4384 = vunpack.c.h.b16 %v4343
        %v4385 = vunpack.c.l.b16 %v4344
        %v4386 = vunpack.c.h.b16 %v4344
        %v4387 = vunpack.c.l.b16 %v4345
        %v4388 = vunpack.c.h.b16 %v4345
        %v4389 = vunpack.c.l.b16 %v4346
        %v4390 = vunpack.c.h.b16 %v4346
        %v4391 = vunpack.c.l.b16 %v4347
        %v4392 = vunpack.c.h.b16 %v4347
        %v4393 = vunpack.c.l.b16 %v4348
        %v4394 = vunpack.c.h.b16 %v4348
        %v4395 = vunpack.c.l.b16 %v4349
        %v4396 = vunpack.c.h.b16 %v4349
        %v4397 = vunpack.c.l.b16 %v4350
        %v4398 = vunpack.c.h.b16 %v4350
        %v4399 = vpack.c.b16 %v4369, %v4367
        %v4400 = vpack.c.b16 %v4370, %v4368
        %v4401 = vpack.c.b16 %v4373, %v4371
        %v4402 = vpack.c.b16 %v4374, %v4372
        %v4403 = vpack.c.b16 %v4377, %v4375
        %v4404 = vpack.c.b16 %v4378, %v4376
        %v4405 = vpack.c.b16 %v4381, %v4379
        %v4406 = vpack.c.b16 %v4382, %v4380
        %v4407 = vpack.c.b16 %v4385, %v4383
        %v4408 = vpack.c.b16 %v4386, %v4384
        %v4409 = vpack.c.b16 %v4389, %v4387
        %v4410 = vpack.c.b16 %v4390, %v4388
        %v4411 = vpack.c.b16 %v4393, %v4391
        %v4412 = vpack.c.b16 %v4394, %v4392
        %v4413 = vpack.c.b16 %v4397, %v4395
        %v4414 = vpack.c.b16 %v4398, %v4396
        %4431 = vmatprep.subr.bf16.mxu0 %v4414
        %4432 = vmatpush1.bf16.msra.mxu0 %v4413
        %4433 = vmatprep.subr.bf16.mxu0 %v4412
        %4434 = vmatpush1.bf16.msra.mxu0 %v4411
        %4435 = vmatprep.subr.bf16.mxu0 %v4410
        %4436 = vmatpush1.bf16.msra.mxu0 %v4409
        %4437 = vmatprep.subr.bf16.mxu0 %v4408
        %4438 = vmatpush1.bf16.msra.mxu0 %v4407
        %4439 = vmatprep.subr.bf16.mxu0 %v4406
        %4440 = vmatpush1.bf16.msra.mxu0 %v4405
        %4441 = vmatprep.subr.bf16.mxu0 %v4404
        %4442 = vmatpush1.bf16.msra.mxu0 %v4403
        %4443 = vmatprep.subr.bf16.mxu0 %v4402
        %4444 = vmatpush1.bf16.msra.mxu0 %v4401
        %4445 = vmatprep.subr.bf16.mxu0 %v4400
        %4446 = vmatpush1.bf16.msra.mxu0 %v4399
        %4447 = vmatprep.subr.bf16.mxu0 0
        %4448 = vmatpush2.bf16.msra.mxu0 0
        %4449 = vmatprep.subr.bf16.mxu0 0
        %4450 = vmatpush2.bf16.msra.mxu0 0
        %4451 = vmatprep.subr.bf16.mxu0 0
        %4452 = vmatpush2.bf16.msra.mxu0 0
        %4453 = vmatprep.subr.bf16.mxu0 0
        %4454 = vmatpush2.bf16.msra.mxu0 0
        %4455 = vmatprep.subr.bf16.mxu0 0
        %4456 = vmatpush2.bf16.msra.mxu0 0
        %4457 = vmatprep.subr.bf16.mxu0 0
        %4458 = vmatpush2.bf16.msra.mxu0 0
        %4459 = vmatprep.subr.bf16.mxu0 0
        %4460 = vmatpush2.bf16.msra.mxu0 0
        %4461 = vmatprep.subr.bf16.mxu0 0
        %4462 = vmatpush2.bf16.msra.mxu0 0
        %4463 = vmatprep.mubr.bf16.mxu0 0
        %4464 = vmatmul.mubr.bf16.gmra.mxu0 %v4324
        %v4465 = vpop.f32.mrf.mxu0
        %v4466 = vadd.f32 0.0, %v4465
        %v4467 = vpop.f32.mrf.mxu0
        %v4468 = vadd.f32 0.0, %v4467
        %v4469 = vpop.f32.mrf.mxu0
        %v4470 = vadd.f32 0.0, %v4469
        %v4471 = vpop.f32.mrf.mxu0
        %v4472 = vadd.f32 0.0, %v4471
        %4473 = vmatprep.mubr.bf16.mxu0 0
        %4474 = vmatmul.mubr.bf16.gmra.mxu0 %v4325
        %v4475 = vpop.f32.mrf.mxu0
        %v4476 = vadd.f32 0.0, %v4475
        %v4477 = vpop.f32.mrf.mxu0
        %v4478 = vadd.f32 0.0, %v4477
        %v4479 = vpop.f32.mrf.mxu0
        %v4480 = vadd.f32 0.0, %v4479
        %v4481 = vpop.f32.mrf.mxu0
        %v4482 = vadd.f32 0.0, %v4481
        %4483 = vdwg.mxu0
        %v4500 = vunpack.c.l.b16 %v4299
        %v4501 = vunpack.c.h.b16 %v4299
        %v4502 = vunpack.c.l.b16 %v4300
        %v4503 = vunpack.c.h.b16 %v4300
        %v4504 = vunpack.c.l.b16 %v4301
        %v4505 = vunpack.c.h.b16 %v4301
        %v4506 = vunpack.c.l.b16 %v4302
        %v4507 = vunpack.c.h.b16 %v4302
        %v4508 = vunpack.c.l.b16 %v4303
        %v4509 = vunpack.c.h.b16 %v4303
        %v4510 = vunpack.c.l.b16 %v4304
        %v4511 = vunpack.c.h.b16 %v4304
        %v4512 = vunpack.c.l.b16 %v4305
        %v4513 = vunpack.c.h.b16 %v4305
        %v4514 = vunpack.c.l.b16 %v4306
        %v4515 = vunpack.c.h.b16 %v4306
        %v4516 = vunpack.c.l.b16 %v4307
        %v4517 = vunpack.c.h.b16 %v4307
        %v4518 = vunpack.c.l.b16 %v4308
        %v4519 = vunpack.c.h.b16 %v4308
        %v4520 = vunpack.c.l.b16 %v4309
        %v4521 = vunpack.c.h.b16 %v4309
        %v4522 = vunpack.c.l.b16 %v4310
        %v4523 = vunpack.c.h.b16 %v4310
        %v4524 = vunpack.c.l.b16 %v4311
        %v4525 = vunpack.c.h.b16 %v4311
        %v4526 = vunpack.c.l.b16 %v4312
        %v4527 = vunpack.c.h.b16 %v4312
        %v4528 = vunpack.c.l.b16 %v4313
        %v4529 = vunpack.c.h.b16 %v4313
        %v4530 = vunpack.c.l.b16 %v4314
        %v4531 = vunpack.c.h.b16 %v4314
        %v4532 = vpack.c.b16 %v4502, %v4500
        %v4533 = vpack.c.b16 %v4503, %v4501
        %v4534 = vpack.c.b16 %v4506, %v4504
        %v4535 = vpack.c.b16 %v4507, %v4505
        %v4536 = vpack.c.b16 %v4510, %v4508
        %v4537 = vpack.c.b16 %v4511, %v4509
        %v4538 = vpack.c.b16 %v4514, %v4512
        %v4539 = vpack.c.b16 %v4515, %v4513
        %v4540 = vpack.c.b16 %v4518, %v4516
        %v4541 = vpack.c.b16 %v4519, %v4517
        %v4542 = vpack.c.b16 %v4522, %v4520
        %v4543 = vpack.c.b16 %v4523, %v4521
        %v4544 = vpack.c.b16 %v4526, %v4524
        %v4545 = vpack.c.b16 %v4527, %v4525
        %v4546 = vpack.c.b16 %v4530, %v4528
        %v4547 = vpack.c.b16 %v4531, %v4529
        %4564 = vmatprep.subr.bf16.mxu0 %v4547
        %4565 = vmatpush1.bf16.msra.mxu0 %v4546
        %4566 = vmatprep.subr.bf16.mxu0 %v4545
        %4567 = vmatpush1.bf16.msra.mxu0 %v4544
        %4568 = vmatprep.subr.bf16.mxu0 %v4543
        %4569 = vmatpush1.bf16.msra.mxu0 %v4542
        %4570 = vmatprep.subr.bf16.mxu0 %v4541
        %4571 = vmatpush1.bf16.msra.mxu0 %v4540
        %4572 = vmatprep.subr.bf16.mxu0 %v4539
        %4573 = vmatpush1.bf16.msra.mxu0 %v4538
        %4574 = vmatprep.subr.bf16.mxu0 %v4537
        %4575 = vmatpush1.bf16.msra.mxu0 %v4536
        %4576 = vmatprep.subr.bf16.mxu0 %v4535
        %4577 = vmatpush1.bf16.msra.mxu0 %v4534
        %4578 = vmatprep.subr.bf16.mxu0 %v4533
        %4579 = vmatpush1.bf16.msra.mxu0 %v4532
        %4580 = vmatprep.subr.bf16.mxu0 0
        %4581 = vmatpush2.bf16.msra.mxu0 0
        %4582 = vmatprep.subr.bf16.mxu0 0
        %4583 = vmatpush2.bf16.msra.mxu0 0
        %4584 = vmatprep.subr.bf16.mxu0 0
        %4585 = vmatpush2.bf16.msra.mxu0 0
        %4586 = vmatprep.subr.bf16.mxu0 0
        %4587 = vmatpush2.bf16.msra.mxu0 0
        %4588 = vmatprep.subr.bf16.mxu0 0
        %4589 = vmatpush2.bf16.msra.mxu0 0
        %4590 = vmatprep.subr.bf16.mxu0 0
        %4591 = vmatpush2.bf16.msra.mxu0 0
        %4592 = vmatprep.subr.bf16.mxu0 0
        %4593 = vmatpush2.bf16.msra.mxu0 0
        %4594 = vmatprep.subr.bf16.mxu0 0
        %4595 = vmatpush2.bf16.msra.mxu0 0
        %4596 = vmatprep.mubr.bf16.mxu0 0
        %4597 = vmatmul.mubr.bf16.gmra.mxu0 %v4296
        %v4598 = vpop.f32.mrf.mxu0
        %v4599 = vadd.f32 %v4466, %v4598
        %v4600 = vpop.f32.mrf.mxu0
        %v4601 = vadd.f32 %v4468, %v4600
        %v4602 = vpop.f32.mrf.mxu0
        %v4603 = vadd.f32 %v4470, %v4602
        %v4604 = vpop.f32.mrf.mxu0
        %v4605 = vadd.f32 %v4472, %v4604
        %4606 = vmatprep.mubr.bf16.mxu0 0
        %4607 = vmatmul.mubr.bf16.gmra.mxu0 %v4297
        %v4608 = vpop.f32.mrf.mxu0
        %v4609 = vadd.f32 %v4476, %v4608
        %v4610 = vpop.f32.mrf.mxu0
        %v4611 = vadd.f32 %v4478, %v4610
        %v4612 = vpop.f32.mrf.mxu0
        %v4613 = vadd.f32 %v4480, %v4612
        %v4614 = vpop.f32.mrf.mxu0
        %v4615 = vadd.f32 %v4482, %v4614
        %4616 = vdwg.mxu0
        %s4617 = scalar_lea.vmem [#allocation10], 256
        %v4618 = vld [vmem:[%s4617] sm:$0xff]
        %v4619 = vld [vmem:[%s4617 + $0x8] sm:$0xff]
        %v4620 = vld [vmem:[%s4617 + $0x10] sm:$0xff]
        %v4621 = vld [vmem:[%s4617 + $0x18] sm:$0xff]
        %v4622 = vld [vmem:[%s4617 + $0x20] sm:$0xff]
        %v4623 = vld [vmem:[%s4617 + $0x28] sm:$0xff]
        %v4624 = vld [vmem:[%s4617 + $0x30] sm:$0xff]
        %v4625 = vld [vmem:[%s4617 + $0x38] sm:$0xff]
        %v4626 = vld [vmem:[%s4617 + $0x40] sm:$0xff]
        %v4627 = vld [vmem:[%s4617 + $0x48] sm:$0xff]
        %v4628 = vld [vmem:[%s4617 + $0x50] sm:$0xff]
        %v4629 = vld [vmem:[%s4617 + $0x58] sm:$0xff]
        %v4630 = vld [vmem:[%s4617 + $0x60] sm:$0xff]
        %v4631 = vld [vmem:[%s4617 + $0x68] sm:$0xff]
        %v4632 = vld [vmem:[%s4617 + $0x70] sm:$0xff]
        %v4633 = vld [vmem:[%s4617 + $0x78] sm:$0xff]
        %v4650 = vunpack.c.l.b16 %v4618
        %v4651 = vunpack.c.h.b16 %v4618
        %v4652 = vunpack.c.l.b16 %v4619
        %v4653 = vunpack.c.h.b16 %v4619
        %v4654 = vunpack.c.l.b16 %v4620
        %v4655 = vunpack.c.h.b16 %v4620
        %v4656 = vunpack.c.l.b16 %v4621
        %v4657 = vunpack.c.h.b16 %v4621
        %v4658 = vunpack.c.l.b16 %v4622
        %v4659 = vunpack.c.h.b16 %v4622
        %v4660 = vunpack.c.l.b16 %v4623
        %v4661 = vunpack.c.h.b16 %v4623
        %v4662 = vunpack.c.l.b16 %v4624
        %v4663 = vunpack.c.h.b16 %v4624
        %v4664 = vunpack.c.l.b16 %v4625
        %v4665 = vunpack.c.h.b16 %v4625
        %v4666 = vunpack.c.l.b16 %v4626
        %v4667 = vunpack.c.h.b16 %v4626
        %v4668 = vunpack.c.l.b16 %v4627
        %v4669 = vunpack.c.h.b16 %v4627
        %v4670 = vunpack.c.l.b16 %v4628
        %v4671 = vunpack.c.h.b16 %v4628
        %v4672 = vunpack.c.l.b16 %v4629
        %v4673 = vunpack.c.h.b16 %v4629
        %v4674 = vunpack.c.l.b16 %v4630
        %v4675 = vunpack.c.h.b16 %v4630
        %v4676 = vunpack.c.l.b16 %v4631
        %v4677 = vunpack.c.h.b16 %v4631
        %v4678 = vunpack.c.l.b16 %v4632
        %v4679 = vunpack.c.h.b16 %v4632
        %v4680 = vunpack.c.l.b16 %v4633
        %v4681 = vunpack.c.h.b16 %v4633
        %v4682 = vpack.c.b16 %v4652, %v4650
        %v4683 = vpack.c.b16 %v4653, %v4651
        %v4684 = vpack.c.b16 %v4656, %v4654
        %v4685 = vpack.c.b16 %v4657, %v4655
        %v4686 = vpack.c.b16 %v4660, %v4658
        %v4687 = vpack.c.b16 %v4661, %v4659
        %v4688 = vpack.c.b16 %v4664, %v4662
        %v4689 = vpack.c.b16 %v4665, %v4663
        %v4690 = vpack.c.b16 %v4668, %v4666
        %v4691 = vpack.c.b16 %v4669, %v4667
        %v4692 = vpack.c.b16 %v4672, %v4670
        %v4693 = vpack.c.b16 %v4673, %v4671
        %v4694 = vpack.c.b16 %v4676, %v4674
        %v4695 = vpack.c.b16 %v4677, %v4675
        %v4696 = vpack.c.b16 %v4680, %v4678
        %v4697 = vpack.c.b16 %v4681, %v4679
        %4714 = vmatprep.subr.bf16.mxu0 %v4697
        %4715 = vmatpush1.bf16.msra.mxu0 %v4696
        %4716 = vmatprep.subr.bf16.mxu0 %v4695
        %4717 = vmatpush1.bf16.msra.mxu0 %v4694
        %4718 = vmatprep.subr.bf16.mxu0 %v4693
        %4719 = vmatpush1.bf16.msra.mxu0 %v4692
        %4720 = vmatprep.subr.bf16.mxu0 %v4691
        %4721 = vmatpush1.bf16.msra.mxu0 %v4690
        %4722 = vmatprep.subr.bf16.mxu0 %v4689
        %4723 = vmatpush1.bf16.msra.mxu0 %v4688
        %4724 = vmatprep.subr.bf16.mxu0 %v4687
        %4725 = vmatpush1.bf16.msra.mxu0 %v4686
        %4726 = vmatprep.subr.bf16.mxu0 %v4685
        %4727 = vmatpush1.bf16.msra.mxu0 %v4684
        %4728 = vmatprep.subr.bf16.mxu0 %v4683
        %4729 = vmatpush1.bf16.msra.mxu0 %v4682
        %4730 = vmatprep.subr.bf16.mxu0 0
        %4731 = vmatpush2.bf16.msra.mxu0 0
        %4732 = vmatprep.subr.bf16.mxu0 0
        %4733 = vmatpush2.bf16.msra.mxu0 0
        %4734 = vmatprep.subr.bf16.mxu0 0
        %4735 = vmatpush2.bf16.msra.mxu0 0
        %4736 = vmatprep.subr.bf16.mxu0 0
        %4737 = vmatpush2.bf16.msra.mxu0 0
        %4738 = vmatprep.subr.bf16.mxu0 0
        %4739 = vmatpush2.bf16.msra.mxu0 0
        %4740 = vmatprep.subr.bf16.mxu0 0
        %4741 = vmatpush2.bf16.msra.mxu0 0
        %4742 = vmatprep.subr.bf16.mxu0 0
        %4743 = vmatpush2.bf16.msra.mxu0 0
        %4744 = vmatprep.subr.bf16.mxu0 0
        %4745 = vmatpush2.bf16.msra.mxu0 0
        %4746 = vmatprep.mubr.bf16.mxu0 0
        %4747 = vmatmul.mubr.bf16.gmra.mxu0 %v4333
        %v4748 = vpop.f32.mrf.mxu0
        %v4749 = vadd.f32 0.0, %v4748
        %v4750 = vpop.f32.mrf.mxu0
        %v4751 = vadd.f32 0.0, %v4750
        %v4752 = vpop.f32.mrf.mxu0
        %v4753 = vadd.f32 0.0, %v4752
        %v4754 = vpop.f32.mrf.mxu0
        %v4755 = vadd.f32 0.0, %v4754
        %4756 = vmatprep.mubr.bf16.mxu0 0
        %4757 = vmatmul.mubr.bf16.gmra.mxu0 %v4334
        %v4758 = vpop.f32.mrf.mxu0
        %v4759 = vadd.f32 0.0, %v4758
        %v4760 = vpop.f32.mrf.mxu0
        %v4761 = vadd.f32 0.0, %v4760
        %v4762 = vpop.f32.mrf.mxu0
        %v4763 = vadd.f32 0.0, %v4762
        %v4764 = vpop.f32.mrf.mxu0
        %v4765 = vadd.f32 0.0, %v4764
        %4766 = vdwg.mxu0
        %v4767 = vadd.f32 %v4599, %v4749
        %v4768 = vadd.f32 %v4601, %v4751
        %v4769 = vadd.f32 %v4603, %v4753
        %v4770 = vadd.f32 %v4605, %v4755
        %v4771 = vadd.f32 %v4609, %v4759
        %v4772 = vadd.f32 %v4611, %v4761
        %v4773 = vadd.f32 %v4613, %v4763
        %v4774 = vadd.f32 %v4615, %v4765
        %vm4775 = vcmp.lt.s32.totalorder %v692, 0
        %v4776 = vsub.s32 0, %v692
        %v4777 = vsel %vm4775, %v4776, %v692
        %v4778 = vshrl.u32 %v4777, 1
        %v4779 = vand.u32 %v4777, 1
        %v4780 = vsub.s32 0, %v4779
        %v4781 = vsel %vm4775, %v4780, %v4779
        %vm4782 = vcmp.lt.s32.totalorder %v693, 0
        %v4783 = vsub.s32 0, %v693
        %v4784 = vsel %vm4782, %v4783, %v693
        %v4785 = vshrl.u32 %v4784, 1
        %v4786 = vand.u32 %v4784, 1
        %v4787 = vsub.s32 0, %v4786
        %v4788 = vsel %vm4782, %v4787, %v4786
        %vm4789 = vcmp.lt.s32.totalorder %v694, 0
        %v4790 = vsub.s32 0, %v694
        %v4791 = vsel %vm4789, %v4790, %v694
        %v4792 = vshrl.u32 %v4791, 1
        %v4793 = vand.u32 %v4791, 1
        %v4794 = vsub.s32 0, %v4793
        %v4795 = vsel %vm4789, %v4794, %v4793
        %vm4796 = vcmp.lt.s32.totalorder %v695, 0
        %v4797 = vsub.s32 0, %v695
        %v4798 = vsel %vm4796, %v4797, %v695
        %v4799 = vshrl.u32 %v4798, 1
        %v4800 = vand.u32 %v4798, 1
        %v4801 = vsub.s32 0, %v4800
        %v4802 = vsel %vm4796, %v4801, %v4800
        %vm4803 = vcmp.ne.s32.totalorder %v4781, 0
        %vm4804 = vcmp.ne.s32.totalorder %v4788, 0
        %vm4805 = vcmp.ne.s32.totalorder %v4795, 0
        %vm4806 = vcmp.ne.s32.totalorder %v4802, 0
        %vm4807 = vcmp.lt.s32.totalorder %v4781, 0
        %vm4808 = vcmp.lt.s32.totalorder %v4788, 0
        %vm4809 = vcmp.lt.s32.totalorder %v4795, 0
        %vm4810 = vcmp.lt.s32.totalorder %v4802, 0
        %vm4811 = vmand %vm4807, %vm4803
        %vm4812 = vmand %vm4808, %vm4804
        %vm4813 = vmand %vm4809, %vm4805
        %vm4814 = vmand %vm4810, %vm4806
        %v4815 = vadd.s32 %v4781, 2
        %v4816 = vadd.s32 %v4788, 2
        %v4817 = vadd.s32 %v4795, 2
        %v4818 = vadd.s32 %v4802, 2
        %v4819 = vsel %vm4811, %v4815, %v4781
        %v4820 = vsel %vm4812, %v4816, %v4788
        %v4821 = vsel %vm4813, %v4817, %v4795
        %v4822 = vsel %vm4814, %v4818, %v4802
        %vm4823 = vcmp.eq.s32.totalorder %v4819, 0
        %vm4824 = vcmp.eq.s32.totalorder %v4820, 0
        %vm4825 = vcmp.eq.s32.totalorder %v4821, 0
        %vm4826 = vcmp.eq.s32.totalorder %v4822, 0
        %v4827 = vsel %vm4823, 1, 0
        %v4828 = vsel %vm4824, 1, 0
        %v4829 = vsel %vm4825, 1, 0
        %v4830 = vsel %vm4826, 1, 0
        %vm4831 = vcmp.eq.s32.totalorder %v4827, 1
        %vm4832 = vcmp.eq.s32.totalorder %v4828, 1
        %vm4833 = vcmp.eq.s32.totalorder %v4829, 1
        %vm4834 = vcmp.eq.s32.totalorder %v4830, 1
        %v4835 = vsel %vm4831, %v4767, 0.0
        %v4836 = vsel %vm4832, %v4769, 0.0
        %v4837 = vsel %vm4833, %v4771, 0.0
        %v4838 = vsel %vm4834, %v4773, 0.0
        %v4839 = vsel %vm4831, %v4768, 0.0
        %v4840 = vsel %vm4832, %v4770, 0.0
        %v4841 = vsel %vm4833, %v4772, 0.0
        %v4842 = vsel %vm4834, %v4774, 0.0
        %v4847 = vrot.slane %v4839, 7
        %v4848 = vrot.slane %v4840, 7
        %v4849 = vsel %vm1178, %v4847, %v4848
        %v4850 = vrot.slane %v4841, 7
        %v4851 = vsel %vm1178, %v4848, %v4850
        %v4852 = vrot.slane %v4842, 7
        %v4853 = vsel %vm1178, %v4850, %v4852
        %v4858 = vsel %vm1178, 0.0, %v4847
        %v4859 = vadd.f32 %v4835, %v4858
        %v4860 = vadd.f32 %v4836, %v4849
        %v4861 = vadd.f32 %v4837, %v4851
        %v4862 = vadd.f32 %v4838, %v4853
        %v4863 = vld [vmem:[%s16] sm:$0x1]
        %v4865 = vlaneseq
        %v4866 = vshrl.u32 %v4865, 7
        %v4867 = vsub.s32 0, %v4866
        %v4868 = vrot.slane %v4863, %v4867
        %v4870 = vadd.f32 %v4859, %v4868
        %v4871 = vadd.f32 %v4860, %v4868
        %v4872 = vadd.f32 %v4861, %v4868
        %v4873 = vadd.f32 %v4862, %v4868
        %v4874 = vmax.f32 %v4870, 0.0
        %v4875 = vmax.f32 %v4871, 0.0
        %v4876 = vmax.f32 %v4872, 0.0
        %v4877 = vmax.f32 %v4873, 0.0
        %4878 = vst [vmem:[%s638] sm:$0xff] %v4874
        %4879 = vst [vmem:[%s638 + $0x8] sm:$0xff] %v4875
        %4880 = vst [vmem:[%s638 + $0x10] sm:$0xff] %v4876
        %4881 = vst [vmem:[%s638 + $0x18] sm:$0xff] %v4877
        %s4882 = smul.u32 4, %s32
        %p4883 = scmp.lt.s32.totalorder %s4882, 7
        %s4884 = scalar_select %p4883, %s4882, 7
        %s4885 = smul.addr %s4884, 8
        %s4886 = scalar_lea.vmem %s17, %s4885
        // Predicated region
        $region113: #{ae_forward.1} parent=87 // pred_check
          %p4887 = pneg %p412
        $region114: #{ae_forward.1} parent=87 // pred_check_branch
          %4889 = sbr.rel (%p4887) target = $region116
        $region115: #{ae_forward.1} parent=87 // pred_region
          %s4890 = smul.u32 4, %s32
        $region116: #{ae_forward.1} parent=87 // pred_fallthru
          _
      $region88: #{ae_forward.1} parent=5 // pred_fallthru
        _
      %p4891 = scmp.le.s32.totalorder 2, %s27
      // Predicated region
      $region117: #{ae_forward.1} parent=5 // pred_check
        %p4892 = pneg %p4891
      $region118: #{ae_forward.1} parent=5 // pred_check_branch
        %4894 = sbr.rel (%p4892) target = $region120
      $region119: #{ae_forward.1} parent=5 // pred_region
        %s4895 = ssub.s32 %s27, 2
        // Predicated region
        $region121: #{ae_forward.1} parent=119 // pred_check
          %p4896 = pneg %p418
        $region122: #{ae_forward.1} parent=119 // pred_check_branch
          %4898 = sbr.rel (%p4896) target = $region124
        $region123: #{ae_forward.1} parent=119 // pred_region
          %s4899 = smul.u32 4, %s33
          %p4900 = scmp.lt.s32.totalorder %s4899, 7
          %s4901 = scalar_select %p4900, %s4899, 7
          %s4902 = smul.addr %s4901, 8
          %s4903 = scalar_lea.vmem %s17, %s4902
        $region124: #{ae_forward.1} parent=119 // pred_fallthru
          _
      $region120: #{ae_forward.1} parent=5 // pred_fallthru
        _
    $region6: #{ae_forward.1} parent=1 // loop_footer
      %s31 = sadd.s32 1, %s27
    $region7: #{ae_forward.1} parent=1 // loop_footer_branch
      %26 = sbr.rel target = $region3
    $region8: #{ae_forward.1} parent=1 // loop_exit
      _
    %4904 = vsyncpa [#allocation3], 1
    %s4905 = scalar_lea.sflag [#allocation3], 1
    %4906 = vsyncpa %s4905, 1
    %4907 = vsyncpa [#allocation5], 1
    %4908 = vsyncpa [#allocation8], 1
    %4909 = vsyncpa [#allocation11], 1

</llo_original>
